<compile_context>
chip_gen: v5e
topology: v5e:2x2
jax: 0.10.0
libtpu: 0.0.40
codegen_flags: <defaults>
</compile_context>

<pallas_src>
import math

import jax
import jax.numpy as jnp
from jax import lax
from jax.experimental import pallas as pl
from jax.experimental.pallas import tpu as pltpu

NEG_INF = -1e9        # exp() of (x + NEG_INF) underflows to exactly 0 in f32
BF16 = jnp.bfloat16


# ----------------------------- BlockSpec helpers ----------------------------

def _bcast_spec(shape):
    """Whole array, same block for every grid step (weights / PE / scales)."""
    nd = len(shape)
    return pl.BlockSpec(tuple(shape), lambda b: (0,) * nd)


def _per_batch_spec(shape):
    """Leading dim blocked by 1 (one batch element per grid step)."""
    nd = len(shape)
    return pl.BlockSpec((1,) + tuple(shape[1:]), lambda b: (b,) + (0,) * (nd - 1))


# ------------------------------- conv-proj kernel ---------------------------

def _matmul_bias_kernel(x_ref, w_ref, b_ref, o_ref):
    o_ref[...] = (jnp.dot(x_ref[...].astype(BF16), w_ref[...].astype(BF16),
                          preferred_element_type=jnp.float32) + b_ref[...])


def pallas_conv_proj(x, w, b):
    """backbone.fc 1x1 Conv2d(2048 -> hidden/2) as o = x @ w + b.

    Full K in one block (fits VMEM trivially), M split over >=2 "parallel"
    blocks so v7x's two TensorCores both work (no effect on v5e/v6e)."""
    M, K = x.shape
    N = w.shape[1]
    if M % 16 == 0:
        tm = M // 2
        while tm > 256 and tm % 2 == 0 and (tm // 2) % 8 == 0:
            tm //= 2
    else:
        tm = M
    return pl.pallas_call(
        _matmul_bias_kernel,
        out_shape=jax.ShapeDtypeStruct((M, N), jnp.float32),
        grid=(M // tm,),
        in_specs=[pl.BlockSpec((tm, K), lambda i: (i, 0)),
                  pl.BlockSpec((K, N), lambda i: (0, 0)),
                  pl.BlockSpec((1, N), lambda i: (0, 0))],
        out_specs=pl.BlockSpec((tm, N), lambda i: (i, 0)),
        compiler_params=pltpu.CompilerParams(
            dimension_semantics=("parallel",),
            vmem_limit_bytes=32 << 20),
    )(x, w, b)


# --------------------------- fused transformer kernel -----------------------

def _fused_transformer_kernel(x_ref, emb_ref, kp_ref, tb_ref,
                              pe_s_ref, pe_t_ref, se_ref, sd_ref,
                              e_wqkv, e_bqkv, e_wo, e_bo, e_ln1,
                              e_w1, e_b1, e_w2, e_b2, e_ln2, e_lnf,
                              d_wqkv, d_bqkv, d_wo1, d_bo1, d_ln1,
                              d_wq, d_bq, d_wkv, d_bkv, d_wo2, d_bo2, d_ln2,
                              d_w1, d_b1, d_w2, d_b2, d_ln3, d_lnf,
                              fc_w, fc_b, o_ref):
    """One batch element: PE add + encoder layer + decoder layer + fc_out."""
    E = x_ref.shape[-1]
    inv_sqrt_e = 1.0 / math.sqrt(E)          # nhead == 1 => head_dim == E

    def ln(x, p_ref):                         # p_ref: [2, E] = (gamma, beta)
        mu = jnp.mean(x, axis=-1, keepdims=True)
        xc = x - mu
        var = jnp.mean(xc * xc, axis=-1, keepdims=True)
        return xc * lax.rsqrt(var + 1e-5) * p_ref[0:1, :] + p_ref[1:2, :]

    def mm(a, w_ref, b_ref):                  # bf16 operands, f32 accumulation
        return jnp.dot(a.astype(BF16), w_ref[...].astype(BF16),
                       preferred_element_type=jnp.float32) + b_ref[...]

    def mm_arr(a, b):
        return jnp.dot(a.astype(BF16), b.astype(BF16),
                       preferred_element_type=jnp.float32)

    def softmax(s):
        s = s - jnp.max(s, axis=-1, keepdims=True)
        p = jnp.exp(s)
        return p * pl.reciprocal(jnp.sum(p, axis=-1, keepdims=True), approx=True)

    def attn_core(q, k, v, bias, wo_ref, bo_ref):
        # scale folded into q ([T,E]) instead of the [T,T] score matrix
        s = lax.dot_general((q * inv_sqrt_e).astype(BF16), k.astype(BF16),
                            (((1,), (1,)), ((), ())),
                            preferred_element_type=jnp.float32)
        p = softmax(s + bias)
        ctx = mm_arr(p, v)
        return mm(ctx, wo_ref, bo_ref)

    def ffn_res_ln2(x, w1_ref, b1_ref, w2_ref, b2_ref, lna_ref, lnb_ref):
        h = jnp.maximum(mm(x, w1_ref, b1_ref), 0.0)
        y = mm(h, w2_ref, b2_ref)
        return ln(ln(x + y, lna_ref), lnb_ref)   # layer norm2/3 + final norm

    # ----- encoder (1 post-LN layer + final encoder norm) -----
    src = x_ref[0] + se_ref[...] * pe_s_ref[0]                  # [S, E]
    qkv = mm(src, e_wqkv, e_bqkv)                               # [S, 3E] one wide dot
    a = attn_core(qkv[:, :E], qkv[:, E:2 * E], qkv[:, 2 * E:],
                  kp_ref[0], e_wo, e_bo)
    h = ln(src + a, e_ln1)
    mem = ffn_res_ln2(h, e_w1, e_b1, e_w2, e_b2, e_ln2, e_lnf)  # [S, E]

    # ----- decoder (1 post-LN layer + final decoder norm) -----
    tgt = emb_ref[0] + sd_ref[...] * pe_t_ref[0]                # [L, E]
    qkv = mm(tgt, d_wqkv, d_bqkv)                               # [L, 3E]
    a = attn_core(qkv[:, :E], qkv[:, E:2 * E], qkv[:, 2 * E:],
                  tb_ref[0], d_wo1, d_bo1)                      # causal+pad bias
    h1 = ln(tgt + a, d_ln1)

    qc = mm(h1, d_wq, d_bq)                                     # [L, E]
    kv = mm(mem, d_wkv, d_bkv)                                  # [S, 2E]
    a2 = attn_core(qc, kv[:, :E], kv[:, E:], kp_ref[0], d_wo2, d_bo2)
    h2 = ln(h1 + a2, d_ln2)
    out = ffn_res_ln2(h2, d_w1, d_b1, d_w2, d_b2, d_ln3, d_lnf)  # [L, E]

    # fc_out : Linear(hidden, outtoken)
    o_ref[0] = mm(out, fc_w, fc_b)


def pallas_fused_transformer(x, tgt_emb, src_kp3, trg_bias, pe_s, pe_t,
                             scale_enc, scale_dec, enc, enc_norm,
                             dec, dec_norm, fc_w, fc_b):
    B, S, E = x.shape
    L = tgt_emb.shape[1]
    V = fc_w.shape[1]

    per_batch = [x, tgt_emb, src_kp3, trg_bias]
    bcast = [pe_s, pe_t, scale_enc, scale_dec,
             enc['wqkv'], enc['bqkv'], enc['wo'], enc['bo'], enc['ln1'],
             enc['w1'], enc['b1'], enc['w2'], enc['b2'], enc['ln2'], enc_norm,
             dec['wqkv'], dec['bqkv'], dec['wo_self'], dec['bo_self'], dec['ln1'],
             dec['wq'], dec['bq'], dec['wkv'], dec['bkv'],
             dec['wo_cross'], dec['bo_cross'], dec['ln2'],
             dec['w1'], dec['b1'], dec['w2'], dec['b2'], dec['ln3'], dec_norm,
             fc_w, fc_b]

    in_specs = ([_per_batch_spec(a.shape) for a in per_batch]
                + [_bcast_spec(a.shape) for a in bcast])

    return pl.pallas_call(
        _fused_transformer_kernel,
        out_shape=jax.ShapeDtypeStruct((B, L, V), jnp.float32),
        grid=(B,),
        in_specs=in_specs,
        out_specs=pl.BlockSpec((1, L, V), lambda b: (b, 0, 0)),
        compiler_params=pltpu.CompilerParams(
            dimension_semantics=("parallel",),
            vmem_limit_bytes=32 << 20),
    )(*per_batch, *bcast)


# ------------------------------ model forward -------------------------------

def transformer_model_forward(params, feat, trg, hidden):
    """feat: [B, 2048, Hf, Wf] (output of backbone layer4, NCHW); trg: [L, B] int32."""
    B, Cf, Hf, Wf = feat.shape
    L = trg.shape[0]
    E = hidden
    C2 = E // 2

    # backbone.fc : 1x1 Conv2d(2048 -> hidden/2) as one Pallas matmul.
    xf = feat.transpose(0, 2, 3, 1).reshape(B * Hf * Wf, Cf)     # NHWC rows
    y = pallas_conv_proj(xf, params['conv_w'], params['conv_b'])
    y = y.reshape(B, Hf, Wf, C2)

    # permute(0,3,1,2).flatten(2), kept batch-first: [B, S=Wf, E=C2*Hf]
    x = y.transpose(0, 2, 3, 1).reshape(B, Wf, C2 * Hf)
    S = Wf
    assert x.shape[-1] == E, "feature height must be 2 so (hidden/2)*Hf == hidden"

    # Additive masks, built ONCE outside the kernel.
    # src mask matches the reference exactly: make_len_mask(x[:, :, 0]) is a
    # float-equality test on channel 0 of the post-conv feature.
    src_kp3 = jnp.where(x[:, :, 0] == 0.0, NEG_INF, 0.0)[:, None, :]          # [B,1,S]
    trg_kp = jnp.where(trg.T == 0, NEG_INF, 0.0).astype(jnp.float32)          # [B,L]
    causal = jnp.where(jnp.arange(L)[None, :] > jnp.arange(L)[:, None],
                       NEG_INF, 0.0).astype(jnp.float32)                      # [L,L]
    trg_bias = causal[None] + trg_kp[:, None, :]                              # [B,L,L]

    tgt_emb = jnp.take(params['emb'], trg.T, axis=0)        # embedding gather (glue)
    pe_s = params['pe'][:S][None]                            # [1,S,E]
    pe_t = params['pe'][:L][None]                            # [1,L,E]

    logits = pallas_fused_transformer(
        x, tgt_emb, src_kp3.astype(jnp.float32), trg_bias, pe_s, pe_t,
        params['scale_enc'], params['scale_dec'],
        params['enc'], params['enc_norm'],
        params['dec'], params['dec_norm'],
        params['fc_w'], params['fc_b'])                      # [B, L, V]

    return logits.transpose(1, 0, 2)                         # seq-first [L, B, V]


# ------------------------------ parameter init --------------------------------

def make_positional_encoding(max_len, d_model):
    pos = jnp.arange(max_len, dtype=jnp.float32)[:, None]
    div = jnp.exp(jnp.arange(0, d_model, 2, dtype=jnp.float32)
                  * (-math.log(10000.0) / d_model))
    pe = jnp.zeros((max_len, d_model), jnp.float32)
    pe = pe.at[:, 0::2].set(jnp.sin(pos * div))
    pe = pe.at[:, 1::2].set(jnp.cos(pos * div))
    return pe                                                 # [max_len, d_model]


def init_params(key, hidden, outtoken, c_feat=2048, max_len=5000):
    E = hidden
    keys = iter(jax.random.split(key, 64))

    def nrm(shape, scale=0.02):
        return jax.random.normal(next(keys), shape, dtype=jnp.float32) * scale

    def ln_p():                                               # [2, E] = (gamma, beta)
        return jnp.concatenate([jnp.ones((1, E), jnp.float32),
                                jnp.zeros((1, E), jnp.float32)], axis=0)

    enc = {'wqkv': nrm((E, 3 * E)), 'bqkv': nrm((1, 3 * E)),
           'wo': nrm((E, E)), 'bo': nrm((1, E)), 'ln1': ln_p(),
           'w1': nrm((E, 4 * E)), 'b1': nrm((1, 4 * E)),
           'w2': nrm((4 * E, E)), 'b2': nrm((1, E)), 'ln2': ln_p()}
    dec = {'wqkv': nrm((E, 3 * E)), 'bqkv': nrm((1, 3 * E)),
           'wo_self': nrm((E, E)), 'bo_self': nrm((1, E)), 'ln1': ln_p(),
           'wq': nrm((E, E)), 'bq': nrm((1, E)),
           'wkv': nrm((E, 2 * E)), 'bkv': nrm((1, 2 * E)),
           'wo_cross': nrm((E, E)), 'bo_cross': nrm((1, E)), 'ln2': ln_p(),
           'w1': nrm((E, 4 * E)), 'b1': nrm((1, 4 * E)),
           'w2': nrm((4 * E, E)), 'b2': nrm((1, E)), 'ln3': ln_p()}

    return {
        'conv_w': nrm((c_feat, E // 2)),          # Conv2d(2048, hidden/2, 1) weight (transposed)
        'conv_b': nrm((1, E // 2)),
        'emb': nrm((outtoken, E)),                # nn.Embedding(outtoken, hidden)
        'pe': make_positional_encoding(max_len, E),
        'scale_enc': jnp.ones((1, 1), jnp.float32),
        'scale_dec': jnp.ones((1, 1), jnp.float32),
        'enc': enc, 'enc_norm': ln_p(),
        'dec': dec, 'dec_norm': ln_p(),
        'fc_w': nrm((E, outtoken)),               # nn.Linear(hidden, outtoken) (transposed)
        'fc_b': nrm((1, outtoken)),
    }


# ----------------------------------- main -------------------------------------

if __name__ == "__main__":
    hidden, outtoken = 32, 16
    B, Hf, Wf, L = 2, 2, 4, 6                      # Hf=2 so (hidden/2)*Hf == hidden

    key = jax.random.PRNGKey(0)
    kp, kf, kt = jax.random.split(key, 3)
    params = init_params(kp, hidden, outtoken)
    feat = jax.random.normal(kf, (B, 2048, Hf, Wf), dtype=jnp.float32)
    trg = jax.random.randint(kt, (L, B), 1, outtoken, dtype=jnp.int32)

    fwd = jax.jit(lambda p, f, t: transformer_model_forward(p, f, t, hidden))
    out = fwd(params, feat, trg)
    out = jax.block_until_ready(out)

    assert out.shape == (L, B, outtoken), out.shape
    assert bool(jnp.all(jnp.isfinite(out)))
    print("KERNEL_OK")
</pallas_src>

<mosaic_0001>
module attributes {stable_mosaic.version = 11 : i64} {
  func.func @_matmul_bias_kernel(%arg0: i32, %arg1: memref<8x2048xf32, #tpu.memory_space<vmem>>, %arg2: memref<2048x16xf32, #tpu.memory_space<vmem>>, %arg3: memref<1x16xf32, #tpu.memory_space<vmem>>, %arg4: memref<8x16xf32, #tpu.memory_space<vmem>>) attributes {dimension_semantics = [#tpu.dimension_semantics<parallel>], iteration_bounds = array<i64: 2>, scalar_prefetch = 0 : i64, scratch_operands = 0 : i64, tpu.core_type = #tpu.core_type<tc>, window_params = [{transform_indices = @transform_0, window_bounds = array<i64: 8, 2048>}, {pipeline_mode = #tpu.pipeline_mode<synchronous>, transform_indices = @transform_1, window_bounds = array<i64: 2048, 16>}, {pipeline_mode = #tpu.pipeline_mode<synchronous>, transform_indices = @transform_2, window_bounds = array<i64: 1, 16>}, {transform_indices = @transform_3, window_bounds = array<i64: 8, 16>}]} {
    %c0 = arith.constant 0 : index
    %c0_0 = arith.constant 0 : index
    %0 = vector.load %arg1[%c0, %c0_0] : memref<8x2048xf32, #tpu.memory_space<vmem>>, vector<8x2048xf32>
    %1 = arith.truncf %0 : vector<8x2048xf32> to vector<8x2048xbf16>
    %c0_1 = arith.constant 0 : index
    %c0_2 = arith.constant 0 : index
    %2 = vector.load %arg2[%c0_1, %c0_2] : memref<2048x16xf32, #tpu.memory_space<vmem>>, vector<2048x16xf32>
    %3 = arith.truncf %2 : vector<2048x16xf32> to vector<2048x16xbf16>
    %cst = arith.constant dense<0.000000e+00> : vector<8x16xf32>
    %4 = tpu.matmul %1, %3, %cst {dimension_numbers = #tpu.dot_dimension_numbers<[1], [0], [0], [1], [0, 0, 1, 1], [], []>} : vector<8x2048xbf16>, vector<2048x16xbf16>, vector<8x16xf32> -> vector<8x16xf32>
    %c0_3 = arith.constant 0 : index
    %c0_4 = arith.constant 0 : index
    %5 = vector.load %arg3[%c0_3, %c0_4] : memref<1x16xf32, #tpu.memory_space<vmem>>, vector<1x16xf32>
    %6 = vector.broadcast %5 : vector<1x16xf32> to vector<8x16xf32>
    %7 = arith.addf %4, %6 : vector<8x16xf32>
    %c0_5 = arith.constant 0 : index
    %c0_6 = arith.constant 0 : index
    %8 = vector.load %arg4[%c0_5, %c0_6] : memref<8x16xf32, #tpu.memory_space<vmem>>, vector<8x16xf32>
    tpu.vector_store %arg4[%c0_5, %c0_6], %7 {strides = array<i32>} : memref<8x16xf32, #tpu.memory_space<vmem>>, vector<8x16xf32>,
    return
  }
  func.func @transform_0(%arg0: i32) -> (i32, i32) {
    %c0_i32 = arith.constant 0 : i32
    %c0_i32_0 = arith.constant 0 : i32
    return %arg0, %c0_i32 : i32, i32
  }
  func.func @transform_1(%arg0: i32) -> (i32, i32) {
    %c0_i32 = arith.constant 0 : i32
    %c0_i32_0 = arith.constant 0 : i32
    %c0_i32_1 = arith.constant 0 : i32
    return %c0_i32, %c0_i32_0 : i32, i32
  }
  func.func @transform_2(%arg0: i32) -> (i32, i32) {
    %c0_i32 = arith.constant 0 : i32
    %c0_i32_0 = arith.constant 0 : i32
    %c0_i32_1 = arith.constant 0 : i32
    return %c0_i32, %c0_i32_0 : i32, i32
  }
  func.func @transform_3(%arg0: i32) -> (i32, i32) {
    %c0_i32 = arith.constant 0 : i32
    %c0_i32_0 = arith.constant 0 : i32
    return %arg0, %c0_i32 : i32, i32
  }
}

module attributes {stable_mosaic.version = 11 : i64} {
  func.func @_fused_transformer_kernel(%arg0: i32, %arg1: memref<1x4x32xf32, #tpu.memory_space<vmem>>, %arg2: memref<1x6x32xf32, #tpu.memory_space<vmem>>, %arg3: memref<1x1x4xf32, #tpu.memory_space<vmem>>, %arg4: memref<1x6x6xf32, #tpu.memory_space<vmem>>, %arg5: memref<1x4x32xf32, #tpu.memory_space<vmem>>, %arg6: memref<1x6x32xf32, #tpu.memory_space<vmem>>, %arg7: memref<1x1xf32, #tpu.memory_space<vmem>>, %arg8: memref<1x1xf32, #tpu.memory_space<vmem>>, %arg9: memref<32x96xf32, #tpu.memory_space<vmem>>, %arg10: memref<1x96xf32, #tpu.memory_space<vmem>>, %arg11: memref<32x32xf32, #tpu.memory_space<vmem>>, %arg12: memref<1x32xf32, #tpu.memory_space<vmem>>, %arg13: memref<2x32xf32, #tpu.memory_space<vmem>>, %arg14: memref<32x128xf32, #tpu.memory_space<vmem>>, %arg15: memref<1x128xf32, #tpu.memory_space<vmem>>, %arg16: memref<128x32xf32, #tpu.memory_space<vmem>>, %arg17: memref<1x32xf32, #tpu.memory_space<vmem>>, %arg18: memref<2x32xf32, #tpu.memory_space<vmem>>, %arg19: memref<2x32xf32, #tpu.memory_space<vmem>>, %arg20: memref<32x96xf32, #tpu.memory_space<vmem>>, %arg21: memref<1x96xf32, #tpu.memory_space<vmem>>, %arg22: memref<32x32xf32, #tpu.memory_space<vmem>>, %arg23: memref<1x32xf32, #tpu.memory_space<vmem>>, %arg24: memref<2x32xf32, #tpu.memory_space<vmem>>, %arg25: memref<32x32xf32, #tpu.memory_space<vmem>>, %arg26: memref<1x32xf32, #tpu.memory_space<vmem>>, %arg27: memref<32x64xf32, #tpu.memory_space<vmem>>, %arg28: memref<1x64xf32, #tpu.memory_space<vmem>>, %arg29: memref<32x32xf32, #tpu.memory_space<vmem>>, %arg30: memref<1x32xf32, #tpu.memory_space<vmem>>, %arg31: memref<2x32xf32, #tpu.memory_space<vmem>>, %arg32: memref<32x128xf32, #tpu.memory_space<vmem>>, %arg33: memref<1x128xf32, #tpu.memory_space<vmem>>, %arg34: memref<128x32xf32, #tpu.memory_space<vmem>>, %arg35: memref<1x32xf32, #tpu.memory_space<vmem>>, %arg36: memref<2x32xf32, #tpu.memory_space<vmem>>, %arg37: memref<2x32xf32, #tpu.memory_space<vmem>>, %arg38: memref<32x16xf32, #tpu.memory_space<vmem>>, %arg39: memref<1x16xf32, #tpu.memory_space<vmem>>, %arg40: memref<1x6x16xf32, #tpu.memory_space<vmem>>) attributes {dimension_semantics = [#tpu.dimension_semantics<parallel>], iteration_bounds = array<i64: 2>, scalar_prefetch = 0 : i64, scratch_operands = 0 : i64, tpu.core_type = #tpu.core_type<tc>, window_params = [{transform_indices = @transform_0, window_bounds = array<i64: 1, 4, 32>}, {transform_indices = @transform_1, window_bounds = array<i64: 1, 6, 32>}, {transform_indices = @transform_2, window_bounds = array<i64: 1, 1, 4>}, {transform_indices = @transform_3, window_bounds = array<i64: 1, 6, 6>}, {pipeline_mode = #tpu.pipeline_mode<synchronous>, transform_indices = @transform_4, window_bounds = array<i64: 1, 4, 32>}, {pipeline_mode = #tpu.pipeline_mode<synchronous>, transform_indices = @transform_5, window_bounds = array<i64: 1, 6, 32>}, {pipeline_mode = #tpu.pipeline_mode<synchronous>, transform_indices = @transform_6, window_bounds = array<i64: 1, 1>}, {pipeline_mode = #tpu.pipeline_mode<synchronous>, transform_indices = @transform_7, window_bounds = array<i64: 1, 1>}, {pipeline_mode = #tpu.pipeline_mode<synchronous>, transform_indices = @transform_8, window_bounds = array<i64: 32, 96>}, {pipeline_mode = #tpu.pipeline_mode<synchronous>, transform_indices = @transform_9, window_bounds = array<i64: 1, 96>}, {pipeline_mode = #tpu.pipeline_mode<synchronous>, transform_indices = @transform_10, window_bounds = array<i64: 32, 32>}, {pipeline_mode = #tpu.pipeline_mode<synchronous>, transform_indices = @transform_11, window_bounds = array<i64: 1, 32>}, {pipeline_mode = #tpu.pipeline_mode<synchronous>, transform_indices = @transform_12, window_bounds = array<i64: 2, 32>}, {pipeline_mode = #tpu.pipeline_mode<synchronous>, transform_indices = @transform_13, window_bounds = array<i64: 32, 128>}, {pipeline_mode = #tpu.pipeline_mode<synchronous>, transform_indices = @transform_14, window_bounds = array<i64: 1, 128>}, {pipeline_mode = #tpu.pipeline_mode<synchronous>, transform_indices = @transform_15, window_bounds = array<i64: 128, 32>}, {pipeline_mode = #tpu.pipeline_mode<synchronous>, transform_indices = @transform_16, window_bounds = array<i64: 1, 32>}, {pipeline_mode = #tpu.pipeline_mode<synchronous>, transform_indices = @transform_17, window_bounds = array<i64: 2, 32>}, {pipeline_mode = #tpu.pipeline_mode<synchronous>, transform_indices = @transform_18, window_bounds = array<i64: 2, 32>}, {pipeline_mode = #tpu.pipeline_mode<synchronous>, transform_indices = @transform_19, window_bounds = array<i64: 32, 96>}, {pipeline_mode = #tpu.pipeline_mode<synchronous>, transform_indices = @transform_20, window_bounds = array<i64: 1, 96>}, {pipeline_mode = #tpu.pipeline_mode<synchronous>, transform_indices = @transform_21, window_bounds = array<i64: 32, 32>}, {pipeline_mode = #tpu.pipeline_mode<synchronous>, transform_indices = @transform_22, window_bounds = array<i64: 1, 32>}, {pipeline_mode = #tpu.pipeline_mode<synchronous>, transform_indices = @transform_23, window_bounds = array<i64: 2, 32>}, {pipeline_mode = #tpu.pipeline_mode<synchronous>, transform_indices = @transform_24, window_bounds = array<i64: 32, 32>}, {pipeline_mode = #tpu.pipeline_mode<synchronous>, transform_indices = @transform_25, window_bounds = array<i64: 1, 32>}, {pipeline_mode = #tpu.pipeline_mode<synchronous>, transform_indices = @transform_26, window_bounds = array<i64: 32, 64>}, {pipeline_mode = #tpu.pipeline_mode<synchronous>, transform_indices = @transform_27, window_bounds = array<i64: 1, 64>}, {pipeline_mode = #tpu.pipeline_mode<synchronous>, transform_indices = @transform_28, window_bounds = array<i64: 32, 32>}, {pipeline_mode = #tpu.pipeline_mode<synchronous>, transform_indices = @transform_29, window_bounds = array<i64: 1, 32>}, {pipeline_mode = #tpu.pipeline_mode<synchronous>, transform_indices = @transform_30, window_bounds = array<i64: 2, 32>}, {pipeline_mode = #tpu.pipeline_mode<synchronous>, transform_indices = @transform_31, window_bounds = array<i64: 32, 128>}, {pipeline_mode = #tpu.pipeline_mode<synchronous>, transform_indices = @transform_32, window_bounds = array<i64: 1, 128>}, {pipeline_mode = #tpu.pipeline_mode<synchronous>, transform_indices = @transform_33, window_bounds = array<i64: 128, 32>}, {pipeline_mode = #tpu.pipeline_mode<synchronous>, transform_indices = @transform_34, window_bounds = array<i64: 1, 32>}, {pipeline_mode = #tpu.pipeline_mode<synchronous>, transform_indices = @transform_35, window_bounds = array<i64: 2, 32>}, {pipeline_mode = #tpu.pipeline_mode<synchronous>, transform_indices = @transform_36, window_bounds = array<i64: 2, 32>}, {pipeline_mode = #tpu.pipeline_mode<synchronous>, transform_indices = @transform_37, window_bounds = array<i64: 32, 16>}, {pipeline_mode = #tpu.pipeline_mode<synchronous>, transform_indices = @transform_38, window_bounds = array<i64: 1, 16>}, {transform_indices = @transform_39, window_bounds = array<i64: 1, 6, 16>}]} {
    %c0 = arith.constant 0 : index
    %c0_0 = arith.constant 0 : index
    %c0_1 = arith.constant 0 : index
    %0 = vector.load %arg1[%c0, %c0_0, %c0_1] : memref<1x4x32xf32, #tpu.memory_space<vmem>>, vector<1x4x32xf32>
    %1 = vector.shape_cast %0 : vector<1x4x32xf32> to vector<4x32xf32>
    %c0_2 = arith.constant 0 : index
    %c0_3 = arith.constant 0 : index
    %2 = vector.load %arg7[%c0_2, %c0_3] : memref<1x1xf32, #tpu.memory_space<vmem>>, vector<1x1xf32>
    %c0_4 = arith.constant 0 : index
    %c0_5 = arith.constant 0 : index
    %c0_6 = arith.constant 0 : index
    %3 = vector.load %arg5[%c0_4, %c0_5, %c0_6] : memref<1x4x32xf32, #tpu.memory_space<vmem>>, vector<1x4x32xf32>
    %4 = vector.shape_cast %3 : vector<1x4x32xf32> to vector<4x32xf32>
    %5 = vector.broadcast %2 : vector<1x1xf32> to vector<4x32xf32>
    %6 = arith.mulf %5, %4 : vector<4x32xf32>
    %7 = arith.addf %1, %6 : vector<4x32xf32>
    %8 = arith.truncf %7 : vector<4x32xf32> to vector<4x32xbf16>
    %c0_7 = arith.constant 0 : index
    %c0_8 = arith.constant 0 : index
    %9 = vector.load %arg9[%c0_7, %c0_8] : memref<32x96xf32, #tpu.memory_space<vmem>>, vector<32x96xf32>
    %10 = arith.truncf %9 : vector<32x96xf32> to vector<32x96xbf16>
    %cst = arith.constant dense<0.000000e+00> : vector<4x96xf32>
    %11 = tpu.matmul %8, %10, %cst {dimension_numbers = #tpu.dot_dimension_numbers<[1], [0], [0], [1], [0, 0, 1, 1], [], []>} : vector<4x32xbf16>, vector<32x96xbf16>, vector<4x96xf32> -> vector<4x96xf32>
    %c0_9 = arith.constant 0 : index
    %c0_10 = arith.constant 0 : index
    %12 = vector.load %arg10[%c0_9, %c0_10] : memref<1x96xf32, #tpu.memory_space<vmem>>, vector<1x96xf32>
    %13 = vector.broadcast %12 : vector<1x96xf32> to vector<4x96xf32>
    %14 = arith.addf %11, %13 : vector<4x96xf32>
    %15 = vector.extract_strided_slice %14 {offsets = [0, 0], sizes = [4, 32], strides = [1, 1]} : vector<4x96xf32> to vector<4x32xf32>
    %16 = vector.extract_strided_slice %14 {offsets = [0, 32], sizes = [4, 32], strides = [1, 1]} : vector<4x96xf32> to vector<4x32xf32>
    %17 = vector.extract_strided_slice %14 {offsets = [0, 64], sizes = [4, 32], strides = [1, 1]} : vector<4x96xf32> to vector<4x32xf32>
    %c0_11 = arith.constant 0 : index
    %c0_12 = arith.constant 0 : index
    %c0_13 = arith.constant 0 : index
    %18 = vector.load %arg3[%c0_11, %c0_12, %c0_13] : memref<1x1x4xf32, #tpu.memory_space<vmem>>, vector<1x1x4xf32>
    %19 = vector.shape_cast %18 : vector<1x1x4xf32> to vector<1x4xf32>
    %cst_14 = arith.constant 0.176776692 : f32
    %20 = vector.broadcast %cst_14 : f32 to vector<4x32xf32>
    %21 = arith.mulf %15, %20 : vector<4x32xf32>
    %22 = arith.truncf %21 : vector<4x32xf32> to vector<4x32xbf16>
    %23 = arith.truncf %16 : vector<4x32xf32> to vector<4x32xbf16>
    %cst_15 = arith.constant dense<0.000000e+00> : vector<4x4xf32>
    %24 = tpu.matmul %22, %23, %cst_15 {dimension_numbers = #tpu.dot_dimension_numbers<[1], [1], [0], [0], [0, 0, 1, 0], [], []>} : vector<4x32xbf16>, vector<4x32xbf16>, vector<4x4xf32> -> vector<4x4xf32>
    %25 = vector.broadcast %19 : vector<1x4xf32> to vector<4x4xf32>
    %26 = arith.addf %24, %25 : vector<4x4xf32>
    %cst_16 = arith.constant dense<0xFF800000> : vector<4xf32>
    %27 = vector.multi_reduction <maximumf>, %26, %cst_16 [1] : vector<4x4xf32> to vector<4xf32>
    %28 = vector.shape_cast %27 : vector<4xf32> to vector<4x1xf32>
    %29 = vector.broadcast %28 : vector<4x1xf32> to vector<4x4xf32>
    %30 = arith.subf %26, %29 : vector<4x4xf32>
    %31 = math.exp %30 : vector<4x4xf32>
    %cst_17 = arith.constant dense<0.000000e+00> : vector<4xf32>
    %32 = vector.multi_reduction <add>, %31, %cst_17 [1] : vector<4x4xf32> to vector<4xf32>
    %33 = vector.shape_cast %32 : vector<4xf32> to vector<4x1xf32>
    %34 = tpu.reciprocal %33 {approx = true} : vector<4x1xf32> -> vector<4x1xf32>
    %35 = vector.broadcast %34 : vector<4x1xf32> to vector<4x4xf32>
    %36 = arith.mulf %31, %35 : vector<4x4xf32>
    %37 = arith.truncf %36 : vector<4x4xf32> to vector<4x4xbf16>
    %38 = arith.truncf %17 : vector<4x32xf32> to vector<4x32xbf16>
    %cst_18 = arith.constant dense<0.000000e+00> : vector<4x32xf32>
    %39 = tpu.matmul %37, %38, %cst_18 {dimension_numbers = #tpu.dot_dimension_numbers<[1], [0], [0], [1], [0, 0, 1, 1], [], []>} : vector<4x4xbf16>, vector<4x32xbf16>, vector<4x32xf32> -> vector<4x32xf32>
    %40 = arith.truncf %39 : vector<4x32xf32> to vector<4x32xbf16>
    %c0_19 = arith.constant 0 : index
    %c0_20 = arith.constant 0 : index
    %41 = vector.load %arg11[%c0_19, %c0_20] : memref<32x32xf32, #tpu.memory_space<vmem>>, vector<32x32xf32>
    %42 = arith.truncf %41 : vector<32x32xf32> to vector<32x32xbf16>
    %cst_21 = arith.constant dense<0.000000e+00> : vector<4x32xf32>
    %43 = tpu.matmul %40, %42, %cst_21 {dimension_numbers = #tpu.dot_dimension_numbers<[1], [0], [0], [1], [0, 0, 1, 1], [], []>} : vector<4x32xbf16>, vector<32x32xbf16>, vector<4x32xf32> -> vector<4x32xf32>
    %c0_22 = arith.constant 0 : index
    %c0_23 = arith.constant 0 : index
    %44 = vector.load %arg12[%c0_22, %c0_23] : memref<1x32xf32, #tpu.memory_space<vmem>>, vector<1x32xf32>
    %45 = vector.broadcast %44 : vector<1x32xf32> to vector<4x32xf32>
    %46 = arith.addf %43, %45 : vector<4x32xf32>
    %47 = arith.addf %7, %46 : vector<4x32xf32>
    %cst_24 = arith.constant dense<0.000000e+00> : vector<4xf32>
    %48 = vector.multi_reduction <add>, %47, %cst_24 [1] : vector<4x32xf32> to vector<4xf32>
    %49 = vector.shape_cast %48 : vector<4xf32> to vector<4x1xf32>
    %cst_25 = arith.constant 3.200000e+01 : f32
    %50 = vector.broadcast %cst_25 : f32 to vector<4x1xf32>
    %51 = arith.divf %49, %50 : vector<4x1xf32>
    %52 = vector.broadcast %51 : vector<4x1xf32> to vector<4x32xf32>
    %53 = arith.subf %47, %52 : vector<4x32xf32>
    %54 = arith.mulf %53, %53 : vector<4x32xf32>
    %cst_26 = arith.constant dense<0.000000e+00> : vector<4xf32>
    %55 = vector.multi_reduction <add>, %54, %cst_26 [1] : vector<4x32xf32> to vector<4xf32>
    %56 = vector.shape_cast %55 : vector<4xf32> to vector<4x1xf32>
    %cst_27 = arith.constant 3.200000e+01 : f32
    %57 = vector.broadcast %cst_27 : f32 to vector<4x1xf32>
    %58 = arith.divf %56, %57 : vector<4x1xf32>
    %cst_28 = arith.constant 9.99999974E-6 : f32
    %59 = vector.broadcast %cst_28 : f32 to vector<4x1xf32>
    %60 = arith.addf %58, %59 : vector<4x1xf32>
    %61 = math.rsqrt %60 : vector<4x1xf32>
    %62 = vector.broadcast %61 : vector<4x1xf32> to vector<4x32xf32>
    %63 = arith.mulf %53, %62 : vector<4x32xf32>
    %c0_29 = arith.constant 0 : index
    %c0_30 = arith.constant 0 : index
    %64 = vector.load %arg13[%c0_29, %c0_30] : memref<2x32xf32, #tpu.memory_space<vmem>>, vector<1x32xf32>
    %65 = vector.broadcast %64 : vector<1x32xf32> to vector<4x32xf32>
    %66 = arith.mulf %63, %65 : vector<4x32xf32>
    %c1 = arith.constant 1 : index
    %c0_31 = arith.constant 0 : index
    %67 = vector.load %arg13[%c1, %c0_31] : memref<2x32xf32, #tpu.memory_space<vmem>>, vector<1x32xf32>
    %68 = vector.broadcast %67 : vector<1x32xf32> to vector<4x32xf32>
    %69 = arith.addf %66, %68 : vector<4x32xf32>
    %70 = arith.truncf %69 : vector<4x32xf32> to vector<4x32xbf16>
    %c0_32 = arith.constant 0 : index
    %c0_33 = arith.constant 0 : index
    %71 = vector.load %arg14[%c0_32, %c0_33] : memref<32x128xf32, #tpu.memory_space<vmem>>, vector<32x128xf32>
    %72 = arith.truncf %71 : vector<32x128xf32> to vector<32x128xbf16>
    %cst_34 = arith.constant dense<0.000000e+00> : vector<4x128xf32>
    %73 = tpu.matmul %70, %72, %cst_34 {dimension_numbers = #tpu.dot_dimension_numbers<[1], [0], [0], [1], [0, 0, 1, 1], [], []>} : vector<4x32xbf16>, vector<32x128xbf16>, vector<4x128xf32> -> vector<4x128xf32>
    %c0_35 = arith.constant 0 : index
    %c0_36 = arith.constant 0 : index
    %74 = vector.load %arg15[%c0_35, %c0_36] : memref<1x128xf32, #tpu.memory_space<vmem>>, vector<1x128xf32>
    %75 = vector.broadcast %74 : vector<1x128xf32> to vector<4x128xf32>
    %76 = arith.addf %73, %75 : vector<4x128xf32>
    %cst_37 = arith.constant 0.000000e+00 : f32
    %77 = vector.broadcast %cst_37 : f32 to vector<4x128xf32>
    %78 = arith.maximumf %76, %77 : vector<4x128xf32>
    %79 = arith.truncf %78 : vector<4x128xf32> to vector<4x128xbf16>
    %c0_38 = arith.constant 0 : index
    %c0_39 = arith.constant 0 : index
    %80 = vector.load %arg16[%c0_38, %c0_39] : memref<128x32xf32, #tpu.memory_space<vmem>>, vector<128x32xf32>
    %81 = arith.truncf %80 : vector<128x32xf32> to vector<128x32xbf16>
    %cst_40 = arith.constant dense<0.000000e+00> : vector<4x32xf32>
    %82 = tpu.matmul %79, %81, %cst_40 {dimension_numbers = #tpu.dot_dimension_numbers<[1], [0], [0], [1], [0, 0, 1, 1], [], []>} : vector<4x128xbf16>, vector<128x32xbf16>, vector<4x32xf32> -> vector<4x32xf32>
    %c0_41 = arith.constant 0 : index
    %c0_42 = arith.constant 0 : index
    %83 = vector.load %arg17[%c0_41, %c0_42] : memref<1x32xf32, #tpu.memory_space<vmem>>, vector<1x32xf32>
    %84 = vector.broadcast %83 : vector<1x32xf32> to vector<4x32xf32>
    %85 = arith.addf %82, %84 : vector<4x32xf32>
    %86 = arith.addf %69, %85 : vector<4x32xf32>
    %cst_43 = arith.constant dense<0.000000e+00> : vector<4xf32>
    %87 = vector.multi_reduction <add>, %86, %cst_43 [1] : vector<4x32xf32> to vector<4xf32>
    %88 = vector.shape_cast %87 : vector<4xf32> to vector<4x1xf32>
    %cst_44 = arith.constant 3.200000e+01 : f32
    %89 = vector.broadcast %cst_44 : f32 to vector<4x1xf32>
    %90 = arith.divf %88, %89 : vector<4x1xf32>
    %91 = vector.broadcast %90 : vector<4x1xf32> to vector<4x32xf32>
    %92 = arith.subf %86, %91 : vector<4x32xf32>
    %93 = arith.mulf %92, %92 : vector<4x32xf32>
    %cst_45 = arith.constant dense<0.000000e+00> : vector<4xf32>
    %94 = vector.multi_reduction <add>, %93, %cst_45 [1] : vector<4x32xf32> to vector<4xf32>
    %95 = vector.shape_cast %94 : vector<4xf32> to vector<4x1xf32>
    %cst_46 = arith.constant 3.200000e+01 : f32
    %96 = vector.broadcast %cst_46 : f32 to vector<4x1xf32>
    %97 = arith.divf %95, %96 : vector<4x1xf32>
    %cst_47 = arith.constant 9.99999974E-6 : f32
    %98 = vector.broadcast %cst_47 : f32 to vector<4x1xf32>
    %99 = arith.addf %97, %98 : vector<4x1xf32>
    %100 = math.rsqrt %99 : vector<4x1xf32>
    %101 = vector.broadcast %100 : vector<4x1xf32> to vector<4x32xf32>
    %102 = arith.mulf %92, %101 : vector<4x32xf32>
    %c0_48 = arith.constant 0 : index
    %c0_49 = arith.constant 0 : index
    %103 = vector.load %arg18[%c0_48, %c0_49] : memref<2x32xf32, #tpu.memory_space<vmem>>, vector<1x32xf32>
    %104 = vector.broadcast %103 : vector<1x32xf32> to vector<4x32xf32>
    %105 = arith.mulf %102, %104 : vector<4x32xf32>
    %c1_50 = arith.constant 1 : index
    %c0_51 = arith.constant 0 : index
    %106 = vector.load %arg18[%c1_50, %c0_51] : memref<2x32xf32, #tpu.memory_space<vmem>>, vector<1x32xf32>
    %107 = vector.broadcast %106 : vector<1x32xf32> to vector<4x32xf32>
    %108 = arith.addf %105, %107 : vector<4x32xf32>
    %cst_52 = arith.constant dense<0.000000e+00> : vector<4xf32>
    %109 = vector.multi_reduction <add>, %108, %cst_52 [1] : vector<4x32xf32> to vector<4xf32>
    %110 = vector.shape_cast %109 : vector<4xf32> to vector<4x1xf32>
    %cst_53 = arith.constant 3.200000e+01 : f32
    %111 = vector.broadcast %cst_53 : f32 to vector<4x1xf32>
    %112 = arith.divf %110, %111 : vector<4x1xf32>
    %113 = vector.broadcast %112 : vector<4x1xf32> to vector<4x32xf32>
    %114 = arith.subf %108, %113 : vector<4x32xf32>
    %115 = arith.mulf %114, %114 : vector<4x32xf32>
    %cst_54 = arith.constant dense<0.000000e+00> : vector<4xf32>
    %116 = vector.multi_reduction <add>, %115, %cst_54 [1] : vector<4x32xf32> to vector<4xf32>
    %117 = vector.shape_cast %116 : vector<4xf32> to vector<4x1xf32>
    %cst_55 = arith.constant 3.200000e+01 : f32
    %118 = vector.broadcast %cst_55 : f32 to vector<4x1xf32>
    %119 = arith.divf %117, %118 : vector<4x1xf32>
    %cst_56 = arith.constant 9.99999974E-6 : f32
    %120 = vector.broadcast %cst_56 : f32 to vector<4x1xf32>
    %121 = arith.addf %119, %120 : vector<4x1xf32>
    %122 = math.rsqrt %121 : vector<4x1xf32>
    %123 = vector.broadcast %122 : vector<4x1xf32> to vector<4x32xf32>
    %124 = arith.mulf %114, %123 : vector<4x32xf32>
    %c0_57 = arith.constant 0 : index
    %c0_58 = arith.constant 0 : index
    %125 = vector.load %arg19[%c0_57, %c0_58] : memref<2x32xf32, #tpu.memory_space<vmem>>, vector<1x32xf32>
    %126 = vector.broadcast %125 : vector<1x32xf32> to vector<4x32xf32>
    %127 = arith.mulf %124, %126 : vector<4x32xf32>
    %c1_59 = arith.constant 1 : index
    %c0_60 = arith.constant 0 : index
    %128 = vector.load %arg19[%c1_59, %c0_60] : memref<2x32xf32, #tpu.memory_space<vmem>>, vector<1x32xf32>
    %129 = vector.broadcast %128 : vector<1x32xf32> to vector<4x32xf32>
    %130 = arith.addf %127, %129 : vector<4x32xf32>
    %c0_61 = arith.constant 0 : index
    %c0_62 = arith.constant 0 : index
    %c0_63 = arith.constant 0 : index
    %131 = vector.load %arg2[%c0_61, %c0_62, %c0_63] : memref<1x6x32xf32, #tpu.memory_space<vmem>>, vector<1x6x32xf32>
    %132 = vector.shape_cast %131 : vector<1x6x32xf32> to vector<6x32xf32>
    %c0_64 = arith.constant 0 : index
    %c0_65 = arith.constant 0 : index
    %133 = vector.load %arg8[%c0_64, %c0_65] : memref<1x1xf32, #tpu.memory_space<vmem>>, vector<1x1xf32>
    %c0_66 = arith.constant 0 : index
    %c0_67 = arith.constant 0 : index
    %c0_68 = arith.constant 0 : index
    %134 = vector.load %arg6[%c0_66, %c0_67, %c0_68] : memref<1x6x32xf32, #tpu.memory_space<vmem>>, vector<1x6x32xf32>
    %135 = vector.shape_cast %134 : vector<1x6x32xf32> to vector<6x32xf32>
    %136 = vector.broadcast %133 : vector<1x1xf32> to vector<6x32xf32>
    %137 = arith.mulf %136, %135 : vector<6x32xf32>
    %138 = arith.addf %132, %137 : vector<6x32xf32>
    %139 = arith.truncf %138 : vector<6x32xf32> to vector<6x32xbf16>
    %c0_69 = arith.constant 0 : index
    %c0_70 = arith.constant 0 : index
    %140 = vector.load %arg20[%c0_69, %c0_70] : memref<32x96xf32, #tpu.memory_space<vmem>>, vector<32x96xf32>
    %141 = arith.truncf %140 : vector<32x96xf32> to vector<32x96xbf16>
    %cst_71 = arith.constant dense<0.000000e+00> : vector<6x96xf32>
    %142 = tpu.matmul %139, %141, %cst_71 {dimension_numbers = #tpu.dot_dimension_numbers<[1], [0], [0], [1], [0, 0, 1, 1], [], []>} : vector<6x32xbf16>, vector<32x96xbf16>, vector<6x96xf32> -> vector<6x96xf32>
    %c0_72 = arith.constant 0 : index
    %c0_73 = arith.constant 0 : index
    %143 = vector.load %arg21[%c0_72, %c0_73] : memref<1x96xf32, #tpu.memory_space<vmem>>, vector<1x96xf32>
    %144 = vector.broadcast %143 : vector<1x96xf32> to vector<6x96xf32>
    %145 = arith.addf %142, %144 : vector<6x96xf32>
    %146 = vector.extract_strided_slice %145 {offsets = [0, 0], sizes = [6, 32], strides = [1, 1]} : vector<6x96xf32> to vector<6x32xf32>
    %147 = vector.extract_strided_slice %145 {offsets = [0, 32], sizes = [6, 32], strides = [1, 1]} : vector<6x96xf32> to vector<6x32xf32>
    %148 = vector.extract_strided_slice %145 {offsets = [0, 64], sizes = [6, 32], strides = [1, 1]} : vector<6x96xf32> to vector<6x32xf32>
    %c0_74 = arith.constant 0 : index
    %c0_75 = arith.constant 0 : index
    %c0_76 = arith.constant 0 : index
    %149 = vector.load %arg4[%c0_74, %c0_75, %c0_76] : memref<1x6x6xf32, #tpu.memory_space<vmem>>, vector<1x6x6xf32>
    %150 = vector.shape_cast %149 : vector<1x6x6xf32> to vector<6x6xf32>
    %cst_77 = arith.constant 0.176776692 : f32
    %151 = vector.broadcast %cst_77 : f32 to vector<6x32xf32>
    %152 = arith.mulf %146, %151 : vector<6x32xf32>
    %153 = arith.truncf %152 : vector<6x32xf32> to vector<6x32xbf16>
    %154 = arith.truncf %147 : vector<6x32xf32> to vector<6x32xbf16>
    %cst_78 = arith.constant dense<0.000000e+00> : vector<6x6xf32>
    %155 = tpu.matmul %153, %154, %cst_78 {dimension_numbers = #tpu.dot_dimension_numbers<[1], [1], [0], [0], [0, 0, 1, 0], [], []>} : vector<6x32xbf16>, vector<6x32xbf16>, vector<6x6xf32> -> vector<6x6xf32>
    %156 = arith.addf %155, %150 : vector<6x6xf32>
    %cst_79 = arith.constant dense<0xFF800000> : vector<6xf32>
    %157 = vector.multi_reduction <maximumf>, %156, %cst_79 [1] : vector<6x6xf32> to vector<6xf32>
    %158 = vector.shape_cast %157 : vector<6xf32> to vector<6x1xf32>
    %159 = vector.broadcast %158 : vector<6x1xf32> to vector<6x6xf32>
    %160 = arith.subf %156, %159 : vector<6x6xf32>
    %161 = math.exp %160 : vector<6x6xf32>
    %cst_80 = arith.constant dense<0.000000e+00> : vector<6xf32>
    %162 = vector.multi_reduction <add>, %161, %cst_80 [1] : vector<6x6xf32> to vector<6xf32>
    %163 = vector.shape_cast %162 : vector<6xf32> to vector<6x1xf32>
    %164 = tpu.reciprocal %163 {approx = true} : vector<6x1xf32> -> vector<6x1xf32>
    %165 = vector.broadcast %164 : vector<6x1xf32> to vector<6x6xf32>
    %166 = arith.mulf %161, %165 : vector<6x6xf32>
    %167 = arith.truncf %166 : vector<6x6xf32> to vector<6x6xbf16>
    %168 = arith.truncf %148 : vector<6x32xf32> to vector<6x32xbf16>
    %cst_81 = arith.constant dense<0.000000e+00> : vector<6x32xf32>
    %169 = tpu.matmul %167, %168, %cst_81 {dimension_numbers = #tpu.dot_dimension_numbers<[1], [0], [0], [1], [0, 0, 1, 1], [], []>} : vector<6x6xbf16>, vector<6x32xbf16>, vector<6x32xf32> -> vector<6x32xf32>
    %170 = arith.truncf %169 : vector<6x32xf32> to vector<6x32xbf16>
    %c0_82 = arith.constant 0 : index
    %c0_83 = arith.constant 0 : index
    %171 = vector.load %arg22[%c0_82, %c0_83] : memref<32x32xf32, #tpu.memory_space<vmem>>, vector<32x32xf32>
    %172 = arith.truncf %171 : vector<32x32xf32> to vector<32x32xbf16>
    %cst_84 = arith.constant dense<0.000000e+00> : vector<6x32xf32>
    %173 = tpu.matmul %170, %172, %cst_84 {dimension_numbers = #tpu.dot_dimension_numbers<[1], [0], [0], [1], [0, 0, 1, 1], [], []>} : vector<6x32xbf16>, vector<32x32xbf16>, vector<6x32xf32> -> vector<6x32xf32>
    %c0_85 = arith.constant 0 : index
    %c0_86 = arith.constant 0 : index
    %174 = vector.load %arg23[%c0_85, %c0_86] : memref<1x32xf32, #tpu.memory_space<vmem>>, vector<1x32xf32>
    %175 = vector.broadcast %174 : vector<1x32xf32> to vector<6x32xf32>
    %176 = arith.addf %173, %175 : vector<6x32xf32>
    %177 = arith.addf %138, %176 : vector<6x32xf32>
    %cst_87 = arith.constant dense<0.000000e+00> : vector<6xf32>
    %178 = vector.multi_reduction <add>, %177, %cst_87 [1] : vector<6x32xf32> to vector<6xf32>
    %179 = vector.shape_cast %178 : vector<6xf32> to vector<6x1xf32>
    %cst_88 = arith.constant 3.200000e+01 : f32
    %180 = vector.broadcast %cst_88 : f32 to vector<6x1xf32>
    %181 = arith.divf %179, %180 : vector<6x1xf32>
    %182 = vector.broadcast %181 : vector<6x1xf32> to vector<6x32xf32>
    %183 = arith.subf %177, %182 : vector<6x32xf32>
    %184 = arith.mulf %183, %183 : vector<6x32xf32>
    %cst_89 = arith.constant dense<0.000000e+00> : vector<6xf32>
    %185 = vector.multi_reduction <add>, %184, %cst_89 [1] : vector<6x32xf32> to vector<6xf32>
    %186 = vector.shape_cast %185 : vector<6xf32> to vector<6x1xf32>
    %cst_90 = arith.constant 3.200000e+01 : f32
    %187 = vector.broadcast %cst_90 : f32 to vector<6x1xf32>
    %188 = arith.divf %186, %187 : vector<6x1xf32>
    %cst_91 = arith.constant 9.99999974E-6 : f32
    %189 = vector.broadcast %cst_91 : f32 to vector<6x1xf32>
    %190 = arith.addf %188, %189 : vector<6x1xf32>
    %191 = math.rsqrt %190 : vector<6x1xf32>
    %192 = vector.broadcast %191 : vector<6x1xf32> to vector<6x32xf32>
    %193 = arith.mulf %183, %192 : vector<6x32xf32>
    %c0_92 = arith.constant 0 : index
    %c0_93 = arith.constant 0 : index
    %194 = vector.load %arg24[%c0_92, %c0_93] : memref<2x32xf32, #tpu.memory_space<vmem>>, vector<1x32xf32>
    %195 = vector.broadcast %194 : vector<1x32xf32> to vector<6x32xf32>
    %196 = arith.mulf %193, %195 : vector<6x32xf32>
    %c1_94 = arith.constant 1 : index
    %c0_95 = arith.constant 0 : index
    %197 = vector.load %arg24[%c1_94, %c0_95] : memref<2x32xf32, #tpu.memory_space<vmem>>, vector<1x32xf32>
    %198 = vector.broadcast %197 : vector<1x32xf32> to vector<6x32xf32>
    %199 = arith.addf %196, %198 : vector<6x32xf32>
    %200 = arith.truncf %199 : vector<6x32xf32> to vector<6x32xbf16>
    %c0_96 = arith.constant 0 : index
    %c0_97 = arith.constant 0 : index
    %201 = vector.load %arg25[%c0_96, %c0_97] : memref<32x32xf32, #tpu.memory_space<vmem>>, vector<32x32xf32>
    %202 = arith.truncf %201 : vector<32x32xf32> to vector<32x32xbf16>
    %cst_98 = arith.constant dense<0.000000e+00> : vector<6x32xf32>
    %203 = tpu.matmul %200, %202, %cst_98 {dimension_numbers = #tpu.dot_dimension_numbers<[1], [0], [0], [1], [0, 0, 1, 1], [], []>} : vector<6x32xbf16>, vector<32x32xbf16>, vector<6x32xf32> -> vector<6x32xf32>
    %c0_99 = arith.constant 0 : index
    %c0_100 = arith.constant 0 : index
    %204 = vector.load %arg26[%c0_99, %c0_100] : memref<1x32xf32, #tpu.memory_space<vmem>>, vector<1x32xf32>
    %205 = vector.broadcast %204 : vector<1x32xf32> to vector<6x32xf32>
    %206 = arith.addf %203, %205 : vector<6x32xf32>
    %207 = arith.truncf %130 : vector<4x32xf32> to vector<4x32xbf16>
    %c0_101 = arith.constant 0 : index
    %c0_102 = arith.constant 0 : index
    %208 = vector.load %arg27[%c0_101, %c0_102] : memref<32x64xf32, #tpu.memory_space<vmem>>, vector<32x64xf32>
    %209 = arith.truncf %208 : vector<32x64xf32> to vector<32x64xbf16>
    %cst_103 = arith.constant dense<0.000000e+00> : vector<4x64xf32>
    %210 = tpu.matmul %207, %209, %cst_103 {dimension_numbers = #tpu.dot_dimension_numbers<[1], [0], [0], [1], [0, 0, 1, 1], [], []>} : vector<4x32xbf16>, vector<32x64xbf16>, vector<4x64xf32> -> vector<4x64xf32>
    %c0_104 = arith.constant 0 : index
    %c0_105 = arith.constant 0 : index
    %211 = vector.load %arg28[%c0_104, %c0_105] : memref<1x64xf32, #tpu.memory_space<vmem>>, vector<1x64xf32>
    %212 = vector.broadcast %211 : vector<1x64xf32> to vector<4x64xf32>
    %213 = arith.addf %210, %212 : vector<4x64xf32>
    %214 = vector.extract_strided_slice %213 {offsets = [0, 0], sizes = [4, 32], strides = [1, 1]} : vector<4x64xf32> to vector<4x32xf32>
    %215 = vector.extract_strided_slice %213 {offsets = [0, 32], sizes = [4, 32], strides = [1, 1]} : vector<4x64xf32> to vector<4x32xf32>
    %c0_106 = arith.constant 0 : index
    %c0_107 = arith.constant 0 : index
    %c0_108 = arith.constant 0 : index
    %216 = vector.load %arg3[%c0_106, %c0_107, %c0_108] : memref<1x1x4xf32, #tpu.memory_space<vmem>>, vector<1x1x4xf32>
    %217 = vector.shape_cast %216 : vector<1x1x4xf32> to vector<1x4xf32>
    %cst_109 = arith.constant 0.176776692 : f32
    %218 = vector.broadcast %cst_109 : f32 to vector<6x32xf32>
    %219 = arith.mulf %206, %218 : vector<6x32xf32>
    %220 = arith.truncf %219 : vector<6x32xf32> to vector<6x32xbf16>
    %221 = arith.truncf %214 : vector<4x32xf32> to vector<4x32xbf16>
    %cst_110 = arith.constant dense<0.000000e+00> : vector<6x4xf32>
    %222 = tpu.matmul %220, %221, %cst_110 {dimension_numbers = #tpu.dot_dimension_numbers<[1], [1], [0], [0], [0, 0, 1, 0], [], []>} : vector<6x32xbf16>, vector<4x32xbf16>, vector<6x4xf32> -> vector<6x4xf32>
    %223 = vector.broadcast %217 : vector<1x4xf32> to vector<6x4xf32>
    %224 = arith.addf %222, %223 : vector<6x4xf32>
    %cst_111 = arith.constant dense<0xFF800000> : vector<6xf32>
    %225 = vector.multi_reduction <maximumf>, %224, %cst_111 [1] : vector<6x4xf32> to vector<6xf32>
    %226 = vector.shape_cast %225 : vector<6xf32> to vector<6x1xf32>
    %227 = vector.broadcast %226 : vector<6x1xf32> to vector<6x4xf32>
    %228 = arith.subf %224, %227 : vector<6x4xf32>
    %229 = math.exp %228 : vector<6x4xf32>
    %cst_112 = arith.constant dense<0.000000e+00> : vector<6xf32>
    %230 = vector.multi_reduction <add>, %229, %cst_112 [1] : vector<6x4xf32> to vector<6xf32>
    %231 = vector.shape_cast %230 : vector<6xf32> to vector<6x1xf32>
    %232 = tpu.reciprocal %231 {approx = true} : vector<6x1xf32> -> vector<6x1xf32>
    %233 = vector.broadcast %232 : vector<6x1xf32> to vector<6x4xf32>
    %234 = arith.mulf %229, %233 : vector<6x4xf32>
    %235 = arith.truncf %234 : vector<6x4xf32> to vector<6x4xbf16>
    %236 = arith.truncf %215 : vector<4x32xf32> to vector<4x32xbf16>
    %cst_113 = arith.constant dense<0.000000e+00> : vector<6x32xf32>
    %237 = tpu.matmul %235, %236, %cst_113 {dimension_numbers = #tpu.dot_dimension_numbers<[1], [0], [0], [1], [0, 0, 1, 1], [], []>} : vector<6x4xbf16>, vector<4x32xbf16>, vector<6x32xf32> -> vector<6x32xf32>
    %238 = arith.truncf %237 : vector<6x32xf32> to vector<6x32xbf16>
    %c0_114 = arith.constant 0 : index
    %c0_115 = arith.constant 0 : index
    %239 = vector.load %arg29[%c0_114, %c0_115] : memref<32x32xf32, #tpu.memory_space<vmem>>, vector<32x32xf32>
    %240 = arith.truncf %239 : vector<32x32xf32> to vector<32x32xbf16>
    %cst_116 = arith.constant dense<0.000000e+00> : vector<6x32xf32>
    %241 = tpu.matmul %238, %240, %cst_116 {dimension_numbers = #tpu.dot_dimension_numbers<[1], [0], [0], [1], [0, 0, 1, 1], [], []>} : vector<6x32xbf16>, vector<32x32xbf16>, vector<6x32xf32> -> vector<6x32xf32>
    %c0_117 = arith.constant 0 : index
    %c0_118 = arith.constant 0 : index
    %242 = vector.load %arg30[%c0_117, %c0_118] : memref<1x32xf32, #tpu.memory_space<vmem>>, vector<1x32xf32>
    %243 = vector.broadcast %242 : vector<1x32xf32> to vector<6x32xf32>
    %244 = arith.addf %241, %243 : vector<6x32xf32>
    %245 = arith.addf %199, %244 : vector<6x32xf32>
    %cst_119 = arith.constant dense<0.000000e+00> : vector<6xf32>
    %246 = vector.multi_reduction <add>, %245, %cst_119 [1] : vector<6x32xf32> to vector<6xf32>
    %247 = vector.shape_cast %246 : vector<6xf32> to vector<6x1xf32>
    %cst_120 = arith.constant 3.200000e+01 : f32
    %248 = vector.broadcast %cst_120 : f32 to vector<6x1xf32>
    %249 = arith.divf %247, %248 : vector<6x1xf32>
    %250 = vector.broadcast %249 : vector<6x1xf32> to vector<6x32xf32>
    %251 = arith.subf %245, %250 : vector<6x32xf32>
    %252 = arith.mulf %251, %251 : vector<6x32xf32>
    %cst_121 = arith.constant dense<0.000000e+00> : vector<6xf32>
    %253 = vector.multi_reduction <add>, %252, %cst_121 [1] : vector<6x32xf32> to vector<6xf32>
    %254 = vector.shape_cast %253 : vector<6xf32> to vector<6x1xf32>
    %cst_122 = arith.constant 3.200000e+01 : f32
    %255 = vector.broadcast %cst_122 : f32 to vector<6x1xf32>
    %256 = arith.divf %254, %255 : vector<6x1xf32>
    %cst_123 = arith.constant 9.99999974E-6 : f32
    %257 = vector.broadcast %cst_123 : f32 to vector<6x1xf32>
    %258 = arith.addf %256, %257 : vector<6x1xf32>
    %259 = math.rsqrt %258 : vector<6x1xf32>
    %260 = vector.broadcast %259 : vector<6x1xf32> to vector<6x32xf32>
    %261 = arith.mulf %251, %260 : vector<6x32xf32>
    %c0_124 = arith.constant 0 : index
    %c0_125 = arith.constant 0 : index
    %262 = vector.load %arg31[%c0_124, %c0_125] : memref<2x32xf32, #tpu.memory_space<vmem>>, vector<1x32xf32>
    %263 = vector.broadcast %262 : vector<1x32xf32> to vector<6x32xf32>
    %264 = arith.mulf %261, %263 : vector<6x32xf32>
    %c1_126 = arith.constant 1 : index
    %c0_127 = arith.constant 0 : index
    %265 = vector.load %arg31[%c1_126, %c0_127] : memref<2x32xf32, #tpu.memory_space<vmem>>, vector<1x32xf32>
    %266 = vector.broadcast %265 : vector<1x32xf32> to vector<6x32xf32>
    %267 = arith.addf %264, %266 : vector<6x32xf32>
    %268 = arith.truncf %267 : vector<6x32xf32> to vector<6x32xbf16>
    %c0_128 = arith.constant 0 : index
    %c0_129 = arith.constant 0 : index
    %269 = vector.load %arg32[%c0_128, %c0_129] : memref<32x128xf32, #tpu.memory_space<vmem>>, vector<32x128xf32>
    %270 = arith.truncf %269 : vector<32x128xf32> to vector<32x128xbf16>
    %cst_130 = arith.constant dense<0.000000e+00> : vector<6x128xf32>
    %271 = tpu.matmul %268, %270, %cst_130 {dimension_numbers = #tpu.dot_dimension_numbers<[1], [0], [0], [1], [0, 0, 1, 1], [], []>} : vector<6x32xbf16>, vector<32x128xbf16>, vector<6x128xf32> -> vector<6x128xf32>
    %c0_131 = arith.constant 0 : index
    %c0_132 = arith.constant 0 : index
    %272 = vector.load %arg33[%c0_131, %c0_132] : memref<1x128xf32, #tpu.memory_space<vmem>>, vector<1x128xf32>
    %273 = vector.broadcast %272 : vector<1x128xf32> to vector<6x128xf32>
    %274 = arith.addf %271, %273 : vector<6x128xf32>
    %cst_133 = arith.constant 0.000000e+00 : f32
    %275 = vector.broadcast %cst_133 : f32 to vector<6x128xf32>
    %276 = arith.maximumf %274, %275 : vector<6x128xf32>
    %277 = arith.truncf %276 : vector<6x128xf32> to vector<6x128xbf16>
    %c0_134 = arith.constant 0 : index
    %c0_135 = arith.constant 0 : index
    %278 = vector.load %arg34[%c0_134, %c0_135] : memref<128x32xf32, #tpu.memory_space<vmem>>, vector<128x32xf32>
    %279 = arith.truncf %278 : vector<128x32xf32> to vector<128x32xbf16>
    %cst_136 = arith.constant dense<0.000000e+00> : vector<6x32xf32>
    %280 = tpu.matmul %277, %279, %cst_136 {dimension_numbers = #tpu.dot_dimension_numbers<[1], [0], [0], [1], [0, 0, 1, 1], [], []>} : vector<6x128xbf16>, vector<128x32xbf16>, vector<6x32xf32> -> vector<6x32xf32>
    %c0_137 = arith.constant 0 : index
    %c0_138 = arith.constant 0 : index
    %281 = vector.load %arg35[%c0_137, %c0_138] : memref<1x32xf32, #tpu.memory_space<vmem>>, vector<1x32xf32>
    %282 = vector.broadcast %281 : vector<1x32xf32> to vector<6x32xf32>
    %283 = arith.addf %280, %282 : vector<6x32xf32>
    %284 = arith.addf %267, %283 : vector<6x32xf32>
    %cst_139 = arith.constant dense<0.000000e+00> : vector<6xf32>
    %285 = vector.multi_reduction <add>, %284, %cst_139 [1] : vector<6x32xf32> to vector<6xf32>
    %286 = vector.shape_cast %285 : vector<6xf32> to vector<6x1xf32>
    %cst_140 = arith.constant 3.200000e+01 : f32
    %287 = vector.broadcast %cst_140 : f32 to vector<6x1xf32>
    %288 = arith.divf %286, %287 : vector<6x1xf32>
    %289 = vector.broadcast %288 : vector<6x1xf32> to vector<6x32xf32>
    %290 = arith.subf %284, %289 : vector<6x32xf32>
    %291 = arith.mulf %290, %290 : vector<6x32xf32>
    %cst_141 = arith.constant dense<0.000000e+00> : vector<6xf32>
    %292 = vector.multi_reduction <add>, %291, %cst_141 [1] : vector<6x32xf32> to vector<6xf32>
    %293 = vector.shape_cast %292 : vector<6xf32> to vector<6x1xf32>
    %cst_142 = arith.constant 3.200000e+01 : f32
    %294 = vector.broadcast %cst_142 : f32 to vector<6x1xf32>
    %295 = arith.divf %293, %294 : vector<6x1xf32>
    %cst_143 = arith.constant 9.99999974E-6 : f32
    %296 = vector.broadcast %cst_143 : f32 to vector<6x1xf32>
    %297 = arith.addf %295, %296 : vector<6x1xf32>
    %298 = math.rsqrt %297 : vector<6x1xf32>
    %299 = vector.broadcast %298 : vector<6x1xf32> to vector<6x32xf32>
    %300 = arith.mulf %290, %299 : vector<6x32xf32>
    %c0_144 = arith.constant 0 : index
    %c0_145 = arith.constant 0 : index
    %301 = vector.load %arg36[%c0_144, %c0_145] : memref<2x32xf32, #tpu.memory_space<vmem>>, vector<1x32xf32>
    %302 = vector.broadcast %301 : vector<1x32xf32> to vector<6x32xf32>
    %303 = arith.mulf %300, %302 : vector<6x32xf32>
    %c1_146 = arith.constant 1 : index
    %c0_147 = arith.constant 0 : index
    %304 = vector.load %arg36[%c1_146, %c0_147] : memref<2x32xf32, #tpu.memory_space<vmem>>, vector<1x32xf32>
    %305 = vector.broadcast %304 : vector<1x32xf32> to vector<6x32xf32>
    %306 = arith.addf %303, %305 : vector<6x32xf32>
    %cst_148 = arith.constant dense<0.000000e+00> : vector<6xf32>
    %307 = vector.multi_reduction <add>, %306, %cst_148 [1] : vector<6x32xf32> to vector<6xf32>
    %308 = vector.shape_cast %307 : vector<6xf32> to vector<6x1xf32>
    %cst_149 = arith.constant 3.200000e+01 : f32
    %309 = vector.broadcast %cst_149 : f32 to vector<6x1xf32>
    %310 = arith.divf %308, %309 : vector<6x1xf32>
    %311 = vector.broadcast %310 : vector<6x1xf32> to vector<6x32xf32>
    %312 = arith.subf %306, %311 : vector<6x32xf32>
    %313 = arith.mulf %312, %312 : vector<6x32xf32>
    %cst_150 = arith.constant dense<0.000000e+00> : vector<6xf32>
    %314 = vector.multi_reduction <add>, %313, %cst_150 [1] : vector<6x32xf32> to vector<6xf32>
    %315 = vector.shape_cast %314 : vector<6xf32> to vector<6x1xf32>
    %cst_151 = arith.constant 3.200000e+01 : f32
    %316 = vector.broadcast %cst_151 : f32 to vector<6x1xf32>
    %317 = arith.divf %315, %316 : vector<6x1xf32>
    %cst_152 = arith.constant 9.99999974E-6 : f32
    %318 = vector.broadcast %cst_152 : f32 to vector<6x1xf32>
    %319 = arith.addf %317, %318 : vector<6x1xf32>
    %320 = math.rsqrt %319 : vector<6x1xf32>
    %321 = vector.broadcast %320 : vector<6x1xf32> to vector<6x32xf32>
    %322 = arith.mulf %312, %321 : vector<6x32xf32>
    %c0_153 = arith.constant 0 : index
    %c0_154 = arith.constant 0 : index
    %323 = vector.load %arg37[%c0_153, %c0_154] : memref<2x32xf32, #tpu.memory_space<vmem>>, vector<1x32xf32>
    %324 = vector.broadcast %323 : vector<1x32xf32> to vector<6x32xf32>
    %325 = arith.mulf %322, %324 : vector<6x32xf32>
    %c1_155 = arith.constant 1 : index
    %c0_156 = arith.constant 0 : index
    %326 = vector.load %arg37[%c1_155, %c0_156] : memref<2x32xf32, #tpu.memory_space<vmem>>, vector<1x32xf32>
    %327 = vector.broadcast %326 : vector<1x32xf32> to vector<6x32xf32>
    %328 = arith.addf %325, %327 : vector<6x32xf32>
    %329 = arith.truncf %328 : vector<6x32xf32> to vector<6x32xbf16>
    %c0_157 = arith.constant 0 : index
    %c0_158 = arith.constant 0 : index
    %330 = vector.load %arg38[%c0_157, %c0_158] : memref<32x16xf32, #tpu.memory_space<vmem>>, vector<32x16xf32>
    %331 = arith.truncf %330 : vector<32x16xf32> to vector<32x16xbf16>
    %cst_159 = arith.constant dense<0.000000e+00> : vector<6x16xf32>
    %332 = tpu.matmul %329, %331, %cst_159 {dimension_numbers = #tpu.dot_dimension_numbers<[1], [0], [0], [1], [0, 0, 1, 1], [], []>} : vector<6x32xbf16>, vector<32x16xbf16>, vector<6x16xf32> -> vector<6x16xf32>
    %c0_160 = arith.constant 0 : index
    %c0_161 = arith.constant 0 : index
    %333 = vector.load %arg39[%c0_160, %c0_161] : memref<1x16xf32, #tpu.memory_space<vmem>>, vector<1x16xf32>
    %334 = vector.broadcast %333 : vector<1x16xf32> to vector<6x16xf32>
    %335 = arith.addf %332, %334 : vector<6x16xf32>
    %c0_162 = arith.constant 0 : index
    %c0_163 = arith.constant 0 : index
    %c0_164 = arith.constant 0 : index
    %336 = vector.load %arg40[%c0_162, %c0_163, %c0_164] : memref<1x6x16xf32, #tpu.memory_space<vmem>>, vector<1x6x16xf32>
    %337 = vector.shape_cast %336 : vector<1x6x16xf32> to vector<6x16xf32>
    %338 = vector.shape_cast %335 : vector<6x16xf32> to vector<1x6x16xf32>
    tpu.vector_store %arg40[%c0_162, %c0_163, %c0_164], %338 {strides = array<i32>} : memref<1x6x16xf32, #tpu.memory_space<vmem>>, vector<1x6x16xf32>,
    return
  }
  func.func @transform_0(%arg0: i32) -> (i32, i32, i32) {
    %c0_i32 = arith.constant 0 : i32
    %c0_i32_0 = arith.constant 0 : i32
    %c0_i32_1 = arith.constant 0 : i32
    return %arg0, %c0_i32, %c0_i32_0 : i32, i32, i32
  }
  func.func @transform_1(%arg0: i32) -> (i32, i32, i32) {
    %c0_i32 = arith.constant 0 : i32
    %c0_i32_0 = arith.constant 0 : i32
    %c0_i32_1 = arith.constant 0 : i32
    return %arg0, %c0_i32, %c0_i32_0 : i32, i32, i32
  }
  func.func @transform_2(%arg0: i32) -> (i32, i32, i32) {
    %c0_i32 = arith.constant 0 : i32
    %c0_i32_0 = arith.constant 0 : i32
    %c0_i32_1 = arith.constant 0 : i32
    return %arg0, %c0_i32, %c0_i32_0 : i32, i32, i32
  }
  func.func @transform_3(%arg0: i32) -> (i32, i32, i32) {
    %c0_i32 = arith.constant 0 : i32
    %c0_i32_0 = arith.constant 0 : i32
    %c0_i32_1 = arith.constant 0 : i32
    return %arg0, %c0_i32, %c0_i32_0 : i32, i32, i32
  }
  func.func @transform_4(%arg0: i32) -> (i32, i32, i32) {
    %c0_i32 = arith.constant 0 : i32
    %c0_i32_0 = arith.constant 0 : i32
    %c0_i32_1 = arith.constant 0 : i32
    %c0_i32_2 = arith.constant 0 : i32
    return %c0_i32, %c0_i32_0, %c0_i32_1 : i32, i32, i32
  }
  func.func @transform_5(%arg0: i32) -> (i32, i32, i32) {
    %c0_i32 = arith.constant 0 : i32
    %c0_i32_0 = arith.constant 0 : i32
    %c0_i32_1 = arith.constant 0 : i32
    %c0_i32_2 = arith.constant 0 : i32
    return %c0_i32, %c0_i32_0, %c0_i32_1 : i32, i32, i32
  }
  func.func @transform_6(%arg0: i32) -> (i32, i32) {
    %c0_i32 = arith.constant 0 : i32
    %c0_i32_0 = arith.constant 0 : i32
    %c0_i32_1 = arith.constant 0 : i32
    return %c0_i32, %c0_i32_0 : i32, i32
  }
  func.func @transform_7(%arg0: i32) -> (i32, i32) {
    %c0_i32 = arith.constant 0 : i32
    %c0_i32_0 = arith.constant 0 : i32
    %c0_i32_1 = arith.constant 0 : i32
    return %c0_i32, %c0_i32_0 : i32, i32
  }
  func.func @transform_8(%arg0: i32) -> (i32, i32) {
    %c0_i32 = arith.constant 0 : i32
    %c0_i32_0 = arith.constant 0 : i32
    %c0_i32_1 = arith.constant 0 : i32
    return %c0_i32, %c0_i32_0 : i32, i32
  }
  func.func @transform_9(%arg0: i32) -> (i32, i32) {
    %c0_i32 = arith.constant 0 : i32
    %c0_i32_0 = arith.constant 0 : i32
    %c0_i32_1 = arith.constant 0 : i32
    return %c0_i32, %c0_i32_0 : i32, i32
  }
  func.func @transform_10(%arg0: i32) -> (i32, i32) {
    %c0_i32 = arith.constant 0 : i32
    %c0_i32_0 = arith.constant 0 : i32
    %c0_i32_1 = arith.constant 0 : i32
    return %c0_i32, %c0_i32_0 : i32, i32
  }
  func.func @transform_11(%arg0: i32) -> (i32, i32) {
    %c0_i32 = arith.constant 0 : i32
    %c0_i32_0 = arith.constant 0 : i32
    %c0_i32_1 = arith.constant 0 : i32
    return %c0_i32, %c0_i32_0 : i32, i32
  }
  func.func @transform_12(%arg0: i32) -> (i32, i32) {
    %c0_i32 = arith.constant 0 : i32
    %c0_i32_0 = arith.constant 0 : i32
    %c0_i32_1 = arith.constant 0 : i32
    return %c0_i32, %c0_i32_0 : i32, i32
  }
  func.func @transform_13(%arg0: i32) -> (i32, i32) {
    %c0_i32 = arith.constant 0 : i32
    %c0_i32_0 = arith.constant 0 : i32
    %c0_i32_1 = arith.constant 0 : i32
    return %c0_i32, %c0_i32_0 : i32, i32
  }
  func.func @transform_14(%arg0: i32) -> (i32, i32) {
    %c0_i32 = arith.constant 0 : i32
    %c0_i32_0 = arith.constant 0 : i32
    %c0_i32_1 = arith.constant 0 : i32
    return %c0_i32, %c0_i32_0 : i32, i32
  }
  func.func @transform_15(%arg0: i32) -> (i32, i32) {
    %c0_i32 = arith.constant 0 : i32
    %c0_i32_0 = arith.constant 0 : i32
    %c0_i32_1 = arith.constant 0 : i32
    return %c0_i32, %c0_i32_0 : i32, i32
  }
  func.func @transform_16(%arg0: i32) -> (i32, i32) {
    %c0_i32 = arith.constant 0 : i32
    %c0_i32_0 = arith.constant 0 : i32
    %c0_i32_1 = arith.constant 0 : i32
    return %c0_i32, %c0_i32_0 : i32, i32
  }
  func.func @transform_17(%arg0: i32) -> (i32, i32) {
    %c0_i32 = arith.constant 0 : i32
    %c0_i32_0 = arith.constant 0 : i32
    %c0_i32_1 = arith.constant 0 : i32
    return %c0_i32, %c0_i32_0 : i32, i32
  }
  func.func @transform_18(%arg0: i32) -> (i32, i32) {
    %c0_i32 = arith.constant 0 : i32
    %c0_i32_0 = arith.constant 0 : i32
    %c0_i32_1 = arith.constant 0 : i32
    return %c0_i32, %c0_i32_0 : i32, i32
  }
  func.func @transform_19(%arg0: i32) -> (i32, i32) {
    %c0_i32 = arith.constant 0 : i32
    %c0_i32_0 = arith.constant 0 : i32
    %c0_i32_1 = arith.constant 0 : i32
    return %c0_i32, %c0_i32_0 : i32, i32
  }
  func.func @transform_20(%arg0: i32) -> (i32, i32) {
    %c0_i32 = arith.constant 0 : i32
    %c0_i32_0 = arith.constant 0 : i32
    %c0_i32_1 = arith.constant 0 : i32
    return %c0_i32, %c0_i32_0 : i32, i32
  }
  func.func @transform_21(%arg0: i32) -> (i32, i32) {
    %c0_i32 = arith.constant 0 : i32
    %c0_i32_0 = arith.constant 0 : i32
    %c0_i32_1 = arith.constant 0 : i32
    return %c0_i32, %c0_i32_0 : i32, i32
  }
  func.func @transform_22(%arg0: i32) -> (i32, i32) {
    %c0_i32 = arith.constant 0 : i32
    %c0_i32_0 = arith.constant 0 : i32
    %c0_i32_1 = arith.constant 0 : i32
    return %c0_i32, %c0_i32_0 : i32, i32
  }
  func.func @transform_23(%arg0: i32) -> (i32, i32) {
    %c0_i32 = arith.constant 0 : i32
    %c0_i32_0 = arith.constant 0 : i32
    %c0_i32_1 = arith.constant 0 : i32
    return %c0_i32, %c0_i32_0 : i32, i32
  }
  func.func @transform_24(%arg0: i32) -> (i32, i32) {
    %c0_i32 = arith.constant 0 : i32
    %c0_i32_0 = arith.constant 0 : i32
    %c0_i32_1 = arith.constant 0 : i32
    return %c0_i32, %c0_i32_0 : i32, i32
  }
  func.func @transform_25(%arg0: i32) -> (i32, i32) {
    %c0_i32 = arith.constant 0 : i32
    %c0_i32_0 = arith.constant 0 : i32
    %c0_i32_1 = arith.constant 0 : i32
    return %c0_i32, %c0_i32_0 : i32, i32
  }
  func.func @transform_26(%arg0: i32) -> (i32, i32) {
    %c0_i32 = arith.constant 0 : i32
    %c0_i32_0 = arith.constant 0 : i32
    %c0_i32_1 = arith.constant 0 : i32
    return %c0_i32, %c0_i32_0 : i32, i32
  }
  func.func @transform_27(%arg0: i32) -> (i32, i32) {
    %c0_i32 = arith.constant 0 : i32
    %c0_i32_0 = arith.constant 0 : i32
    %c0_i32_1 = arith.constant 0 : i32
    return %c0_i32, %c0_i32_0 : i32, i32
  }
  func.func @transform_28(%arg0: i32) -> (i32, i32) {
    %c0_i32 = arith.constant 0 : i32
    %c0_i32_0 = arith.constant 0 : i32
    %c0_i32_1 = arith.constant 0 : i32
    return %c0_i32, %c0_i32_0 : i32, i32
  }
  func.func @transform_29(%arg0: i32) -> (i32, i32) {
    %c0_i32 = arith.constant 0 : i32
    %c0_i32_0 = arith.constant 0 : i32
    %c0_i32_1 = arith.constant 0 : i32
    return %c0_i32, %c0_i32_0 : i32, i32
  }
  func.func @transform_30(%arg0: i32) -> (i32, i32) {
    %c0_i32 = arith.constant 0 : i32
    %c0_i32_0 = arith.constant 0 : i32
    %c0_i32_1 = arith.constant 0 : i32
    return %c0_i32, %c0_i32_0 : i32, i32
  }
  func.func @transform_31(%arg0: i32) -> (i32, i32) {
    %c0_i32 = arith.constant 0 : i32
    %c0_i32_0 = arith.constant 0 : i32
    %c0_i32_1 = arith.constant 0 : i32
    return %c0_i32, %c0_i32_0 : i32, i32
  }
  func.func @transform_32(%arg0: i32) -> (i32, i32) {
    %c0_i32 = arith.constant 0 : i32
    %c0_i32_0 = arith.constant 0 : i32
    %c0_i32_1 = arith.constant 0 : i32
    return %c0_i32, %c0_i32_0 : i32, i32
  }
  func.func @transform_33(%arg0: i32) -> (i32, i32) {
    %c0_i32 = arith.constant 0 : i32
    %c0_i32_0 = arith.constant 0 : i32
    %c0_i32_1 = arith.constant 0 : i32
    return %c0_i32, %c0_i32_0 : i32, i32
  }
  func.func @transform_34(%arg0: i32) -> (i32, i32) {
    %c0_i32 = arith.constant 0 : i32
    %c0_i32_0 = arith.constant 0 : i32
    %c0_i32_1 = arith.constant 0 : i32
    return %c0_i32, %c0_i32_0 : i32, i32
  }
  func.func @transform_35(%arg0: i32) -> (i32, i32) {
    %c0_i32 = arith.constant 0 : i32
    %c0_i32_0 = arith.constant 0 : i32
    %c0_i32_1 = arith.constant 0 : i32
    return %c0_i32, %c0_i32_0 : i32, i32
  }
  func.func @transform_36(%arg0: i32) -> (i32, i32) {
    %c0_i32 = arith.constant 0 : i32
    %c0_i32_0 = arith.constant 0 : i32
    %c0_i32_1 = arith.constant 0 : i32
    return %c0_i32, %c0_i32_0 : i32, i32
  }
  func.func @transform_37(%arg0: i32) -> (i32, i32) {
    %c0_i32 = arith.constant 0 : i32
    %c0_i32_0 = arith.constant 0 : i32
    %c0_i32_1 = arith.constant 0 : i32
    return %c0_i32, %c0_i32_0 : i32, i32
  }
  func.func @transform_38(%arg0: i32) -> (i32, i32) {
    %c0_i32 = arith.constant 0 : i32
    %c0_i32_0 = arith.constant 0 : i32
    %c0_i32_1 = arith.constant 0 : i32
    return %c0_i32, %c0_i32_0 : i32, i32
  }
  func.func @transform_39(%arg0: i32) -> (i32, i32, i32) {
    %c0_i32 = arith.constant 0 : i32
    %c0_i32_0 = arith.constant 0 : i32
    %c0_i32_1 = arith.constant 0 : i32
    return %arg0, %c0_i32, %c0_i32_0 : i32, i32, i32
  }
}

</mosaic_0001>

<llo_original>
// kernel: _lambda_.2
$region0: #{_lambda_.2}
  #allocation0 [shape = 'u32[]', space=smem, size = 0x4, offset = 0x4, fixed_abs, tag = 'smem constant byte address 0x4 - core index']
  #allocation1 [shape = 'u32[72,128]{1,0:T(1,128)}', space=vmem, size = 0x9000, scoped, tag = 'internal scratch']
  %s0 = inlined_call_operand.vmem [shape: f32[16,2048], index: 0, kind: input, shape index: {}]
  %s1 = inlined_call_operand.vmem [shape: f32[2048,16], index: 1, kind: input, shape index: {}]
  %s2 = inlined_call_operand.vmem [shape: f32[1,16], index: 2, kind: input, shape index: {}]
  %s3 = inlined_call_operand.vmem [shape: f32[16,16], index: 3, kind: output, shape index: {}]
  %s4 = sld [smem:[#allocation0]]
  $region45: #{_lambda_.2} parent=0
    _
  %s6 = ssub.s32 1, %s4
  %s7 = scalar_select 0, %s6, %s4
  loop: start=0, step=1, limit=4
  $region2: #{_lambda_.2} parent=0 // loop_pre_header
    _
  $region3: #{_lambda_.2} parent=0 // loop_header
    %s9 = sphi 0, %s13
    %p10 = scmp.ge.s32.totalorder %s9, 4
    %s19 = sphi 0, %s21
    %s22 = sphi 0, %s19
    %s23 = sphi 0, %s22
    %s39 = sphi 0, %s23
    %s43 = sphi 0, %s43
    %s45 = sphi 0, %s43
    %s46 = sphi 0, %s45
    %s60 = sphi 0, %s46
    %s64 = sphi 0, %s64
    %s66 = sphi 0, %s64
    %s67 = sphi 0, %s66
    %s81 = sphi 0, %s67
    %s87 = sphi 0, %s89
    %s90 = sphi 0, %s87
    %s91 = sphi 0, %s90
    %s107 = sphi 0, %s91
  $region4: #{_lambda_.2} parent=0 // loop_header_branch
    %12 = sbr.rel (%p10) target = $region8
  $region5: #{_lambda_.2} parent=0 // loop_body
    %s14 = ssub.s32 %s9, 1
    %s15 = ssub.s32 %s9, 2
    %s16 = sadd.s32 %s9, 1
    %s17 = ssub.s32 %s9, %s16
    %p18 = scmp.eq.s32.totalorder %s17, 0
    %s20 = sadd.s32 %s19, 1
    %s21 = scalar_select %p18, %s19, %s20
    %p24 = pneg %p18
    %p25 = scmp.eq.s32.totalorder %s9, 1
    %p26 = por %p24, %p25
    %p27 = scmp.ne.s32.totalorder %s19, %s22
    %p28 = scmp.eq.s32.totalorder %s9, 0
    %p29 = por %p27, %p28
    %p30 = scmp.ne.s32.totalorder %s19, %s22
    %p31 = scmp.eq.s32.totalorder %s14, 1
    %p32 = por %p30, %p31
    %p33 = scmp.ne.s32.totalorder %s22, %s23
    %p34 = scmp.eq.s32.totalorder %s14, 0
    %p35 = por %p33, %p34
    %p36 = scmp.ne.s32.totalorder %s22, %s23
    %p37 = scmp.eq.s32.totalorder %s15, 1
    %p38 = por %p36, %p37
    %p40 = scmp.ne.s32.totalorder %s23, %s39
    %p41 = scmp.eq.s32.totalorder %s15, 0
    %p42 = por %p40, %p41
    %s44 = sadd.s32 %s43, 1
    %p47 = scmp.eq.s32.totalorder %s9, 1
    %p48 = scmp.ne.s32.totalorder %s43, %s45
    %p49 = scmp.eq.s32.totalorder %s9, 0
    %p50 = por %p48, %p49
    %p51 = scmp.ne.s32.totalorder %s43, %s45
    %p52 = scmp.eq.s32.totalorder %s14, 1
    %p53 = por %p51, %p52
    %p54 = scmp.ne.s32.totalorder %s45, %s46
    %p55 = scmp.eq.s32.totalorder %s14, 0
    %p56 = por %p54, %p55
    %p57 = scmp.ne.s32.totalorder %s45, %s46
    %p58 = scmp.eq.s32.totalorder %s15, 1
    %p59 = por %p57, %p58
    %p61 = scmp.ne.s32.totalorder %s46, %s60
    %p62 = scmp.eq.s32.totalorder %s15, 0
    %p63 = por %p61, %p62
    %s65 = sadd.s32 %s64, 1
    %p68 = scmp.eq.s32.totalorder %s9, 1
    %p69 = scmp.ne.s32.totalorder %s64, %s66
    %p70 = scmp.eq.s32.totalorder %s9, 0
    %p71 = por %p69, %p70
    %p72 = scmp.ne.s32.totalorder %s64, %s66
    %p73 = scmp.eq.s32.totalorder %s14, 1
    %p74 = por %p72, %p73
    %p75 = scmp.ne.s32.totalorder %s66, %s67
    %p76 = scmp.eq.s32.totalorder %s14, 0
    %p77 = por %p75, %p76
    %p78 = scmp.ne.s32.totalorder %s66, %s67
    %p79 = scmp.eq.s32.totalorder %s15, 1
    %p80 = por %p78, %p79
    %p82 = scmp.ne.s32.totalorder %s67, %s81
    %p83 = scmp.eq.s32.totalorder %s15, 0
    %p84 = por %p82, %p83
    %s85 = ssub.s32 %s9, %s16
    %p86 = scmp.eq.s32.totalorder %s85, 0
    %s88 = sadd.s32 %s87, 1
    %s89 = scalar_select %p86, %s87, %s88
    %p92 = pneg %p86
    %p93 = scmp.eq.s32.totalorder %s9, 1
    %p94 = por %p92, %p93
    %p95 = scmp.ne.s32.totalorder %s87, %s90
    %p96 = scmp.eq.s32.totalorder %s9, 0
    %p97 = por %p95, %p96
    %p98 = scmp.ne.s32.totalorder %s87, %s90
    %p99 = scmp.eq.s32.totalorder %s14, 1
    %p100 = por %p98, %p99
    %p101 = scmp.ne.s32.totalorder %s90, %s91
    %p102 = scmp.eq.s32.totalorder %s14, 0
    %p103 = por %p101, %p102
    %p104 = scmp.ne.s32.totalorder %s90, %s91
    %p105 = scmp.eq.s32.totalorder %s15, 1
    %p106 = por %p104, %p105
    %p108 = scmp.ne.s32.totalorder %s91, %s107
    %p109 = scmp.eq.s32.totalorder %s15, 0
    %p110 = por %p108, %p109
    %p111 = scmp.le.s32.totalorder 1, %s9
    %p112 = scmp.lt.s32.totalorder %s9, 3
    %p113 = pnand %p111, %p112
    %p114 = pneg %p113
    // Predicated region
    $region9: #{_lambda_.2} parent=5 // pred_check
      _
    $region10: #{_lambda_.2} parent=5 // pred_check_branch
      %116 = sbr.rel (%p113) target = $region12
    $region11: #{_lambda_.2} parent=5 // pred_region
      %s117 = ssub.s32 %s9, 1
      // Predicated region
      $region13: #{_lambda_.2} parent=11 // pred_check
        %p118 = pneg %p56
      $region14: #{_lambda_.2} parent=11 // pred_check_branch
        %120 = sbr.rel (%p118) target = $region16
      $region15: #{_lambda_.2} parent=11 // pred_region
        _
      $region16: #{_lambda_.2} parent=11 // pred_fallthru
        _
      // Predicated region
      $region17: #{_lambda_.2} parent=11 // pred_check
        %p121 = pneg %p77
      $region18: #{_lambda_.2} parent=11 // pred_check_branch
        %123 = sbr.rel (%p121) target = $region20
      $region19: #{_lambda_.2} parent=11 // pred_region
        _
      $region20: #{_lambda_.2} parent=11 // pred_fallthru
        _
    $region12: #{_lambda_.2} parent=5 // pred_fallthru
      _
    %p124 = scmp.lt.s32.totalorder %s9, 2
    // Predicated region
    $region21: #{_lambda_.2} parent=5 // pred_check
      %p125 = pneg %p124
    $region22: #{_lambda_.2} parent=5 // pred_check_branch
      %127 = sbr.rel (%p125) target = $region24
    $region23: #{_lambda_.2} parent=5 // pred_region
      // Predicated region
      $region25: #{_lambda_.2} parent=23 // pred_check
        %p128 = pneg %p29
      $region26: #{_lambda_.2} parent=23 // pred_check_branch
        %130 = sbr.rel (%p128) target = $region28
      $region27: #{_lambda_.2} parent=23 // pred_region
        %p131 = scmp.lt.s32.totalorder %s9, 1
        %s132 = scalar_select %p131, %s9, 1
        %s133 = smul.addr %s132, 16
        %s134 = smul.addr %s133, 8
        %s135 = scalar_lea.vmem %s0, %s134
      $region28: #{_lambda_.2} parent=23 // pred_fallthru
        _
    $region24: #{_lambda_.2} parent=5 // pred_fallthru
      _
    %p136 = scmp.le.s32.totalorder 1, %s9
    %p137 = scmp.lt.s32.totalorder %s9, 3
    %p138 = pnand %p136, %p137
    %p139 = pneg %p138
    // Predicated region
    $region29: #{_lambda_.2} parent=5 // pred_check
      _
    $region30: #{_lambda_.2} parent=5 // pred_check_branch
      %141 = sbr.rel (%p138) target = $region32
    $region31: #{_lambda_.2} parent=5 // pred_region
      %s142 = ssub.s32 %s9, 1
      %p143 = scmp.lt.s32.totalorder %s14, 1
      %s144 = scalar_select %p143, %s14, 1
      %s145 = smul.addr %s144, 16
      %s146 = smul.addr %s145, 8
      %s147 = scalar_lea.vmem %s0, %s146
      %p148 = pneg %p35
      %p149 = pneg %p32
      %p150 = pneg %p56
      %p151 = pneg %p53
      %p152 = pneg %p77
      %p153 = pneg %p74
      %p154 = pneg %p103
      %p155 = pneg %p100
      %p156 = scmp.lt.s32.totalorder %s14, 1
      %s157 = scalar_select %p156, %s14, 1
      %s158 = smul.addr %s157, 8
      %s159 = scalar_lea.vmem %s3, %s158
      %p160 = scmp.lt.s32.totalorder %s14, 1
      %s161 = scalar_select %p160, %s14, 1
      %s162 = smul.addr %s161, 16
      %s163 = smul.addr %s162, 8
      %s164 = scalar_lea.vmem %s0, %s163
      %p165 = scmp.lt.s32.totalorder %s14, 1
      %s166 = scalar_select %p165, %s14, 1
      %s167 = smul.addr %s166, 8
      %s168 = scalar_lea.vmem %s3, %s167
      %v169 = vld [vmem:[%s164] sm:$0xff]
      %v170 = vld [vmem:[%s164 + $0x8] sm:$0xff]
      %v171 = vld [vmem:[%s164 + $0x10] sm:$0xff]
      %v172 = vld [vmem:[%s164 + $0x18] sm:$0xff]
      %v173 = vld [vmem:[%s164 + $0x20] sm:$0xff]
      %v174 = vld [vmem:[%s164 + $0x28] sm:$0xff]
      %v175 = vld [vmem:[%s164 + $0x30] sm:$0xff]
      %v176 = vld [vmem:[%s164 + $0x38] sm:$0xff]
      %v177 = vld [vmem:[%s164 + $0x40] sm:$0xff]
      %v178 = vld [vmem:[%s164 + $0x48] sm:$0xff]
      %v179 = vld [vmem:[%s164 + $0x50] sm:$0xff]
      %v180 = vld [vmem:[%s164 + $0x58] sm:$0xff]
      %v181 = vld [vmem:[%s164 + $0x60] sm:$0xff]
      %v182 = vld [vmem:[%s164 + $0x68] sm:$0xff]
      %v183 = vld [vmem:[%s164 + $0x70] sm:$0xff]
      %v184 = vld [vmem:[%s164 + $0x78] sm:$0xff]
      %v185 = vpack.c.bf16 %v169, %v169
      %v186 = vpack.c.bf16 %v170, %v170
      %v187 = vpack.c.bf16 %v171, %v171
      %v188 = vpack.c.bf16 %v172, %v172
      %v189 = vpack.c.bf16 %v173, %v173
      %v190 = vpack.c.bf16 %v174, %v174
      %v191 = vpack.c.bf16 %v175, %v175
      %v192 = vpack.c.bf16 %v176, %v176
      %v193 = vpack.c.bf16 %v177, %v177
      %v194 = vpack.c.bf16 %v178, %v178
      %v195 = vpack.c.bf16 %v179, %v179
      %v196 = vpack.c.bf16 %v180, %v180
      %v197 = vpack.c.bf16 %v181, %v181
      %v198 = vpack.c.bf16 %v182, %v182
      %v199 = vpack.c.bf16 %v183, %v183
      %v200 = vpack.c.bf16 %v184, %v184
      %v201 = vld [vmem:[%s1] sm:$0xff]
      %v202 = vld [vmem:[%s1 + $0x8] sm:$0xff]
      %v203 = vld [vmem:[%s1 + $0x10] sm:$0xff]
      %v204 = vld [vmem:[%s1 + $0x18] sm:$0xff]
      %v205 = vld [vmem:[%s1 + $0x20] sm:$0xff]
      %v206 = vld [vmem:[%s1 + $0x28] sm:$0xff]
      %v207 = vld [vmem:[%s1 + $0x30] sm:$0xff]
      %v208 = vld [vmem:[%s1 + $0x38] sm:$0xff]
      %v209 = vld [vmem:[%s1 + $0x40] sm:$0xff]
      %v210 = vld [vmem:[%s1 + $0x48] sm:$0xff]
      %v211 = vld [vmem:[%s1 + $0x50] sm:$0xff]
      %v212 = vld [vmem:[%s1 + $0x58] sm:$0xff]
      %v213 = vld [vmem:[%s1 + $0x60] sm:$0xff]
      %v214 = vld [vmem:[%s1 + $0x68] sm:$0xff]
      %v215 = vld [vmem:[%s1 + $0x70] sm:$0xff]
      %v216 = vld [vmem:[%s1 + $0x78] sm:$0xff]
      %v217 = vld [vmem:[%s1 + $0x80] sm:$0xff]
      %v218 = vld [vmem:[%s1 + $0x88] sm:$0xff]
      %v219 = vld [vmem:[%s1 + $0x90] sm:$0xff]
      %v220 = vld [vmem:[%s1 + $0x98] sm:$0xff]
      %v221 = vld [vmem:[%s1 + $0xa0] sm:$0xff]
      %v222 = vld [vmem:[%s1 + $0xa8] sm:$0xff]
      %v223 = vld [vmem:[%s1 + $0xb0] sm:$0xff]
      %v224 = vld [vmem:[%s1 + $0xb8] sm:$0xff]
      %v225 = vld [vmem:[%s1 + $0xc0] sm:$0xff]
      %v226 = vld [vmem:[%s1 + $0xc8] sm:$0xff]
      %v227 = vld [vmem:[%s1 + $0xd0] sm:$0xff]
      %v228 = vld [vmem:[%s1 + $0xd8] sm:$0xff]
      %v229 = vld [vmem:[%s1 + $0xe0] sm:$0xff]
      %v230 = vld [vmem:[%s1 + $0xe8] sm:$0xff]
      %v231 = vld [vmem:[%s1 + $0xf0] sm:$0xff]
      %v232 = vld [vmem:[%s1 + $0xf8] sm:$0xff]
      %v233 = vld [vmem:[%s1 + $0x100] sm:$0xff]
      %v234 = vld [vmem:[%s1 + $0x108] sm:$0xff]
      %v235 = vld [vmem:[%s1 + $0x110] sm:$0xff]
      %v236 = vld [vmem:[%s1 + $0x118] sm:$0xff]
      %v237 = vld [vmem:[%s1 + $0x120] sm:$0xff]
      %v238 = vld [vmem:[%s1 + $0x128] sm:$0xff]
      %v239 = vld [vmem:[%s1 + $0x130] sm:$0xff]
      %v240 = vld [vmem:[%s1 + $0x138] sm:$0xff]
      %v241 = vld [vmem:[%s1 + $0x140] sm:$0xff]
      %v242 = vld [vmem:[%s1 + $0x148] sm:$0xff]
      %v243 = vld [vmem:[%s1 + $0x150] sm:$0xff]
      %v244 = vld [vmem:[%s1 + $0x158] sm:$0xff]
      %v245 = vld [vmem:[%s1 + $0x160] sm:$0xff]
      %v246 = vld [vmem:[%s1 + $0x168] sm:$0xff]
      %v247 = vld [vmem:[%s1 + $0x170] sm:$0xff]
      %v248 = vld [vmem:[%s1 + $0x178] sm:$0xff]
      %v249 = vld [vmem:[%s1 + $0x180] sm:$0xff]
      %v250 = vld [vmem:[%s1 + $0x188] sm:$0xff]
      %v251 = vld [vmem:[%s1 + $0x190] sm:$0xff]
      %v252 = vld [vmem:[%s1 + $0x198] sm:$0xff]
      %v253 = vld [vmem:[%s1 + $0x1a0] sm:$0xff]
      %v254 = vld [vmem:[%s1 + $0x1a8] sm:$0xff]
      %v255 = vld [vmem:[%s1 + $0x1b0] sm:$0xff]
      %v256 = vld [vmem:[%s1 + $0x1b8] sm:$0xff]
      %v257 = vld [vmem:[%s1 + $0x1c0] sm:$0xff]
      %v258 = vld [vmem:[%s1 + $0x1c8] sm:$0xff]
      %v259 = vld [vmem:[%s1 + $0x1d0] sm:$0xff]
      %v260 = vld [vmem:[%s1 + $0x1d8] sm:$0xff]
      %v261 = vld [vmem:[%s1 + $0x1e0] sm:$0xff]
      %v262 = vld [vmem:[%s1 + $0x1e8] sm:$0xff]
      %v263 = vld [vmem:[%s1 + $0x1f0] sm:$0xff]
      %v264 = vld [vmem:[%s1 + $0x1f8] sm:$0xff]
      %v265 = vld [vmem:[%s1 + $0x200] sm:$0xff]
      %v266 = vld [vmem:[%s1 + $0x208] sm:$0xff]
      %v267 = vld [vmem:[%s1 + $0x210] sm:$0xff]
      %v268 = vld [vmem:[%s1 + $0x218] sm:$0xff]
      %v269 = vld [vmem:[%s1 + $0x220] sm:$0xff]
      %v270 = vld [vmem:[%s1 + $0x228] sm:$0xff]
      %v271 = vld [vmem:[%s1 + $0x230] sm:$0xff]
      %v272 = vld [vmem:[%s1 + $0x238] sm:$0xff]
      %v273 = vld [vmem:[%s1 + $0x240] sm:$0xff]
      %v274 = vld [vmem:[%s1 + $0x248] sm:$0xff]
      %v275 = vld [vmem:[%s1 + $0x250] sm:$0xff]
      %v276 = vld [vmem:[%s1 + $0x258] sm:$0xff]
      %v277 = vld [vmem:[%s1 + $0x260] sm:$0xff]
      %v278 = vld [vmem:[%s1 + $0x268] sm:$0xff]
      %v279 = vld [vmem:[%s1 + $0x270] sm:$0xff]
      %v280 = vld [vmem:[%s1 + $0x278] sm:$0xff]
      %v281 = vld [vmem:[%s1 + $0x280] sm:$0xff]
      %v282 = vld [vmem:[%s1 + $0x288] sm:$0xff]
      %v283 = vld [vmem:[%s1 + $0x290] sm:$0xff]
      %v284 = vld [vmem:[%s1 + $0x298] sm:$0xff]
      %v285 = vld [vmem:[%s1 + $0x2a0] sm:$0xff]
      %v286 = vld [vmem:[%s1 + $0x2a8] sm:$0xff]
      %v287 = vld [vmem:[%s1 + $0x2b0] sm:$0xff]
      %v288 = vld [vmem:[%s1 + $0x2b8] sm:$0xff]
      %v289 = vld [vmem:[%s1 + $0x2c0] sm:$0xff]
      %v290 = vld [vmem:[%s1 + $0x2c8] sm:$0xff]
      %v291 = vld [vmem:[%s1 + $0x2d0] sm:$0xff]
      %v292 = vld [vmem:[%s1 + $0x2d8] sm:$0xff]
      %v293 = vld [vmem:[%s1 + $0x2e0] sm:$0xff]
      %v294 = vld [vmem:[%s1 + $0x2e8] sm:$0xff]
      %v295 = vld [vmem:[%s1 + $0x2f0] sm:$0xff]
      %v296 = vld [vmem:[%s1 + $0x2f8] sm:$0xff]
      %v297 = vld [vmem:[%s1 + $0x300] sm:$0xff]
      %v298 = vld [vmem:[%s1 + $0x308] sm:$0xff]
      %v299 = vld [vmem:[%s1 + $0x310] sm:$0xff]
      %v300 = vld [vmem:[%s1 + $0x318] sm:$0xff]
      %v301 = vld [vmem:[%s1 + $0x320] sm:$0xff]
      %v302 = vld [vmem:[%s1 + $0x328] sm:$0xff]
      %v303 = vld [vmem:[%s1 + $0x330] sm:$0xff]
      %v304 = vld [vmem:[%s1 + $0x338] sm:$0xff]
      %v305 = vld [vmem:[%s1 + $0x340] sm:$0xff]
      %v306 = vld [vmem:[%s1 + $0x348] sm:$0xff]
      %v307 = vld [vmem:[%s1 + $0x350] sm:$0xff]
      %v308 = vld [vmem:[%s1 + $0x358] sm:$0xff]
      %v309 = vld [vmem:[%s1 + $0x360] sm:$0xff]
      %v310 = vld [vmem:[%s1 + $0x368] sm:$0xff]
      %v311 = vld [vmem:[%s1 + $0x370] sm:$0xff]
      %v312 = vld [vmem:[%s1 + $0x378] sm:$0xff]
      %v313 = vld [vmem:[%s1 + $0x380] sm:$0xff]
      %v314 = vld [vmem:[%s1 + $0x388] sm:$0xff]
      %v315 = vld [vmem:[%s1 + $0x390] sm:$0xff]
      %v316 = vld [vmem:[%s1 + $0x398] sm:$0xff]
      %v317 = vld [vmem:[%s1 + $0x3a0] sm:$0xff]
      %v318 = vld [vmem:[%s1 + $0x3a8] sm:$0xff]
      %v319 = vld [vmem:[%s1 + $0x3b0] sm:$0xff]
      %v320 = vld [vmem:[%s1 + $0x3b8] sm:$0xff]
      %v321 = vld [vmem:[%s1 + $0x3c0] sm:$0xff]
      %v322 = vld [vmem:[%s1 + $0x3c8] sm:$0xff]
      %v323 = vld [vmem:[%s1 + $0x3d0] sm:$0xff]
      %v324 = vld [vmem:[%s1 + $0x3d8] sm:$0xff]
      %v325 = vld [vmem:[%s1 + $0x3e0] sm:$0xff]
      %v326 = vld [vmem:[%s1 + $0x3e8] sm:$0xff]
      %v327 = vld [vmem:[%s1 + $0x3f0] sm:$0xff]
      %v328 = vld [vmem:[%s1 + $0x3f8] sm:$0xff]
      %v329 = vld [vmem:[%s1 + $0x400] sm:$0xff]
      %v330 = vld [vmem:[%s1 + $0x408] sm:$0xff]
      %v331 = vld [vmem:[%s1 + $0x410] sm:$0xff]
      %v332 = vld [vmem:[%s1 + $0x418] sm:$0xff]
      %v333 = vld [vmem:[%s1 + $0x420] sm:$0xff]
      %v334 = vld [vmem:[%s1 + $0x428] sm:$0xff]
      %v335 = vld [vmem:[%s1 + $0x430] sm:$0xff]
      %v336 = vld [vmem:[%s1 + $0x438] sm:$0xff]
      %v337 = vld [vmem:[%s1 + $0x440] sm:$0xff]
      %v338 = vld [vmem:[%s1 + $0x448] sm:$0xff]
      %v339 = vld [vmem:[%s1 + $0x450] sm:$0xff]
      %v340 = vld [vmem:[%s1 + $0x458] sm:$0xff]
      %v341 = vld [vmem:[%s1 + $0x460] sm:$0xff]
      %v342 = vld [vmem:[%s1 + $0x468] sm:$0xff]
      %v343 = vld [vmem:[%s1 + $0x470] sm:$0xff]
      %v344 = vld [vmem:[%s1 + $0x478] sm:$0xff]
      %v345 = vld [vmem:[%s1 + $0x480] sm:$0xff]
      %v346 = vld [vmem:[%s1 + $0x488] sm:$0xff]
      %v347 = vld [vmem:[%s1 + $0x490] sm:$0xff]
      %v348 = vld [vmem:[%s1 + $0x498] sm:$0xff]
      %v349 = vld [vmem:[%s1 + $0x4a0] sm:$0xff]
      %v350 = vld [vmem:[%s1 + $0x4a8] sm:$0xff]
      %v351 = vld [vmem:[%s1 + $0x4b0] sm:$0xff]
      %v352 = vld [vmem:[%s1 + $0x4b8] sm:$0xff]
      %v353 = vld [vmem:[%s1 + $0x4c0] sm:$0xff]
      %v354 = vld [vmem:[%s1 + $0x4c8] sm:$0xff]
      %v355 = vld [vmem:[%s1 + $0x4d0] sm:$0xff]
      %v356 = vld [vmem:[%s1 + $0x4d8] sm:$0xff]
      %v357 = vld [vmem:[%s1 + $0x4e0] sm:$0xff]
      %v358 = vld [vmem:[%s1 + $0x4e8] sm:$0xff]
      %v359 = vld [vmem:[%s1 + $0x4f0] sm:$0xff]
      %v360 = vld [vmem:[%s1 + $0x4f8] sm:$0xff]
      %v361 = vld [vmem:[%s1 + $0x500] sm:$0xff]
      %v362 = vld [vmem:[%s1 + $0x508] sm:$0xff]
      %v363 = vld [vmem:[%s1 + $0x510] sm:$0xff]
      %v364 = vld [vmem:[%s1 + $0x518] sm:$0xff]
      %v365 = vld [vmem:[%s1 + $0x520] sm:$0xff]
      %v366 = vld [vmem:[%s1 + $0x528] sm:$0xff]
      %v367 = vld [vmem:[%s1 + $0x530] sm:$0xff]
      %v368 = vld [vmem:[%s1 + $0x538] sm:$0xff]
      %v369 = vld [vmem:[%s1 + $0x540] sm:$0xff]
      %v370 = vld [vmem:[%s1 + $0x548] sm:$0xff]
      %v371 = vld [vmem:[%s1 + $0x550] sm:$0xff]
      %v372 = vld [vmem:[%s1 + $0x558] sm:$0xff]
      %v373 = vld [vmem:[%s1 + $0x560] sm:$0xff]
      %v374 = vld [vmem:[%s1 + $0x568] sm:$0xff]
      %v375 = vld [vmem:[%s1 + $0x570] sm:$0xff]
      %v376 = vld [vmem:[%s1 + $0x578] sm:$0xff]
      %v377 = vld [vmem:[%s1 + $0x580] sm:$0xff]
      %v378 = vld [vmem:[%s1 + $0x588] sm:$0xff]
      %v379 = vld [vmem:[%s1 + $0x590] sm:$0xff]
      %v380 = vld [vmem:[%s1 + $0x598] sm:$0xff]
      %v381 = vld [vmem:[%s1 + $0x5a0] sm:$0xff]
      %v382 = vld [vmem:[%s1 + $0x5a8] sm:$0xff]
      %v383 = vld [vmem:[%s1 + $0x5b0] sm:$0xff]
      %v384 = vld [vmem:[%s1 + $0x5b8] sm:$0xff]
      %v385 = vld [vmem:[%s1 + $0x5c0] sm:$0xff]
      %v386 = vld [vmem:[%s1 + $0x5c8] sm:$0xff]
      %v387 = vld [vmem:[%s1 + $0x5d0] sm:$0xff]
      %v388 = vld [vmem:[%s1 + $0x5d8] sm:$0xff]
      %v389 = vld [vmem:[%s1 + $0x5e0] sm:$0xff]
      %v390 = vld [vmem:[%s1 + $0x5e8] sm:$0xff]
      %v391 = vld [vmem:[%s1 + $0x5f0] sm:$0xff]
      %v392 = vld [vmem:[%s1 + $0x5f8] sm:$0xff]
      %v393 = vld [vmem:[%s1 + $0x600] sm:$0xff]
      %v394 = vld [vmem:[%s1 + $0x608] sm:$0xff]
      %v395 = vld [vmem:[%s1 + $0x610] sm:$0xff]
      %v396 = vld [vmem:[%s1 + $0x618] sm:$0xff]
      %v397 = vld [vmem:[%s1 + $0x620] sm:$0xff]
      %v398 = vld [vmem:[%s1 + $0x628] sm:$0xff]
      %v399 = vld [vmem:[%s1 + $0x630] sm:$0xff]
      %v400 = vld [vmem:[%s1 + $0x638] sm:$0xff]
      %v401 = vld [vmem:[%s1 + $0x640] sm:$0xff]
      %v402 = vld [vmem:[%s1 + $0x648] sm:$0xff]
      %v403 = vld [vmem:[%s1 + $0x650] sm:$0xff]
      %v404 = vld [vmem:[%s1 + $0x658] sm:$0xff]
      %v405 = vld [vmem:[%s1 + $0x660] sm:$0xff]
      %v406 = vld [vmem:[%s1 + $0x668] sm:$0xff]
      %v407 = vld [vmem:[%s1 + $0x670] sm:$0xff]
      %v408 = vld [vmem:[%s1 + $0x678] sm:$0xff]
      %v409 = vld [vmem:[%s1 + $0x680] sm:$0xff]
      %v410 = vld [vmem:[%s1 + $0x688] sm:$0xff]
      %v411 = vld [vmem:[%s1 + $0x690] sm:$0xff]
      %v412 = vld [vmem:[%s1 + $0x698] sm:$0xff]
      %v413 = vld [vmem:[%s1 + $0x6a0] sm:$0xff]
      %v414 = vld [vmem:[%s1 + $0x6a8] sm:$0xff]
      %v415 = vld [vmem:[%s1 + $0x6b0] sm:$0xff]
      %v416 = vld [vmem:[%s1 + $0x6b8] sm:$0xff]
      %v417 = vld [vmem:[%s1 + $0x6c0] sm:$0xff]
      %v418 = vld [vmem:[%s1 + $0x6c8] sm:$0xff]
      %v419 = vld [vmem:[%s1 + $0x6d0] sm:$0xff]
      %v420 = vld [vmem:[%s1 + $0x6d8] sm:$0xff]
      %v421 = vld [vmem:[%s1 + $0x6e0] sm:$0xff]
      %v422 = vld [vmem:[%s1 + $0x6e8] sm:$0xff]
      %v423 = vld [vmem:[%s1 + $0x6f0] sm:$0xff]
      %v424 = vld [vmem:[%s1 + $0x6f8] sm:$0xff]
      %v425 = vld [vmem:[%s1 + $0x700] sm:$0xff]
      %v426 = vld [vmem:[%s1 + $0x708] sm:$0xff]
      %v427 = vld [vmem:[%s1 + $0x710] sm:$0xff]
      %v428 = vld [vmem:[%s1 + $0x718] sm:$0xff]
      %v429 = vld [vmem:[%s1 + $0x720] sm:$0xff]
      %v430 = vld [vmem:[%s1 + $0x728] sm:$0xff]
      %v431 = vld [vmem:[%s1 + $0x730] sm:$0xff]
      %v432 = vld [vmem:[%s1 + $0x738] sm:$0xff]
      %v433 = vld [vmem:[%s1 + $0x740] sm:$0xff]
      %v434 = vld [vmem:[%s1 + $0x748] sm:$0xff]
      %v435 = vld [vmem:[%s1 + $0x750] sm:$0xff]
      %v436 = vld [vmem:[%s1 + $0x758] sm:$0xff]
      %v437 = vld [vmem:[%s1 + $0x760] sm:$0xff]
      %v438 = vld [vmem:[%s1 + $0x768] sm:$0xff]
      %v439 = vld [vmem:[%s1 + $0x770] sm:$0xff]
      %v440 = vld [vmem:[%s1 + $0x778] sm:$0xff]
      %v441 = vld [vmem:[%s1 + $0x780] sm:$0xff]
      %v442 = vld [vmem:[%s1 + $0x788] sm:$0xff]
      %v443 = vld [vmem:[%s1 + $0x790] sm:$0xff]
      %v444 = vld [vmem:[%s1 + $0x798] sm:$0xff]
      %v445 = vld [vmem:[%s1 + $0x7a0] sm:$0xff]
      %v446 = vld [vmem:[%s1 + $0x7a8] sm:$0xff]
      %v447 = vld [vmem:[%s1 + $0x7b0] sm:$0xff]
      %v448 = vld [vmem:[%s1 + $0x7b8] sm:$0xff]
      %v449 = vld [vmem:[%s1 + $0x7c0] sm:$0xff]
      %v450 = vld [vmem:[%s1 + $0x7c8] sm:$0xff]
      %v451 = vld [vmem:[%s1 + $0x7d0] sm:$0xff]
      %v452 = vld [vmem:[%s1 + $0x7d8] sm:$0xff]
      %v453 = vld [vmem:[%s1 + $0x7e0] sm:$0xff]
      %v454 = vld [vmem:[%s1 + $0x7e8] sm:$0xff]
      %v455 = vld [vmem:[%s1 + $0x7f0] sm:$0xff]
      %v456 = vld [vmem:[%s1 + $0x7f8] sm:$0xff]
      %v457 = vpack.c.bf16 %v202, %v201
      %v458 = vpack.c.bf16 %v204, %v203
      %v459 = vpack.c.bf16 %v206, %v205
      %v460 = vpack.c.bf16 %v208, %v207
      %v461 = vpack.c.bf16 %v210, %v209
      %v462 = vpack.c.bf16 %v212, %v211
      %v463 = vpack.c.bf16 %v214, %v213
      %v464 = vpack.c.bf16 %v216, %v215
      %v465 = vpack.c.bf16 %v218, %v217
      %v466 = vpack.c.bf16 %v220, %v219
      %v467 = vpack.c.bf16 %v222, %v221
      %v468 = vpack.c.bf16 %v224, %v223
      %v469 = vpack.c.bf16 %v226, %v225
      %v470 = vpack.c.bf16 %v228, %v227
      %v471 = vpack.c.bf16 %v230, %v229
      %v472 = vpack.c.bf16 %v232, %v231
      %v473 = vpack.c.bf16 %v234, %v233
      %v474 = vpack.c.bf16 %v236, %v235
      %v475 = vpack.c.bf16 %v238, %v237
      %v476 = vpack.c.bf16 %v240, %v239
      %v477 = vpack.c.bf16 %v242, %v241
      %v478 = vpack.c.bf16 %v244, %v243
      %v479 = vpack.c.bf16 %v246, %v245
      %v480 = vpack.c.bf16 %v248, %v247
      %v481 = vpack.c.bf16 %v250, %v249
      %v482 = vpack.c.bf16 %v252, %v251
      %v483 = vpack.c.bf16 %v254, %v253
      %v484 = vpack.c.bf16 %v256, %v255
      %v485 = vpack.c.bf16 %v258, %v257
      %v486 = vpack.c.bf16 %v260, %v259
      %v487 = vpack.c.bf16 %v262, %v261
      %v488 = vpack.c.bf16 %v264, %v263
      %v489 = vpack.c.bf16 %v266, %v265
      %v490 = vpack.c.bf16 %v268, %v267
      %v491 = vpack.c.bf16 %v270, %v269
      %v492 = vpack.c.bf16 %v272, %v271
      %v493 = vpack.c.bf16 %v274, %v273
      %v494 = vpack.c.bf16 %v276, %v275
      %v495 = vpack.c.bf16 %v278, %v277
      %v496 = vpack.c.bf16 %v280, %v279
      %v497 = vpack.c.bf16 %v282, %v281
      %v498 = vpack.c.bf16 %v284, %v283
      %v499 = vpack.c.bf16 %v286, %v285
      %v500 = vpack.c.bf16 %v288, %v287
      %v501 = vpack.c.bf16 %v290, %v289
      %v502 = vpack.c.bf16 %v292, %v291
      %v503 = vpack.c.bf16 %v294, %v293
      %v504 = vpack.c.bf16 %v296, %v295
      %v505 = vpack.c.bf16 %v298, %v297
      %v506 = vpack.c.bf16 %v300, %v299
      %v507 = vpack.c.bf16 %v302, %v301
      %v508 = vpack.c.bf16 %v304, %v303
      %v509 = vpack.c.bf16 %v306, %v305
      %v510 = vpack.c.bf16 %v308, %v307
      %v511 = vpack.c.bf16 %v310, %v309
      %v512 = vpack.c.bf16 %v312, %v311
      %v513 = vpack.c.bf16 %v314, %v313
      %v514 = vpack.c.bf16 %v316, %v315
      %v515 = vpack.c.bf16 %v318, %v317
      %v516 = vpack.c.bf16 %v320, %v319
      %v517 = vpack.c.bf16 %v322, %v321
      %v518 = vpack.c.bf16 %v324, %v323
      %v519 = vpack.c.bf16 %v326, %v325
      %v520 = vpack.c.bf16 %v328, %v327
      %v521 = vpack.c.bf16 %v330, %v329
      %v522 = vpack.c.bf16 %v332, %v331
      %v523 = vpack.c.bf16 %v334, %v333
      %v524 = vpack.c.bf16 %v336, %v335
      %v525 = vpack.c.bf16 %v338, %v337
      %v526 = vpack.c.bf16 %v340, %v339
      %v527 = vpack.c.bf16 %v342, %v341
      %v528 = vpack.c.bf16 %v344, %v343
      %v529 = vpack.c.bf16 %v346, %v345
      %v530 = vpack.c.bf16 %v348, %v347
      %v531 = vpack.c.bf16 %v350, %v349
      %v532 = vpack.c.bf16 %v352, %v351
      %v533 = vpack.c.bf16 %v354, %v353
      %v534 = vpack.c.bf16 %v356, %v355
      %v535 = vpack.c.bf16 %v358, %v357
      %v536 = vpack.c.bf16 %v360, %v359
      %v537 = vpack.c.bf16 %v362, %v361
      %v538 = vpack.c.bf16 %v364, %v363
      %v539 = vpack.c.bf16 %v366, %v365
      %v540 = vpack.c.bf16 %v368, %v367
      %v541 = vpack.c.bf16 %v370, %v369
      %v542 = vpack.c.bf16 %v372, %v371
      %v543 = vpack.c.bf16 %v374, %v373
      %v544 = vpack.c.bf16 %v376, %v375
      %v545 = vpack.c.bf16 %v378, %v377
      %v546 = vpack.c.bf16 %v380, %v379
      %v547 = vpack.c.bf16 %v382, %v381
      %v548 = vpack.c.bf16 %v384, %v383
      %v549 = vpack.c.bf16 %v386, %v385
      %v550 = vpack.c.bf16 %v388, %v387
      %v551 = vpack.c.bf16 %v390, %v389
      %v552 = vpack.c.bf16 %v392, %v391
      %v553 = vpack.c.bf16 %v394, %v393
      %v554 = vpack.c.bf16 %v396, %v395
      %v555 = vpack.c.bf16 %v398, %v397
      %v556 = vpack.c.bf16 %v400, %v399
      %v557 = vpack.c.bf16 %v402, %v401
      %v558 = vpack.c.bf16 %v404, %v403
      %v559 = vpack.c.bf16 %v406, %v405
      %v560 = vpack.c.bf16 %v408, %v407
      %v561 = vpack.c.bf16 %v410, %v409
      %v562 = vpack.c.bf16 %v412, %v411
      %v563 = vpack.c.bf16 %v414, %v413
      %v564 = vpack.c.bf16 %v416, %v415
      %v565 = vpack.c.bf16 %v418, %v417
      %v566 = vpack.c.bf16 %v420, %v419
      %v567 = vpack.c.bf16 %v422, %v421
      %v568 = vpack.c.bf16 %v424, %v423
      %v569 = vpack.c.bf16 %v426, %v425
      %v570 = vpack.c.bf16 %v428, %v427
      %v571 = vpack.c.bf16 %v430, %v429
      %v572 = vpack.c.bf16 %v432, %v431
      %v573 = vpack.c.bf16 %v434, %v433
      %v574 = vpack.c.bf16 %v436, %v435
      %v575 = vpack.c.bf16 %v438, %v437
      %v576 = vpack.c.bf16 %v440, %v439
      %v577 = vpack.c.bf16 %v442, %v441
      %v578 = vpack.c.bf16 %v444, %v443
      %v579 = vpack.c.bf16 %v446, %v445
      %v580 = vpack.c.bf16 %v448, %v447
      %v581 = vpack.c.bf16 %v450, %v449
      %v582 = vpack.c.bf16 %v452, %v451
      %v583 = vpack.c.bf16 %v454, %v453
      %v584 = vpack.c.bf16 %v456, %v455
      %v585 = vld [vmem:[%s2] sm:$0x1]
      %v587 = vperm.slane %v585, 0
      %589 = vmatpush.bf16.msra.mxu0 %v464
      %590 = vmatpush.bf16.msra.mxu0 %v463
      %591 = vmatpush.bf16.msra.mxu0 %v462
      %592 = vmatpush.bf16.msra.mxu0 %v461
      %593 = vmatpush.bf16.msra.mxu0 %v460
      %594 = vmatpush.bf16.msra.mxu0 %v459
      %595 = vmatpush.bf16.msra.mxu0 %v458
      %596 = vmatpush.bf16.msra.mxu0 %v457
      %597 = vmatmul.bf16.gmra.mxu0 %v185
      %v598 = vpop.f32.mrf.mxu0
      %v599 = vadd.f32 %v587, %v598
      %v600 = vpop.f32.mrf.mxu0
      %601 = vdwg.mxu0
      %602 = vmatpush.bf16.msra.mxu0 %v472
      %603 = vmatpush.bf16.msra.mxu0 %v471
      %604 = vmatpush.bf16.msra.mxu0 %v470
      %605 = vmatpush.bf16.msra.mxu0 %v469
      %606 = vmatpush.bf16.msra.mxu0 %v468
      %607 = vmatpush.bf16.msra.mxu0 %v467
      %608 = vmatpush.bf16.msra.mxu0 %v466
      %609 = vmatpush.bf16.msra.mxu0 %v465
      %610 = vmatmul.bf16.gmra.mxu0 %v186
      %v611 = vpop.f32.mrf.mxu0
      %v612 = vadd.f32 %v599, %v611
      %v613 = vpop.f32.mrf.mxu0
      %614 = vdwg.mxu0
      %615 = vmatpush.bf16.msra.mxu0 %v480
      %616 = vmatpush.bf16.msra.mxu0 %v479
      %617 = vmatpush.bf16.msra.mxu0 %v478
      %618 = vmatpush.bf16.msra.mxu0 %v477
      %619 = vmatpush.bf16.msra.mxu0 %v476
      %620 = vmatpush.bf16.msra.mxu0 %v475
      %621 = vmatpush.bf16.msra.mxu0 %v474
      %622 = vmatpush.bf16.msra.mxu0 %v473
      %623 = vmatmul.bf16.gmra.mxu0 %v187
      %v624 = vpop.f32.mrf.mxu0
      %v625 = vadd.f32 %v612, %v624
      %v626 = vpop.f32.mrf.mxu0
      %627 = vdwg.mxu0
      %628 = vmatpush.bf16.msra.mxu0 %v488
      %629 = vmatpush.bf16.msra.mxu0 %v487
      %630 = vmatpush.bf16.msra.mxu0 %v486
      %631 = vmatpush.bf16.msra.mxu0 %v485
      %632 = vmatpush.bf16.msra.mxu0 %v484
      %633 = vmatpush.bf16.msra.mxu0 %v483
      %634 = vmatpush.bf16.msra.mxu0 %v482
      %635 = vmatpush.bf16.msra.mxu0 %v481
      %636 = vmatmul.bf16.gmra.mxu0 %v188
      %v637 = vpop.f32.mrf.mxu0
      %v638 = vadd.f32 %v625, %v637
      %v639 = vpop.f32.mrf.mxu0
      %640 = vdwg.mxu0
      %641 = vmatpush.bf16.msra.mxu0 %v496
      %642 = vmatpush.bf16.msra.mxu0 %v495
      %643 = vmatpush.bf16.msra.mxu0 %v494
      %644 = vmatpush.bf16.msra.mxu0 %v493
      %645 = vmatpush.bf16.msra.mxu0 %v492
      %646 = vmatpush.bf16.msra.mxu0 %v491
      %647 = vmatpush.bf16.msra.mxu0 %v490
      %648 = vmatpush.bf16.msra.mxu0 %v489
      %649 = vmatmul.bf16.gmra.mxu0 %v189
      %v650 = vpop.f32.mrf.mxu0
      %v651 = vadd.f32 %v638, %v650
      %v652 = vpop.f32.mrf.mxu0
      %653 = vdwg.mxu0
      %654 = vmatpush.bf16.msra.mxu0 %v504
      %655 = vmatpush.bf16.msra.mxu0 %v503
      %656 = vmatpush.bf16.msra.mxu0 %v502
      %657 = vmatpush.bf16.msra.mxu0 %v501
      %658 = vmatpush.bf16.msra.mxu0 %v500
      %659 = vmatpush.bf16.msra.mxu0 %v499
      %660 = vmatpush.bf16.msra.mxu0 %v498
      %661 = vmatpush.bf16.msra.mxu0 %v497
      %662 = vmatmul.bf16.gmra.mxu0 %v190
      %v663 = vpop.f32.mrf.mxu0
      %v664 = vadd.f32 %v651, %v663
      %v665 = vpop.f32.mrf.mxu0
      %666 = vdwg.mxu0
      %667 = vmatpush.bf16.msra.mxu0 %v512
      %668 = vmatpush.bf16.msra.mxu0 %v511
      %669 = vmatpush.bf16.msra.mxu0 %v510
      %670 = vmatpush.bf16.msra.mxu0 %v509
      %671 = vmatpush.bf16.msra.mxu0 %v508
      %672 = vmatpush.bf16.msra.mxu0 %v507
      %673 = vmatpush.bf16.msra.mxu0 %v506
      %674 = vmatpush.bf16.msra.mxu0 %v505
      %675 = vmatmul.bf16.gmra.mxu0 %v191
      %v676 = vpop.f32.mrf.mxu0
      %v677 = vadd.f32 %v664, %v676
      %v678 = vpop.f32.mrf.mxu0
      %679 = vdwg.mxu0
      %680 = vmatpush.bf16.msra.mxu0 %v520
      %681 = vmatpush.bf16.msra.mxu0 %v519
      %682 = vmatpush.bf16.msra.mxu0 %v518
      %683 = vmatpush.bf16.msra.mxu0 %v517
      %684 = vmatpush.bf16.msra.mxu0 %v516
      %685 = vmatpush.bf16.msra.mxu0 %v515
      %686 = vmatpush.bf16.msra.mxu0 %v514
      %687 = vmatpush.bf16.msra.mxu0 %v513
      %688 = vmatmul.bf16.gmra.mxu0 %v192
      %v689 = vpop.f32.mrf.mxu0
      %v690 = vadd.f32 %v677, %v689
      %v691 = vpop.f32.mrf.mxu0
      %692 = vdwg.mxu0
      %693 = vmatpush.bf16.msra.mxu0 %v528
      %694 = vmatpush.bf16.msra.mxu0 %v527
      %695 = vmatpush.bf16.msra.mxu0 %v526
      %696 = vmatpush.bf16.msra.mxu0 %v525
      %697 = vmatpush.bf16.msra.mxu0 %v524
      %698 = vmatpush.bf16.msra.mxu0 %v523
      %699 = vmatpush.bf16.msra.mxu0 %v522
      %700 = vmatpush.bf16.msra.mxu0 %v521
      %701 = vmatmul.bf16.gmra.mxu0 %v193
      %v702 = vpop.f32.mrf.mxu0
      %v703 = vadd.f32 %v690, %v702
      %v704 = vpop.f32.mrf.mxu0
      %705 = vdwg.mxu0
      %706 = vmatpush.bf16.msra.mxu0 %v536
      %707 = vmatpush.bf16.msra.mxu0 %v535
      %708 = vmatpush.bf16.msra.mxu0 %v534
      %709 = vmatpush.bf16.msra.mxu0 %v533
      %710 = vmatpush.bf16.msra.mxu0 %v532
      %711 = vmatpush.bf16.msra.mxu0 %v531
      %712 = vmatpush.bf16.msra.mxu0 %v530
      %713 = vmatpush.bf16.msra.mxu0 %v529
      %714 = vmatmul.bf16.gmra.mxu0 %v194
      %v715 = vpop.f32.mrf.mxu0
      %v716 = vadd.f32 %v703, %v715
      %v717 = vpop.f32.mrf.mxu0
      %718 = vdwg.mxu0
      %719 = vmatpush.bf16.msra.mxu0 %v544
      %720 = vmatpush.bf16.msra.mxu0 %v543
      %721 = vmatpush.bf16.msra.mxu0 %v542
      %722 = vmatpush.bf16.msra.mxu0 %v541
      %723 = vmatpush.bf16.msra.mxu0 %v540
      %724 = vmatpush.bf16.msra.mxu0 %v539
      %725 = vmatpush.bf16.msra.mxu0 %v538
      %726 = vmatpush.bf16.msra.mxu0 %v537
      %727 = vmatmul.bf16.gmra.mxu0 %v195
      %v728 = vpop.f32.mrf.mxu0
      %v729 = vadd.f32 %v716, %v728
      %v730 = vpop.f32.mrf.mxu0
      %731 = vdwg.mxu0
      %732 = vmatpush.bf16.msra.mxu0 %v552
      %733 = vmatpush.bf16.msra.mxu0 %v551
      %734 = vmatpush.bf16.msra.mxu0 %v550
      %735 = vmatpush.bf16.msra.mxu0 %v549
      %736 = vmatpush.bf16.msra.mxu0 %v548
      %737 = vmatpush.bf16.msra.mxu0 %v547
      %738 = vmatpush.bf16.msra.mxu0 %v546
      %739 = vmatpush.bf16.msra.mxu0 %v545
      %740 = vmatmul.bf16.gmra.mxu0 %v196
      %v741 = vpop.f32.mrf.mxu0
      %v742 = vadd.f32 %v729, %v741
      %v743 = vpop.f32.mrf.mxu0
      %744 = vdwg.mxu0
      %745 = vmatpush.bf16.msra.mxu0 %v560
      %746 = vmatpush.bf16.msra.mxu0 %v559
      %747 = vmatpush.bf16.msra.mxu0 %v558
      %748 = vmatpush.bf16.msra.mxu0 %v557
      %749 = vmatpush.bf16.msra.mxu0 %v556
      %750 = vmatpush.bf16.msra.mxu0 %v555
      %751 = vmatpush.bf16.msra.mxu0 %v554
      %752 = vmatpush.bf16.msra.mxu0 %v553
      %753 = vmatmul.bf16.gmra.mxu0 %v197
      %v754 = vpop.f32.mrf.mxu0
      %v755 = vadd.f32 %v742, %v754
      %v756 = vpop.f32.mrf.mxu0
      %757 = vdwg.mxu0
      %758 = vmatpush.bf16.msra.mxu0 %v568
      %759 = vmatpush.bf16.msra.mxu0 %v567
      %760 = vmatpush.bf16.msra.mxu0 %v566
      %761 = vmatpush.bf16.msra.mxu0 %v565
      %762 = vmatpush.bf16.msra.mxu0 %v564
      %763 = vmatpush.bf16.msra.mxu0 %v563
      %764 = vmatpush.bf16.msra.mxu0 %v562
      %765 = vmatpush.bf16.msra.mxu0 %v561
      %766 = vmatmul.bf16.gmra.mxu0 %v198
      %v767 = vpop.f32.mrf.mxu0
      %v768 = vadd.f32 %v755, %v767
      %v769 = vpop.f32.mrf.mxu0
      %770 = vdwg.mxu0
      %771 = vmatpush.bf16.msra.mxu0 %v576
      %772 = vmatpush.bf16.msra.mxu0 %v575
      %773 = vmatpush.bf16.msra.mxu0 %v574
      %774 = vmatpush.bf16.msra.mxu0 %v573
      %775 = vmatpush.bf16.msra.mxu0 %v572
      %776 = vmatpush.bf16.msra.mxu0 %v571
      %777 = vmatpush.bf16.msra.mxu0 %v570
      %778 = vmatpush.bf16.msra.mxu0 %v569
      %779 = vmatmul.bf16.gmra.mxu0 %v199
      %v780 = vpop.f32.mrf.mxu0
      %v781 = vadd.f32 %v768, %v780
      %v782 = vpop.f32.mrf.mxu0
      %783 = vdwg.mxu0
      %784 = vmatpush.bf16.msra.mxu0 %v584
      %785 = vmatpush.bf16.msra.mxu0 %v583
      %786 = vmatpush.bf16.msra.mxu0 %v582
      %787 = vmatpush.bf16.msra.mxu0 %v581
      %788 = vmatpush.bf16.msra.mxu0 %v580
      %789 = vmatpush.bf16.msra.mxu0 %v579
      %790 = vmatpush.bf16.msra.mxu0 %v578
      %791 = vmatpush.bf16.msra.mxu0 %v577
      %792 = vmatmul.bf16.gmra.mxu0 %v200
      %v793 = vpop.f32.mrf.mxu0
      %v794 = vadd.f32 %v781, %v793
      %v795 = vpop.f32.mrf.mxu0
      %796 = vdwg.mxu0
      %vm797 = vcmask 130048
      %798 = vst.msk [vmem:[%s168] sm:$0xff] %vm797, %v794
      %p799 = scmp.lt.s32.totalorder %s14, 1
      %s800 = scalar_select %p799, %s14, 1
      %s801 = smul.addr %s800, 8
      %s802 = scalar_lea.vmem %s3, %s801
      // Predicated region
      $region33: #{_lambda_.2} parent=31 // pred_check
        %p803 = pneg %p100
      $region34: #{_lambda_.2} parent=31 // pred_check_branch
        %805 = sbr.rel (%p803) target = $region36
      $region35: #{_lambda_.2} parent=31 // pred_region
        _
      $region36: #{_lambda_.2} parent=31 // pred_fallthru
        _
    $region32: #{_lambda_.2} parent=5 // pred_fallthru
      _
    %p806 = scmp.le.s32.totalorder 2, %s9
    // Predicated region
    $region37: #{_lambda_.2} parent=5 // pred_check
      %p807 = pneg %p806
    $region38: #{_lambda_.2} parent=5 // pred_check_branch
      %809 = sbr.rel (%p807) target = $region40
    $region39: #{_lambda_.2} parent=5 // pred_region
      %s810 = ssub.s32 %s9, 2
      // Predicated region
      $region41: #{_lambda_.2} parent=39 // pred_check
        %p811 = pneg %p106
      $region42: #{_lambda_.2} parent=39 // pred_check_branch
        %813 = sbr.rel (%p811) target = $region44
      $region43: #{_lambda_.2} parent=39 // pred_region
        %p814 = scmp.lt.s32.totalorder %s15, 1
        %s815 = scalar_select %p814, %s15, 1
        %s816 = smul.addr %s815, 8
        %s817 = scalar_lea.vmem %s3, %s816
      $region44: #{_lambda_.2} parent=39 // pred_fallthru
        _
    $region40: #{_lambda_.2} parent=5 // pred_fallthru
      _
  $region6: #{_lambda_.2} parent=0 // loop_footer
    %s13 = sadd.s32 1, %s9
  $region7: #{_lambda_.2} parent=0 // loop_footer_branch
    %8 = sbr.rel target = $region3
  $region8: #{_lambda_.2} parent=0 // loop_exit
    _

// kernel: _lambda_.3
$region0: #{_lambda_.3}
  #allocation0 [shape = 'u32[]', space=smem, size = 0x4, offset = 0x4, fixed_abs, tag = 'smem constant byte address 0x4 - core index']
  #allocation1 [shape = 'u32[72,128]{1,0:T(1,128)}', space=vmem, size = 0x9000, scoped, tag = 'internal scratch']
  #allocation2 [shape = 'f32[1,1]{1,0:T(1,128)S(1)}', space=vmem, size = 0x200, scoped, tag = 'scoped memory for _lambda_.3']
  #allocation3 [shape = 'f32[1,1]{1,0:T(1,128)S(1)}', space=vmem, size = 0x200, scoped, tag = 'scoped memory for _lambda_.3']
  %s0 = inlined_call_operand.smem [shape: u32[40], index: -1, kind: input, shape index: {}]
  %s1 = sld [smem:[%s0]]
  %s2 = scalar_lea.smem %s0, 1
  %s3 = sld [smem:[%s2]]
  %s4 = scalar_lea.smem %s0, 2
  %s5 = sld [smem:[%s4]]
  %s6 = scalar_lea.smem %s0, 3
  %s7 = sld [smem:[%s6]]
  %s8 = scalar_lea.smem %s0, 4
  %s9 = sld [smem:[%s8]]
  %s10 = scalar_lea.smem %s0, 5
  %s11 = sld [smem:[%s10]]
  %s12 = scalar_lea.smem %s0, 6
  %s13 = sld [smem:[%s12]]
  %s14 = scalar_lea.smem %s0, 7
  %s15 = sld [smem:[%s14]]
  %s16 = scalar_lea.smem %s0, 8
  %s17 = sld [smem:[%s16]]
  %s18 = scalar_lea.smem %s0, 9
  %s19 = sld [smem:[%s18]]
  %s20 = scalar_lea.smem %s0, 10
  %s21 = sld [smem:[%s20]]
  %s22 = scalar_lea.smem %s0, 11
  %s23 = sld [smem:[%s22]]
  %s24 = scalar_lea.smem %s0, 12
  %s25 = sld [smem:[%s24]]
  %s26 = scalar_lea.smem %s0, 13
  %s27 = sld [smem:[%s26]]
  %s28 = scalar_lea.smem %s0, 14
  %s29 = sld [smem:[%s28]]
  %s30 = scalar_lea.smem %s0, 15
  %s31 = sld [smem:[%s30]]
  %s32 = scalar_lea.smem %s0, 16
  %s33 = sld [smem:[%s32]]
  %s34 = scalar_lea.smem %s0, 17
  %s35 = sld [smem:[%s34]]
  %s36 = scalar_lea.smem %s0, 18
  %s37 = sld [smem:[%s36]]
  %s38 = scalar_lea.smem %s0, 19
  %s39 = sld [smem:[%s38]]
  %s40 = scalar_lea.smem %s0, 20
  %s41 = sld [smem:[%s40]]
  %s42 = scalar_lea.smem %s0, 21
  %s43 = sld [smem:[%s42]]
  %s44 = scalar_lea.smem %s0, 22
  %s45 = sld [smem:[%s44]]
  %s46 = scalar_lea.smem %s0, 23
  %s47 = sld [smem:[%s46]]
  %s48 = scalar_lea.smem %s0, 24
  %s49 = sld [smem:[%s48]]
  %s50 = scalar_lea.smem %s0, 25
  %s51 = sld [smem:[%s50]]
  %s52 = scalar_lea.smem %s0, 26
  %s53 = sld [smem:[%s52]]
  %s54 = scalar_lea.smem %s0, 27
  %s55 = sld [smem:[%s54]]
  %s56 = scalar_lea.smem %s0, 28
  %s57 = sld [smem:[%s56]]
  %s58 = scalar_lea.smem %s0, 29
  %s59 = sld [smem:[%s58]]
  %s60 = scalar_lea.smem %s0, 30
  %s61 = sld [smem:[%s60]]
  %s62 = scalar_lea.smem %s0, 31
  %s63 = sld [smem:[%s62]]
  %s64 = scalar_lea.smem %s0, 32
  %s65 = sld [smem:[%s64]]
  %s66 = scalar_lea.smem %s0, 33
  %s67 = sld [smem:[%s66]]
  %s68 = scalar_lea.smem %s0, 34
  %s69 = sld [smem:[%s68]]
  %s70 = scalar_lea.smem %s0, 35
  %s71 = sld [smem:[%s70]]
  %s72 = scalar_lea.smem %s0, 36
  %s73 = sld [smem:[%s72]]
  %s74 = scalar_lea.smem %s0, 37
  %s75 = sld [smem:[%s74]]
  %s76 = scalar_lea.smem %s0, 38
  %s77 = sld [smem:[%s76]]
  %s78 = scalar_lea.smem %s0, 39
  %s79 = sld [smem:[%s78]]
  %s80 = sld [smem:[#allocation0]]
  $region189: #{_lambda_.3} parent=0
    _
  %s82 = ssub.s32 1, %s80
  %s83 = scalar_select 0, %s82, %s80
  %v84 = vstv %s13
  %85 = vst [vmem:[#allocation2] sm:$0x1] %v84
  %v86 = vstv %s15
  %87 = vst [vmem:[#allocation3] sm:$0x1] %v86
  loop: start=0, step=1, limit=4
  $region2: #{_lambda_.3} parent=0 // loop_pre_header
    _
  $region3: #{_lambda_.3} parent=0 // loop_header
    %s89 = sphi 0, %s93
    %p90 = scmp.ge.s32.totalorder %s89, 4
    %s99 = sphi 0, %s101
    %s102 = sphi 0, %s99
    %s103 = sphi 0, %s102
    %s119 = sphi 0, %s103
    %s125 = sphi 0, %s127
    %s128 = sphi 0, %s125
    %s129 = sphi 0, %s128
    %s145 = sphi 0, %s129
    %s151 = sphi 0, %s153
    %s154 = sphi 0, %s151
    %s155 = sphi 0, %s154
    %s171 = sphi 0, %s155
    %s177 = sphi 0, %s179
    %s180 = sphi 0, %s177
    %s181 = sphi 0, %s180
    %s197 = sphi 0, %s181
    %s201 = sphi 0, %s201
    %s203 = sphi 0, %s201
    %s204 = sphi 0, %s203
    %s218 = sphi 0, %s204
    %s222 = sphi 0, %s222
    %s224 = sphi 0, %s222
    %s225 = sphi 0, %s224
    %s239 = sphi 0, %s225
    %s243 = sphi 0, %s243
    %s245 = sphi 0, %s243
    %s246 = sphi 0, %s245
    %s260 = sphi 0, %s246
    %s264 = sphi 0, %s264
    %s266 = sphi 0, %s264
    %s267 = sphi 0, %s266
    %s281 = sphi 0, %s267
    %s285 = sphi 0, %s285
    %s287 = sphi 0, %s285
    %s288 = sphi 0, %s287
    %s302 = sphi 0, %s288
    %s306 = sphi 0, %s306
    %s308 = sphi 0, %s306
    %s309 = sphi 0, %s308
    %s323 = sphi 0, %s309
    %s327 = sphi 0, %s327
    %s329 = sphi 0, %s327
    %s330 = sphi 0, %s329
    %s344 = sphi 0, %s330
    %s348 = sphi 0, %s348
    %s350 = sphi 0, %s348
    %s351 = sphi 0, %s350
    %s365 = sphi 0, %s351
    %s369 = sphi 0, %s369
    %s371 = sphi 0, %s369
    %s372 = sphi 0, %s371
    %s386 = sphi 0, %s372
    %s390 = sphi 0, %s390
    %s392 = sphi 0, %s390
    %s393 = sphi 0, %s392
    %s407 = sphi 0, %s393
    %s411 = sphi 0, %s411
    %s413 = sphi 0, %s411
    %s414 = sphi 0, %s413
    %s428 = sphi 0, %s414
    %s432 = sphi 0, %s432
    %s434 = sphi 0, %s432
    %s435 = sphi 0, %s434
    %s449 = sphi 0, %s435
    %s453 = sphi 0, %s453
    %s455 = sphi 0, %s453
    %s456 = sphi 0, %s455
    %s470 = sphi 0, %s456
    %s474 = sphi 0, %s474
    %s476 = sphi 0, %s474
    %s477 = sphi 0, %s476
    %s491 = sphi 0, %s477
    %s495 = sphi 0, %s495
    %s497 = sphi 0, %s495
    %s498 = sphi 0, %s497
    %s512 = sphi 0, %s498
    %s516 = sphi 0, %s516
    %s518 = sphi 0, %s516
    %s519 = sphi 0, %s518
    %s533 = sphi 0, %s519
    %s537 = sphi 0, %s537
    %s539 = sphi 0, %s537
    %s540 = sphi 0, %s539
    %s554 = sphi 0, %s540
    %s558 = sphi 0, %s558
    %s560 = sphi 0, %s558
    %s561 = sphi 0, %s560
    %s575 = sphi 0, %s561
    %s579 = sphi 0, %s579
    %s581 = sphi 0, %s579
    %s582 = sphi 0, %s581
    %s596 = sphi 0, %s582
    %s600 = sphi 0, %s600
    %s602 = sphi 0, %s600
    %s603 = sphi 0, %s602
    %s617 = sphi 0, %s603
    %s621 = sphi 0, %s621
    %s623 = sphi 0, %s621
    %s624 = sphi 0, %s623
    %s638 = sphi 0, %s624
    %s642 = sphi 0, %s642
    %s644 = sphi 0, %s642
    %s645 = sphi 0, %s644
    %s659 = sphi 0, %s645
    %s663 = sphi 0, %s663
    %s665 = sphi 0, %s663
    %s666 = sphi 0, %s665
    %s680 = sphi 0, %s666
    %s684 = sphi 0, %s684
    %s686 = sphi 0, %s684
    %s687 = sphi 0, %s686
    %s701 = sphi 0, %s687
    %s705 = sphi 0, %s705
    %s707 = sphi 0, %s705
    %s708 = sphi 0, %s707
    %s722 = sphi 0, %s708
    %s726 = sphi 0, %s726
    %s728 = sphi 0, %s726
    %s729 = sphi 0, %s728
    %s743 = sphi 0, %s729
    %s747 = sphi 0, %s747
    %s749 = sphi 0, %s747
    %s750 = sphi 0, %s749
    %s764 = sphi 0, %s750
    %s768 = sphi 0, %s768
    %s770 = sphi 0, %s768
    %s771 = sphi 0, %s770
    %s785 = sphi 0, %s771
    %s789 = sphi 0, %s789
    %s791 = sphi 0, %s789
    %s792 = sphi 0, %s791
    %s806 = sphi 0, %s792
    %s810 = sphi 0, %s810
    %s812 = sphi 0, %s810
    %s813 = sphi 0, %s812
    %s827 = sphi 0, %s813
    %s831 = sphi 0, %s831
    %s833 = sphi 0, %s831
    %s834 = sphi 0, %s833
    %s848 = sphi 0, %s834
    %s852 = sphi 0, %s852
    %s854 = sphi 0, %s852
    %s855 = sphi 0, %s854
    %s869 = sphi 0, %s855
    %s873 = sphi 0, %s873
    %s875 = sphi 0, %s873
    %s876 = sphi 0, %s875
    %s890 = sphi 0, %s876
    %s894 = sphi 0, %s894
    %s896 = sphi 0, %s894
    %s897 = sphi 0, %s896
    %s911 = sphi 0, %s897
    %s915 = sphi 0, %s915
    %s917 = sphi 0, %s915
    %s918 = sphi 0, %s917
    %s932 = sphi 0, %s918
    %s938 = sphi 0, %s940
    %s941 = sphi 0, %s938
    %s942 = sphi 0, %s941
    %s958 = sphi 0, %s942
  $region4: #{_lambda_.3} parent=0 // loop_header_branch
    %92 = sbr.rel (%p90) target = $region8
  $region5: #{_lambda_.3} parent=0 // loop_body
    %s94 = ssub.s32 %s89, 1
    %s95 = ssub.s32 %s89, 2
    %s96 = sadd.s32 %s89, 1
    %s97 = ssub.s32 %s89, %s96
    %p98 = scmp.eq.s32.totalorder %s97, 0
    %s100 = sadd.s32 %s99, 1
    %s101 = scalar_select %p98, %s99, %s100
    %p104 = pneg %p98
    %p105 = scmp.eq.s32.totalorder %s89, 1
    %p106 = por %p104, %p105
    %p107 = scmp.ne.s32.totalorder %s99, %s102
    %p108 = scmp.eq.s32.totalorder %s89, 0
    %p109 = por %p107, %p108
    %p110 = scmp.ne.s32.totalorder %s99, %s102
    %p111 = scmp.eq.s32.totalorder %s94, 1
    %p112 = por %p110, %p111
    %p113 = scmp.ne.s32.totalorder %s102, %s103
    %p114 = scmp.eq.s32.totalorder %s94, 0
    %p115 = por %p113, %p114
    %p116 = scmp.ne.s32.totalorder %s102, %s103
    %p117 = scmp.eq.s32.totalorder %s95, 1
    %p118 = por %p116, %p117
    %p120 = scmp.ne.s32.totalorder %s103, %s119
    %p121 = scmp.eq.s32.totalorder %s95, 0
    %p122 = por %p120, %p121
    %s123 = ssub.s32 %s89, %s96
    %p124 = scmp.eq.s32.totalorder %s123, 0
    %s126 = sadd.s32 %s125, 1
    %s127 = scalar_select %p124, %s125, %s126
    %p130 = pneg %p124
    %p131 = scmp.eq.s32.totalorder %s89, 1
    %p132 = por %p130, %p131
    %p133 = scmp.ne.s32.totalorder %s125, %s128
    %p134 = scmp.eq.s32.totalorder %s89, 0
    %p135 = por %p133, %p134
    %p136 = scmp.ne.s32.totalorder %s125, %s128
    %p137 = scmp.eq.s32.totalorder %s94, 1
    %p138 = por %p136, %p137
    %p139 = scmp.ne.s32.totalorder %s128, %s129
    %p140 = scmp.eq.s32.totalorder %s94, 0
    %p141 = por %p139, %p140
    %p142 = scmp.ne.s32.totalorder %s128, %s129
    %p143 = scmp.eq.s32.totalorder %s95, 1
    %p144 = por %p142, %p143
    %p146 = scmp.ne.s32.totalorder %s129, %s145
    %p147 = scmp.eq.s32.totalorder %s95, 0
    %p148 = por %p146, %p147
    %s149 = ssub.s32 %s89, %s96
    %p150 = scmp.eq.s32.totalorder %s149, 0
    %s152 = sadd.s32 %s151, 1
    %s153 = scalar_select %p150, %s151, %s152
    %p156 = pneg %p150
    %p157 = scmp.eq.s32.totalorder %s89, 1
    %p158 = por %p156, %p157
    %p159 = scmp.ne.s32.totalorder %s151, %s154
    %p160 = scmp.eq.s32.totalorder %s89, 0
    %p161 = por %p159, %p160
    %p162 = scmp.ne.s32.totalorder %s151, %s154
    %p163 = scmp.eq.s32.totalorder %s94, 1
    %p164 = por %p162, %p163
    %p165 = scmp.ne.s32.totalorder %s154, %s155
    %p166 = scmp.eq.s32.totalorder %s94, 0
    %p167 = por %p165, %p166
    %p168 = scmp.ne.s32.totalorder %s154, %s155
    %p169 = scmp.eq.s32.totalorder %s95, 1
    %p170 = por %p168, %p169
    %p172 = scmp.ne.s32.totalorder %s155, %s171
    %p173 = scmp.eq.s32.totalorder %s95, 0
    %p174 = por %p172, %p173
    %s175 = ssub.s32 %s89, %s96
    %p176 = scmp.eq.s32.totalorder %s175, 0
    %s178 = sadd.s32 %s177, 1
    %s179 = scalar_select %p176, %s177, %s178
    %p182 = pneg %p176
    %p183 = scmp.eq.s32.totalorder %s89, 1
    %p184 = por %p182, %p183
    %p185 = scmp.ne.s32.totalorder %s177, %s180
    %p186 = scmp.eq.s32.totalorder %s89, 0
    %p187 = por %p185, %p186
    %p188 = scmp.ne.s32.totalorder %s177, %s180
    %p189 = scmp.eq.s32.totalorder %s94, 1
    %p190 = por %p188, %p189
    %p191 = scmp.ne.s32.totalorder %s180, %s181
    %p192 = scmp.eq.s32.totalorder %s94, 0
    %p193 = por %p191, %p192
    %p194 = scmp.ne.s32.totalorder %s180, %s181
    %p195 = scmp.eq.s32.totalorder %s95, 1
    %p196 = por %p194, %p195
    %p198 = scmp.ne.s32.totalorder %s181, %s197
    %p199 = scmp.eq.s32.totalorder %s95, 0
    %p200 = por %p198, %p199
    %s202 = sadd.s32 %s201, 1
    %p205 = scmp.eq.s32.totalorder %s89, 1
    %p206 = scmp.ne.s32.totalorder %s201, %s203
    %p207 = scmp.eq.s32.totalorder %s89, 0
    %p208 = por %p206, %p207
    %p209 = scmp.ne.s32.totalorder %s201, %s203
    %p210 = scmp.eq.s32.totalorder %s94, 1
    %p211 = por %p209, %p210
    %p212 = scmp.ne.s32.totalorder %s203, %s204
    %p213 = scmp.eq.s32.totalorder %s94, 0
    %p214 = por %p212, %p213
    %p215 = scmp.ne.s32.totalorder %s203, %s204
    %p216 = scmp.eq.s32.totalorder %s95, 1
    %p217 = por %p215, %p216
    %p219 = scmp.ne.s32.totalorder %s204, %s218
    %p220 = scmp.eq.s32.totalorder %s95, 0
    %p221 = por %p219, %p220
    %s223 = sadd.s32 %s222, 1
    %p226 = scmp.eq.s32.totalorder %s89, 1
    %p227 = scmp.ne.s32.totalorder %s222, %s224
    %p228 = scmp.eq.s32.totalorder %s89, 0
    %p229 = por %p227, %p228
    %p230 = scmp.ne.s32.totalorder %s222, %s224
    %p231 = scmp.eq.s32.totalorder %s94, 1
    %p232 = por %p230, %p231
    %p233 = scmp.ne.s32.totalorder %s224, %s225
    %p234 = scmp.eq.s32.totalorder %s94, 0
    %p235 = por %p233, %p234
    %p236 = scmp.ne.s32.totalorder %s224, %s225
    %p237 = scmp.eq.s32.totalorder %s95, 1
    %p238 = por %p236, %p237
    %p240 = scmp.ne.s32.totalorder %s225, %s239
    %p241 = scmp.eq.s32.totalorder %s95, 0
    %p242 = por %p240, %p241
    %s244 = sadd.s32 %s243, 1
    %p247 = scmp.eq.s32.totalorder %s89, 1
    %p248 = scmp.ne.s32.totalorder %s243, %s245
    %p249 = scmp.eq.s32.totalorder %s89, 0
    %p250 = por %p248, %p249
    %p251 = scmp.ne.s32.totalorder %s243, %s245
    %p252 = scmp.eq.s32.totalorder %s94, 1
    %p253 = por %p251, %p252
    %p254 = scmp.ne.s32.totalorder %s245, %s246
    %p255 = scmp.eq.s32.totalorder %s94, 0
    %p256 = por %p254, %p255
    %p257 = scmp.ne.s32.totalorder %s245, %s246
    %p258 = scmp.eq.s32.totalorder %s95, 1
    %p259 = por %p257, %p258
    %p261 = scmp.ne.s32.totalorder %s246, %s260
    %p262 = scmp.eq.s32.totalorder %s95, 0
    %p263 = por %p261, %p262
    %s265 = sadd.s32 %s264, 1
    %p268 = scmp.eq.s32.totalorder %s89, 1
    %p269 = scmp.ne.s32.totalorder %s264, %s266
    %p270 = scmp.eq.s32.totalorder %s89, 0
    %p271 = por %p269, %p270
    %p272 = scmp.ne.s32.totalorder %s264, %s266
    %p273 = scmp.eq.s32.totalorder %s94, 1
    %p274 = por %p272, %p273
    %p275 = scmp.ne.s32.totalorder %s266, %s267
    %p276 = scmp.eq.s32.totalorder %s94, 0
    %p277 = por %p275, %p276
    %p278 = scmp.ne.s32.totalorder %s266, %s267
    %p279 = scmp.eq.s32.totalorder %s95, 1
    %p280 = por %p278, %p279
    %p282 = scmp.ne.s32.totalorder %s267, %s281
    %p283 = scmp.eq.s32.totalorder %s95, 0
    %p284 = por %p282, %p283
    %s286 = sadd.s32 %s285, 1
    %p289 = scmp.eq.s32.totalorder %s89, 1
    %p290 = scmp.ne.s32.totalorder %s285, %s287
    %p291 = scmp.eq.s32.totalorder %s89, 0
    %p292 = por %p290, %p291
    %p293 = scmp.ne.s32.totalorder %s285, %s287
    %p294 = scmp.eq.s32.totalorder %s94, 1
    %p295 = por %p293, %p294
    %p296 = scmp.ne.s32.totalorder %s287, %s288
    %p297 = scmp.eq.s32.totalorder %s94, 0
    %p298 = por %p296, %p297
    %p299 = scmp.ne.s32.totalorder %s287, %s288
    %p300 = scmp.eq.s32.totalorder %s95, 1
    %p301 = por %p299, %p300
    %p303 = scmp.ne.s32.totalorder %s288, %s302
    %p304 = scmp.eq.s32.totalorder %s95, 0
    %p305 = por %p303, %p304
    %s307 = sadd.s32 %s306, 1
    %p310 = scmp.eq.s32.totalorder %s89, 1
    %p311 = scmp.ne.s32.totalorder %s306, %s308
    %p312 = scmp.eq.s32.totalorder %s89, 0
    %p313 = por %p311, %p312
    %p314 = scmp.ne.s32.totalorder %s306, %s308
    %p315 = scmp.eq.s32.totalorder %s94, 1
    %p316 = por %p314, %p315
    %p317 = scmp.ne.s32.totalorder %s308, %s309
    %p318 = scmp.eq.s32.totalorder %s94, 0
    %p319 = por %p317, %p318
    %p320 = scmp.ne.s32.totalorder %s308, %s309
    %p321 = scmp.eq.s32.totalorder %s95, 1
    %p322 = por %p320, %p321
    %p324 = scmp.ne.s32.totalorder %s309, %s323
    %p325 = scmp.eq.s32.totalorder %s95, 0
    %p326 = por %p324, %p325
    %s328 = sadd.s32 %s327, 1
    %p331 = scmp.eq.s32.totalorder %s89, 1
    %p332 = scmp.ne.s32.totalorder %s327, %s329
    %p333 = scmp.eq.s32.totalorder %s89, 0
    %p334 = por %p332, %p333
    %p335 = scmp.ne.s32.totalorder %s327, %s329
    %p336 = scmp.eq.s32.totalorder %s94, 1
    %p337 = por %p335, %p336
    %p338 = scmp.ne.s32.totalorder %s329, %s330
    %p339 = scmp.eq.s32.totalorder %s94, 0
    %p340 = por %p338, %p339
    %p341 = scmp.ne.s32.totalorder %s329, %s330
    %p342 = scmp.eq.s32.totalorder %s95, 1
    %p343 = por %p341, %p342
    %p345 = scmp.ne.s32.totalorder %s330, %s344
    %p346 = scmp.eq.s32.totalorder %s95, 0
    %p347 = por %p345, %p346
    %s349 = sadd.s32 %s348, 1
    %p352 = scmp.eq.s32.totalorder %s89, 1
    %p353 = scmp.ne.s32.totalorder %s348, %s350
    %p354 = scmp.eq.s32.totalorder %s89, 0
    %p355 = por %p353, %p354
    %p356 = scmp.ne.s32.totalorder %s348, %s350
    %p357 = scmp.eq.s32.totalorder %s94, 1
    %p358 = por %p356, %p357
    %p359 = scmp.ne.s32.totalorder %s350, %s351
    %p360 = scmp.eq.s32.totalorder %s94, 0
    %p361 = por %p359, %p360
    %p362 = scmp.ne.s32.totalorder %s350, %s351
    %p363 = scmp.eq.s32.totalorder %s95, 1
    %p364 = por %p362, %p363
    %p366 = scmp.ne.s32.totalorder %s351, %s365
    %p367 = scmp.eq.s32.totalorder %s95, 0
    %p368 = por %p366, %p367
    %s370 = sadd.s32 %s369, 1
    %p373 = scmp.eq.s32.totalorder %s89, 1
    %p374 = scmp.ne.s32.totalorder %s369, %s371
    %p375 = scmp.eq.s32.totalorder %s89, 0
    %p376 = por %p374, %p375
    %p377 = scmp.ne.s32.totalorder %s369, %s371
    %p378 = scmp.eq.s32.totalorder %s94, 1
    %p379 = por %p377, %p378
    %p380 = scmp.ne.s32.totalorder %s371, %s372
    %p381 = scmp.eq.s32.totalorder %s94, 0
    %p382 = por %p380, %p381
    %p383 = scmp.ne.s32.totalorder %s371, %s372
    %p384 = scmp.eq.s32.totalorder %s95, 1
    %p385 = por %p383, %p384
    %p387 = scmp.ne.s32.totalorder %s372, %s386
    %p388 = scmp.eq.s32.totalorder %s95, 0
    %p389 = por %p387, %p388
    %s391 = sadd.s32 %s390, 1
    %p394 = scmp.eq.s32.totalorder %s89, 1
    %p395 = scmp.ne.s32.totalorder %s390, %s392
    %p396 = scmp.eq.s32.totalorder %s89, 0
    %p397 = por %p395, %p396
    %p398 = scmp.ne.s32.totalorder %s390, %s392
    %p399 = scmp.eq.s32.totalorder %s94, 1
    %p400 = por %p398, %p399
    %p401 = scmp.ne.s32.totalorder %s392, %s393
    %p402 = scmp.eq.s32.totalorder %s94, 0
    %p403 = por %p401, %p402
    %p404 = scmp.ne.s32.totalorder %s392, %s393
    %p405 = scmp.eq.s32.totalorder %s95, 1
    %p406 = por %p404, %p405
    %p408 = scmp.ne.s32.totalorder %s393, %s407
    %p409 = scmp.eq.s32.totalorder %s95, 0
    %p410 = por %p408, %p409
    %s412 = sadd.s32 %s411, 1
    %p415 = scmp.eq.s32.totalorder %s89, 1
    %p416 = scmp.ne.s32.totalorder %s411, %s413
    %p417 = scmp.eq.s32.totalorder %s89, 0
    %p418 = por %p416, %p417
    %p419 = scmp.ne.s32.totalorder %s411, %s413
    %p420 = scmp.eq.s32.totalorder %s94, 1
    %p421 = por %p419, %p420
    %p422 = scmp.ne.s32.totalorder %s413, %s414
    %p423 = scmp.eq.s32.totalorder %s94, 0
    %p424 = por %p422, %p423
    %p425 = scmp.ne.s32.totalorder %s413, %s414
    %p426 = scmp.eq.s32.totalorder %s95, 1
    %p427 = por %p425, %p426
    %p429 = scmp.ne.s32.totalorder %s414, %s428
    %p430 = scmp.eq.s32.totalorder %s95, 0
    %p431 = por %p429, %p430
    %s433 = sadd.s32 %s432, 1
    %p436 = scmp.eq.s32.totalorder %s89, 1
    %p437 = scmp.ne.s32.totalorder %s432, %s434
    %p438 = scmp.eq.s32.totalorder %s89, 0
    %p439 = por %p437, %p438
    %p440 = scmp.ne.s32.totalorder %s432, %s434
    %p441 = scmp.eq.s32.totalorder %s94, 1
    %p442 = por %p440, %p441
    %p443 = scmp.ne.s32.totalorder %s434, %s435
    %p444 = scmp.eq.s32.totalorder %s94, 0
    %p445 = por %p443, %p444
    %p446 = scmp.ne.s32.totalorder %s434, %s435
    %p447 = scmp.eq.s32.totalorder %s95, 1
    %p448 = por %p446, %p447
    %p450 = scmp.ne.s32.totalorder %s435, %s449
    %p451 = scmp.eq.s32.totalorder %s95, 0
    %p452 = por %p450, %p451
    %s454 = sadd.s32 %s453, 1
    %p457 = scmp.eq.s32.totalorder %s89, 1
    %p458 = scmp.ne.s32.totalorder %s453, %s455
    %p459 = scmp.eq.s32.totalorder %s89, 0
    %p460 = por %p458, %p459
    %p461 = scmp.ne.s32.totalorder %s453, %s455
    %p462 = scmp.eq.s32.totalorder %s94, 1
    %p463 = por %p461, %p462
    %p464 = scmp.ne.s32.totalorder %s455, %s456
    %p465 = scmp.eq.s32.totalorder %s94, 0
    %p466 = por %p464, %p465
    %p467 = scmp.ne.s32.totalorder %s455, %s456
    %p468 = scmp.eq.s32.totalorder %s95, 1
    %p469 = por %p467, %p468
    %p471 = scmp.ne.s32.totalorder %s456, %s470
    %p472 = scmp.eq.s32.totalorder %s95, 0
    %p473 = por %p471, %p472
    %s475 = sadd.s32 %s474, 1
    %p478 = scmp.eq.s32.totalorder %s89, 1
    %p479 = scmp.ne.s32.totalorder %s474, %s476
    %p480 = scmp.eq.s32.totalorder %s89, 0
    %p481 = por %p479, %p480
    %p482 = scmp.ne.s32.totalorder %s474, %s476
    %p483 = scmp.eq.s32.totalorder %s94, 1
    %p484 = por %p482, %p483
    %p485 = scmp.ne.s32.totalorder %s476, %s477
    %p486 = scmp.eq.s32.totalorder %s94, 0
    %p487 = por %p485, %p486
    %p488 = scmp.ne.s32.totalorder %s476, %s477
    %p489 = scmp.eq.s32.totalorder %s95, 1
    %p490 = por %p488, %p489
    %p492 = scmp.ne.s32.totalorder %s477, %s491
    %p493 = scmp.eq.s32.totalorder %s95, 0
    %p494 = por %p492, %p493
    %s496 = sadd.s32 %s495, 1
    %p499 = scmp.eq.s32.totalorder %s89, 1
    %p500 = scmp.ne.s32.totalorder %s495, %s497
    %p501 = scmp.eq.s32.totalorder %s89, 0
    %p502 = por %p500, %p501
    %p503 = scmp.ne.s32.totalorder %s495, %s497
    %p504 = scmp.eq.s32.totalorder %s94, 1
    %p505 = por %p503, %p504
    %p506 = scmp.ne.s32.totalorder %s497, %s498
    %p507 = scmp.eq.s32.totalorder %s94, 0
    %p508 = por %p506, %p507
    %p509 = scmp.ne.s32.totalorder %s497, %s498
    %p510 = scmp.eq.s32.totalorder %s95, 1
    %p511 = por %p509, %p510
    %p513 = scmp.ne.s32.totalorder %s498, %s512
    %p514 = scmp.eq.s32.totalorder %s95, 0
    %p515 = por %p513, %p514
    %s517 = sadd.s32 %s516, 1
    %p520 = scmp.eq.s32.totalorder %s89, 1
    %p521 = scmp.ne.s32.totalorder %s516, %s518
    %p522 = scmp.eq.s32.totalorder %s89, 0
    %p523 = por %p521, %p522
    %p524 = scmp.ne.s32.totalorder %s516, %s518
    %p525 = scmp.eq.s32.totalorder %s94, 1
    %p526 = por %p524, %p525
    %p527 = scmp.ne.s32.totalorder %s518, %s519
    %p528 = scmp.eq.s32.totalorder %s94, 0
    %p529 = por %p527, %p528
    %p530 = scmp.ne.s32.totalorder %s518, %s519
    %p531 = scmp.eq.s32.totalorder %s95, 1
    %p532 = por %p530, %p531
    %p534 = scmp.ne.s32.totalorder %s519, %s533
    %p535 = scmp.eq.s32.totalorder %s95, 0
    %p536 = por %p534, %p535
    %s538 = sadd.s32 %s537, 1
    %p541 = scmp.eq.s32.totalorder %s89, 1
    %p542 = scmp.ne.s32.totalorder %s537, %s539
    %p543 = scmp.eq.s32.totalorder %s89, 0
    %p544 = por %p542, %p543
    %p545 = scmp.ne.s32.totalorder %s537, %s539
    %p546 = scmp.eq.s32.totalorder %s94, 1
    %p547 = por %p545, %p546
    %p548 = scmp.ne.s32.totalorder %s539, %s540
    %p549 = scmp.eq.s32.totalorder %s94, 0
    %p550 = por %p548, %p549
    %p551 = scmp.ne.s32.totalorder %s539, %s540
    %p552 = scmp.eq.s32.totalorder %s95, 1
    %p553 = por %p551, %p552
    %p555 = scmp.ne.s32.totalorder %s540, %s554
    %p556 = scmp.eq.s32.totalorder %s95, 0
    %p557 = por %p555, %p556
    %s559 = sadd.s32 %s558, 1
    %p562 = scmp.eq.s32.totalorder %s89, 1
    %p563 = scmp.ne.s32.totalorder %s558, %s560
    %p564 = scmp.eq.s32.totalorder %s89, 0
    %p565 = por %p563, %p564
    %p566 = scmp.ne.s32.totalorder %s558, %s560
    %p567 = scmp.eq.s32.totalorder %s94, 1
    %p568 = por %p566, %p567
    %p569 = scmp.ne.s32.totalorder %s560, %s561
    %p570 = scmp.eq.s32.totalorder %s94, 0
    %p571 = por %p569, %p570
    %p572 = scmp.ne.s32.totalorder %s560, %s561
    %p573 = scmp.eq.s32.totalorder %s95, 1
    %p574 = por %p572, %p573
    %p576 = scmp.ne.s32.totalorder %s561, %s575
    %p577 = scmp.eq.s32.totalorder %s95, 0
    %p578 = por %p576, %p577
    %s580 = sadd.s32 %s579, 1
    %p583 = scmp.eq.s32.totalorder %s89, 1
    %p584 = scmp.ne.s32.totalorder %s579, %s581
    %p585 = scmp.eq.s32.totalorder %s89, 0
    %p586 = por %p584, %p585
    %p587 = scmp.ne.s32.totalorder %s579, %s581
    %p588 = scmp.eq.s32.totalorder %s94, 1
    %p589 = por %p587, %p588
    %p590 = scmp.ne.s32.totalorder %s581, %s582
    %p591 = scmp.eq.s32.totalorder %s94, 0
    %p592 = por %p590, %p591
    %p593 = scmp.ne.s32.totalorder %s581, %s582
    %p594 = scmp.eq.s32.totalorder %s95, 1
    %p595 = por %p593, %p594
    %p597 = scmp.ne.s32.totalorder %s582, %s596
    %p598 = scmp.eq.s32.totalorder %s95, 0
    %p599 = por %p597, %p598
    %s601 = sadd.s32 %s600, 1
    %p604 = scmp.eq.s32.totalorder %s89, 1
    %p605 = scmp.ne.s32.totalorder %s600, %s602
    %p606 = scmp.eq.s32.totalorder %s89, 0
    %p607 = por %p605, %p606
    %p608 = scmp.ne.s32.totalorder %s600, %s602
    %p609 = scmp.eq.s32.totalorder %s94, 1
    %p610 = por %p608, %p609
    %p611 = scmp.ne.s32.totalorder %s602, %s603
    %p612 = scmp.eq.s32.totalorder %s94, 0
    %p613 = por %p611, %p612
    %p614 = scmp.ne.s32.totalorder %s602, %s603
    %p615 = scmp.eq.s32.totalorder %s95, 1
    %p616 = por %p614, %p615
    %p618 = scmp.ne.s32.totalorder %s603, %s617
    %p619 = scmp.eq.s32.totalorder %s95, 0
    %p620 = por %p618, %p619
    %s622 = sadd.s32 %s621, 1
    %p625 = scmp.eq.s32.totalorder %s89, 1
    %p626 = scmp.ne.s32.totalorder %s621, %s623
    %p627 = scmp.eq.s32.totalorder %s89, 0
    %p628 = por %p626, %p627
    %p629 = scmp.ne.s32.totalorder %s621, %s623
    %p630 = scmp.eq.s32.totalorder %s94, 1
    %p631 = por %p629, %p630
    %p632 = scmp.ne.s32.totalorder %s623, %s624
    %p633 = scmp.eq.s32.totalorder %s94, 0
    %p634 = por %p632, %p633
    %p635 = scmp.ne.s32.totalorder %s623, %s624
    %p636 = scmp.eq.s32.totalorder %s95, 1
    %p637 = por %p635, %p636
    %p639 = scmp.ne.s32.totalorder %s624, %s638
    %p640 = scmp.eq.s32.totalorder %s95, 0
    %p641 = por %p639, %p640
    %s643 = sadd.s32 %s642, 1
    %p646 = scmp.eq.s32.totalorder %s89, 1
    %p647 = scmp.ne.s32.totalorder %s642, %s644
    %p648 = scmp.eq.s32.totalorder %s89, 0
    %p649 = por %p647, %p648
    %p650 = scmp.ne.s32.totalorder %s642, %s644
    %p651 = scmp.eq.s32.totalorder %s94, 1
    %p652 = por %p650, %p651
    %p653 = scmp.ne.s32.totalorder %s644, %s645
    %p654 = scmp.eq.s32.totalorder %s94, 0
    %p655 = por %p653, %p654
    %p656 = scmp.ne.s32.totalorder %s644, %s645
    %p657 = scmp.eq.s32.totalorder %s95, 1
    %p658 = por %p656, %p657
    %p660 = scmp.ne.s32.totalorder %s645, %s659
    %p661 = scmp.eq.s32.totalorder %s95, 0
    %p662 = por %p660, %p661
    %s664 = sadd.s32 %s663, 1
    %p667 = scmp.eq.s32.totalorder %s89, 1
    %p668 = scmp.ne.s32.totalorder %s663, %s665
    %p669 = scmp.eq.s32.totalorder %s89, 0
    %p670 = por %p668, %p669
    %p671 = scmp.ne.s32.totalorder %s663, %s665
    %p672 = scmp.eq.s32.totalorder %s94, 1
    %p673 = por %p671, %p672
    %p674 = scmp.ne.s32.totalorder %s665, %s666
    %p675 = scmp.eq.s32.totalorder %s94, 0
    %p676 = por %p674, %p675
    %p677 = scmp.ne.s32.totalorder %s665, %s666
    %p678 = scmp.eq.s32.totalorder %s95, 1
    %p679 = por %p677, %p678
    %p681 = scmp.ne.s32.totalorder %s666, %s680
    %p682 = scmp.eq.s32.totalorder %s95, 0
    %p683 = por %p681, %p682
    %s685 = sadd.s32 %s684, 1
    %p688 = scmp.eq.s32.totalorder %s89, 1
    %p689 = scmp.ne.s32.totalorder %s684, %s686
    %p690 = scmp.eq.s32.totalorder %s89, 0
    %p691 = por %p689, %p690
    %p692 = scmp.ne.s32.totalorder %s684, %s686
    %p693 = scmp.eq.s32.totalorder %s94, 1
    %p694 = por %p692, %p693
    %p695 = scmp.ne.s32.totalorder %s686, %s687
    %p696 = scmp.eq.s32.totalorder %s94, 0
    %p697 = por %p695, %p696
    %p698 = scmp.ne.s32.totalorder %s686, %s687
    %p699 = scmp.eq.s32.totalorder %s95, 1
    %p700 = por %p698, %p699
    %p702 = scmp.ne.s32.totalorder %s687, %s701
    %p703 = scmp.eq.s32.totalorder %s95, 0
    %p704 = por %p702, %p703
    %s706 = sadd.s32 %s705, 1
    %p709 = scmp.eq.s32.totalorder %s89, 1
    %p710 = scmp.ne.s32.totalorder %s705, %s707
    %p711 = scmp.eq.s32.totalorder %s89, 0
    %p712 = por %p710, %p711
    %p713 = scmp.ne.s32.totalorder %s705, %s707
    %p714 = scmp.eq.s32.totalorder %s94, 1
    %p715 = por %p713, %p714
    %p716 = scmp.ne.s32.totalorder %s707, %s708
    %p717 = scmp.eq.s32.totalorder %s94, 0
    %p718 = por %p716, %p717
    %p719 = scmp.ne.s32.totalorder %s707, %s708
    %p720 = scmp.eq.s32.totalorder %s95, 1
    %p721 = por %p719, %p720
    %p723 = scmp.ne.s32.totalorder %s708, %s722
    %p724 = scmp.eq.s32.totalorder %s95, 0
    %p725 = por %p723, %p724
    %s727 = sadd.s32 %s726, 1
    %p730 = scmp.eq.s32.totalorder %s89, 1
    %p731 = scmp.ne.s32.totalorder %s726, %s728
    %p732 = scmp.eq.s32.totalorder %s89, 0
    %p733 = por %p731, %p732
    %p734 = scmp.ne.s32.totalorder %s726, %s728
    %p735 = scmp.eq.s32.totalorder %s94, 1
    %p736 = por %p734, %p735
    %p737 = scmp.ne.s32.totalorder %s728, %s729
    %p738 = scmp.eq.s32.totalorder %s94, 0
    %p739 = por %p737, %p738
    %p740 = scmp.ne.s32.totalorder %s728, %s729
    %p741 = scmp.eq.s32.totalorder %s95, 1
    %p742 = por %p740, %p741
    %p744 = scmp.ne.s32.totalorder %s729, %s743
    %p745 = scmp.eq.s32.totalorder %s95, 0
    %p746 = por %p744, %p745
    %s748 = sadd.s32 %s747, 1
    %p751 = scmp.eq.s32.totalorder %s89, 1
    %p752 = scmp.ne.s32.totalorder %s747, %s749
    %p753 = scmp.eq.s32.totalorder %s89, 0
    %p754 = por %p752, %p753
    %p755 = scmp.ne.s32.totalorder %s747, %s749
    %p756 = scmp.eq.s32.totalorder %s94, 1
    %p757 = por %p755, %p756
    %p758 = scmp.ne.s32.totalorder %s749, %s750
    %p759 = scmp.eq.s32.totalorder %s94, 0
    %p760 = por %p758, %p759
    %p761 = scmp.ne.s32.totalorder %s749, %s750
    %p762 = scmp.eq.s32.totalorder %s95, 1
    %p763 = por %p761, %p762
    %p765 = scmp.ne.s32.totalorder %s750, %s764
    %p766 = scmp.eq.s32.totalorder %s95, 0
    %p767 = por %p765, %p766
    %s769 = sadd.s32 %s768, 1
    %p772 = scmp.eq.s32.totalorder %s89, 1
    %p773 = scmp.ne.s32.totalorder %s768, %s770
    %p774 = scmp.eq.s32.totalorder %s89, 0
    %p775 = por %p773, %p774
    %p776 = scmp.ne.s32.totalorder %s768, %s770
    %p777 = scmp.eq.s32.totalorder %s94, 1
    %p778 = por %p776, %p777
    %p779 = scmp.ne.s32.totalorder %s770, %s771
    %p780 = scmp.eq.s32.totalorder %s94, 0
    %p781 = por %p779, %p780
    %p782 = scmp.ne.s32.totalorder %s770, %s771
    %p783 = scmp.eq.s32.totalorder %s95, 1
    %p784 = por %p782, %p783
    %p786 = scmp.ne.s32.totalorder %s771, %s785
    %p787 = scmp.eq.s32.totalorder %s95, 0
    %p788 = por %p786, %p787
    %s790 = sadd.s32 %s789, 1
    %p793 = scmp.eq.s32.totalorder %s89, 1
    %p794 = scmp.ne.s32.totalorder %s789, %s791
    %p795 = scmp.eq.s32.totalorder %s89, 0
    %p796 = por %p794, %p795
    %p797 = scmp.ne.s32.totalorder %s789, %s791
    %p798 = scmp.eq.s32.totalorder %s94, 1
    %p799 = por %p797, %p798
    %p800 = scmp.ne.s32.totalorder %s791, %s792
    %p801 = scmp.eq.s32.totalorder %s94, 0
    %p802 = por %p800, %p801
    %p803 = scmp.ne.s32.totalorder %s791, %s792
    %p804 = scmp.eq.s32.totalorder %s95, 1
    %p805 = por %p803, %p804
    %p807 = scmp.ne.s32.totalorder %s792, %s806
    %p808 = scmp.eq.s32.totalorder %s95, 0
    %p809 = por %p807, %p808
    %s811 = sadd.s32 %s810, 1
    %p814 = scmp.eq.s32.totalorder %s89, 1
    %p815 = scmp.ne.s32.totalorder %s810, %s812
    %p816 = scmp.eq.s32.totalorder %s89, 0
    %p817 = por %p815, %p816
    %p818 = scmp.ne.s32.totalorder %s810, %s812
    %p819 = scmp.eq.s32.totalorder %s94, 1
    %p820 = por %p818, %p819
    %p821 = scmp.ne.s32.totalorder %s812, %s813
    %p822 = scmp.eq.s32.totalorder %s94, 0
    %p823 = por %p821, %p822
    %p824 = scmp.ne.s32.totalorder %s812, %s813
    %p825 = scmp.eq.s32.totalorder %s95, 1
    %p826 = por %p824, %p825
    %p828 = scmp.ne.s32.totalorder %s813, %s827
    %p829 = scmp.eq.s32.totalorder %s95, 0
    %p830 = por %p828, %p829
    %s832 = sadd.s32 %s831, 1
    %p835 = scmp.eq.s32.totalorder %s89, 1
    %p836 = scmp.ne.s32.totalorder %s831, %s833
    %p837 = scmp.eq.s32.totalorder %s89, 0
    %p838 = por %p836, %p837
    %p839 = scmp.ne.s32.totalorder %s831, %s833
    %p840 = scmp.eq.s32.totalorder %s94, 1
    %p841 = por %p839, %p840
    %p842 = scmp.ne.s32.totalorder %s833, %s834
    %p843 = scmp.eq.s32.totalorder %s94, 0
    %p844 = por %p842, %p843
    %p845 = scmp.ne.s32.totalorder %s833, %s834
    %p846 = scmp.eq.s32.totalorder %s95, 1
    %p847 = por %p845, %p846
    %p849 = scmp.ne.s32.totalorder %s834, %s848
    %p850 = scmp.eq.s32.totalorder %s95, 0
    %p851 = por %p849, %p850
    %s853 = sadd.s32 %s852, 1
    %p856 = scmp.eq.s32.totalorder %s89, 1
    %p857 = scmp.ne.s32.totalorder %s852, %s854
    %p858 = scmp.eq.s32.totalorder %s89, 0
    %p859 = por %p857, %p858
    %p860 = scmp.ne.s32.totalorder %s852, %s854
    %p861 = scmp.eq.s32.totalorder %s94, 1
    %p862 = por %p860, %p861
    %p863 = scmp.ne.s32.totalorder %s854, %s855
    %p864 = scmp.eq.s32.totalorder %s94, 0
    %p865 = por %p863, %p864
    %p866 = scmp.ne.s32.totalorder %s854, %s855
    %p867 = scmp.eq.s32.totalorder %s95, 1
    %p868 = por %p866, %p867
    %p870 = scmp.ne.s32.totalorder %s855, %s869
    %p871 = scmp.eq.s32.totalorder %s95, 0
    %p872 = por %p870, %p871
    %s874 = sadd.s32 %s873, 1
    %p877 = scmp.eq.s32.totalorder %s89, 1
    %p878 = scmp.ne.s32.totalorder %s873, %s875
    %p879 = scmp.eq.s32.totalorder %s89, 0
    %p880 = por %p878, %p879
    %p881 = scmp.ne.s32.totalorder %s873, %s875
    %p882 = scmp.eq.s32.totalorder %s94, 1
    %p883 = por %p881, %p882
    %p884 = scmp.ne.s32.totalorder %s875, %s876
    %p885 = scmp.eq.s32.totalorder %s94, 0
    %p886 = por %p884, %p885
    %p887 = scmp.ne.s32.totalorder %s875, %s876
    %p888 = scmp.eq.s32.totalorder %s95, 1
    %p889 = por %p887, %p888
    %p891 = scmp.ne.s32.totalorder %s876, %s890
    %p892 = scmp.eq.s32.totalorder %s95, 0
    %p893 = por %p891, %p892
    %s895 = sadd.s32 %s894, 1
    %p898 = scmp.eq.s32.totalorder %s89, 1
    %p899 = scmp.ne.s32.totalorder %s894, %s896
    %p900 = scmp.eq.s32.totalorder %s89, 0
    %p901 = por %p899, %p900
    %p902 = scmp.ne.s32.totalorder %s894, %s896
    %p903 = scmp.eq.s32.totalorder %s94, 1
    %p904 = por %p902, %p903
    %p905 = scmp.ne.s32.totalorder %s896, %s897
    %p906 = scmp.eq.s32.totalorder %s94, 0
    %p907 = por %p905, %p906
    %p908 = scmp.ne.s32.totalorder %s896, %s897
    %p909 = scmp.eq.s32.totalorder %s95, 1
    %p910 = por %p908, %p909
    %p912 = scmp.ne.s32.totalorder %s897, %s911
    %p913 = scmp.eq.s32.totalorder %s95, 0
    %p914 = por %p912, %p913
    %s916 = sadd.s32 %s915, 1
    %p919 = scmp.eq.s32.totalorder %s89, 1
    %p920 = scmp.ne.s32.totalorder %s915, %s917
    %p921 = scmp.eq.s32.totalorder %s89, 0
    %p922 = por %p920, %p921
    %p923 = scmp.ne.s32.totalorder %s915, %s917
    %p924 = scmp.eq.s32.totalorder %s94, 1
    %p925 = por %p923, %p924
    %p926 = scmp.ne.s32.totalorder %s917, %s918
    %p927 = scmp.eq.s32.totalorder %s94, 0
    %p928 = por %p926, %p927
    %p929 = scmp.ne.s32.totalorder %s917, %s918
    %p930 = scmp.eq.s32.totalorder %s95, 1
    %p931 = por %p929, %p930
    %p933 = scmp.ne.s32.totalorder %s918, %s932
    %p934 = scmp.eq.s32.totalorder %s95, 0
    %p935 = por %p933, %p934
    %s936 = ssub.s32 %s89, %s96
    %p937 = scmp.eq.s32.totalorder %s936, 0
    %s939 = sadd.s32 %s938, 1
    %s940 = scalar_select %p937, %s938, %s939
    %p943 = pneg %p937
    %p944 = scmp.eq.s32.totalorder %s89, 1
    %p945 = por %p943, %p944
    %p946 = scmp.ne.s32.totalorder %s938, %s941
    %p947 = scmp.eq.s32.totalorder %s89, 0
    %p948 = por %p946, %p947
    %p949 = scmp.ne.s32.totalorder %s938, %s941
    %p950 = scmp.eq.s32.totalorder %s94, 1
    %p951 = por %p949, %p950
    %p952 = scmp.ne.s32.totalorder %s941, %s942
    %p953 = scmp.eq.s32.totalorder %s94, 0
    %p954 = por %p952, %p953
    %p955 = scmp.ne.s32.totalorder %s941, %s942
    %p956 = scmp.eq.s32.totalorder %s95, 1
    %p957 = por %p955, %p956
    %p959 = scmp.ne.s32.totalorder %s942, %s958
    %p960 = scmp.eq.s32.totalorder %s95, 0
    %p961 = por %p959, %p960
    %p962 = scmp.le.s32.totalorder 1, %s89
    %p963 = scmp.lt.s32.totalorder %s89, 3
    %p964 = pnand %p962, %p963
    %p965 = pneg %p964
    // Predicated region
    $region9: #{_lambda_.3} parent=5 // pred_check
      _
    $region10: #{_lambda_.3} parent=5 // pred_check_branch
      %967 = sbr.rel (%p964) target = $region12
    $region11: #{_lambda_.3} parent=5 // pred_region
      %s968 = ssub.s32 %s89, 1
      // Predicated region
      $region13: #{_lambda_.3} parent=11 // pred_check
        %p969 = pneg %p214
      $region14: #{_lambda_.3} parent=11 // pred_check_branch
        %971 = sbr.rel (%p969) target = $region16
      $region15: #{_lambda_.3} parent=11 // pred_region
        _
      $region16: #{_lambda_.3} parent=11 // pred_fallthru
        _
      // Predicated region
      $region17: #{_lambda_.3} parent=11 // pred_check
        %p972 = pneg %p235
      $region18: #{_lambda_.3} parent=11 // pred_check_branch
        %974 = sbr.rel (%p972) target = $region20
      $region19: #{_lambda_.3} parent=11 // pred_region
        _
      $region20: #{_lambda_.3} parent=11 // pred_fallthru
        _
      // Predicated region
      $region21: #{_lambda_.3} parent=11 // pred_check
        %p975 = pneg %p256
      $region22: #{_lambda_.3} parent=11 // pred_check_branch
        %977 = sbr.rel (%p975) target = $region24
      $region23: #{_lambda_.3} parent=11 // pred_region
        _
      $region24: #{_lambda_.3} parent=11 // pred_fallthru
        _
      // Predicated region
      $region25: #{_lambda_.3} parent=11 // pred_check
        %p978 = pneg %p277
      $region26: #{_lambda_.3} parent=11 // pred_check_branch
        %980 = sbr.rel (%p978) target = $region28
      $region27: #{_lambda_.3} parent=11 // pred_region
        _
      $region28: #{_lambda_.3} parent=11 // pred_fallthru
        _
      // Predicated region
      $region29: #{_lambda_.3} parent=11 // pred_check
        %p981 = pneg %p298
      $region30: #{_lambda_.3} parent=11 // pred_check_branch
        %983 = sbr.rel (%p981) target = $region32
      $region31: #{_lambda_.3} parent=11 // pred_region
        _
      $region32: #{_lambda_.3} parent=11 // pred_fallthru
        _
      // Predicated region
      $region33: #{_lambda_.3} parent=11 // pred_check
        %p984 = pneg %p319
      $region34: #{_lambda_.3} parent=11 // pred_check_branch
        %986 = sbr.rel (%p984) target = $region36
      $region35: #{_lambda_.3} parent=11 // pred_region
        _
      $region36: #{_lambda_.3} parent=11 // pred_fallthru
        _
      // Predicated region
      $region37: #{_lambda_.3} parent=11 // pred_check
        %p987 = pneg %p340
      $region38: #{_lambda_.3} parent=11 // pred_check_branch
        %989 = sbr.rel (%p987) target = $region40
      $region39: #{_lambda_.3} parent=11 // pred_region
        _
      $region40: #{_lambda_.3} parent=11 // pred_fallthru
        _
      // Predicated region
      $region41: #{_lambda_.3} parent=11 // pred_check
        %p990 = pneg %p361
      $region42: #{_lambda_.3} parent=11 // pred_check_branch
        %992 = sbr.rel (%p990) target = $region44
      $region43: #{_lambda_.3} parent=11 // pred_region
        _
      $region44: #{_lambda_.3} parent=11 // pred_fallthru
        _
      // Predicated region
      $region45: #{_lambda_.3} parent=11 // pred_check
        %p993 = pneg %p382
      $region46: #{_lambda_.3} parent=11 // pred_check_branch
        %995 = sbr.rel (%p993) target = $region48
      $region47: #{_lambda_.3} parent=11 // pred_region
        _
      $region48: #{_lambda_.3} parent=11 // pred_fallthru
        _
      // Predicated region
      $region49: #{_lambda_.3} parent=11 // pred_check
        %p996 = pneg %p403
      $region50: #{_lambda_.3} parent=11 // pred_check_branch
        %998 = sbr.rel (%p996) target = $region52
      $region51: #{_lambda_.3} parent=11 // pred_region
        _
      $region52: #{_lambda_.3} parent=11 // pred_fallthru
        _
      // Predicated region
      $region53: #{_lambda_.3} parent=11 // pred_check
        %p999 = pneg %p424
      $region54: #{_lambda_.3} parent=11 // pred_check_branch
        %1001 = sbr.rel (%p999) target = $region56
      $region55: #{_lambda_.3} parent=11 // pred_region
        _
      $region56: #{_lambda_.3} parent=11 // pred_fallthru
        _
      // Predicated region
      $region57: #{_lambda_.3} parent=11 // pred_check
        %p1002 = pneg %p445
      $region58: #{_lambda_.3} parent=11 // pred_check_branch
        %1004 = sbr.rel (%p1002) target = $region60
      $region59: #{_lambda_.3} parent=11 // pred_region
        _
      $region60: #{_lambda_.3} parent=11 // pred_fallthru
        _
      // Predicated region
      $region61: #{_lambda_.3} parent=11 // pred_check
        %p1005 = pneg %p466
      $region62: #{_lambda_.3} parent=11 // pred_check_branch
        %1007 = sbr.rel (%p1005) target = $region64
      $region63: #{_lambda_.3} parent=11 // pred_region
        _
      $region64: #{_lambda_.3} parent=11 // pred_fallthru
        _
      // Predicated region
      $region65: #{_lambda_.3} parent=11 // pred_check
        %p1008 = pneg %p487
      $region66: #{_lambda_.3} parent=11 // pred_check_branch
        %1010 = sbr.rel (%p1008) target = $region68
      $region67: #{_lambda_.3} parent=11 // pred_region
        _
      $region68: #{_lambda_.3} parent=11 // pred_fallthru
        _
      // Predicated region
      $region69: #{_lambda_.3} parent=11 // pred_check
        %p1011 = pneg %p508
      $region70: #{_lambda_.3} parent=11 // pred_check_branch
        %1013 = sbr.rel (%p1011) target = $region72
      $region71: #{_lambda_.3} parent=11 // pred_region
        _
      $region72: #{_lambda_.3} parent=11 // pred_fallthru
        _
      // Predicated region
      $region73: #{_lambda_.3} parent=11 // pred_check
        %p1014 = pneg %p529
      $region74: #{_lambda_.3} parent=11 // pred_check_branch
        %1016 = sbr.rel (%p1014) target = $region76
      $region75: #{_lambda_.3} parent=11 // pred_region
        _
      $region76: #{_lambda_.3} parent=11 // pred_fallthru
        _
      // Predicated region
      $region77: #{_lambda_.3} parent=11 // pred_check
        %p1017 = pneg %p550
      $region78: #{_lambda_.3} parent=11 // pred_check_branch
        %1019 = sbr.rel (%p1017) target = $region80
      $region79: #{_lambda_.3} parent=11 // pred_region
        _
      $region80: #{_lambda_.3} parent=11 // pred_fallthru
        _
      // Predicated region
      $region81: #{_lambda_.3} parent=11 // pred_check
        %p1020 = pneg %p571
      $region82: #{_lambda_.3} parent=11 // pred_check_branch
        %1022 = sbr.rel (%p1020) target = $region84
      $region83: #{_lambda_.3} parent=11 // pred_region
        _
      $region84: #{_lambda_.3} parent=11 // pred_fallthru
        _
      // Predicated region
      $region85: #{_lambda_.3} parent=11 // pred_check
        %p1023 = pneg %p592
      $region86: #{_lambda_.3} parent=11 // pred_check_branch
        %1025 = sbr.rel (%p1023) target = $region88
      $region87: #{_lambda_.3} parent=11 // pred_region
        _
      $region88: #{_lambda_.3} parent=11 // pred_fallthru
        _
      // Predicated region
      $region89: #{_lambda_.3} parent=11 // pred_check
        %p1026 = pneg %p613
      $region90: #{_lambda_.3} parent=11 // pred_check_branch
        %1028 = sbr.rel (%p1026) target = $region92
      $region91: #{_lambda_.3} parent=11 // pred_region
        _
      $region92: #{_lambda_.3} parent=11 // pred_fallthru
        _
      // Predicated region
      $region93: #{_lambda_.3} parent=11 // pred_check
        %p1029 = pneg %p634
      $region94: #{_lambda_.3} parent=11 // pred_check_branch
        %1031 = sbr.rel (%p1029) target = $region96
      $region95: #{_lambda_.3} parent=11 // pred_region
        _
      $region96: #{_lambda_.3} parent=11 // pred_fallthru
        _
      // Predicated region
      $region97: #{_lambda_.3} parent=11 // pred_check
        %p1032 = pneg %p655
      $region98: #{_lambda_.3} parent=11 // pred_check_branch
        %1034 = sbr.rel (%p1032) target = $region100
      $region99: #{_lambda_.3} parent=11 // pred_region
        _
      $region100: #{_lambda_.3} parent=11 // pred_fallthru
        _
      // Predicated region
      $region101: #{_lambda_.3} parent=11 // pred_check
        %p1035 = pneg %p676
      $region102: #{_lambda_.3} parent=11 // pred_check_branch
        %1037 = sbr.rel (%p1035) target = $region104
      $region103: #{_lambda_.3} parent=11 // pred_region
        _
      $region104: #{_lambda_.3} parent=11 // pred_fallthru
        _
      // Predicated region
      $region105: #{_lambda_.3} parent=11 // pred_check
        %p1038 = pneg %p697
      $region106: #{_lambda_.3} parent=11 // pred_check_branch
        %1040 = sbr.rel (%p1038) target = $region108
      $region107: #{_lambda_.3} parent=11 // pred_region
        _
      $region108: #{_lambda_.3} parent=11 // pred_fallthru
        _
      // Predicated region
      $region109: #{_lambda_.3} parent=11 // pred_check
        %p1041 = pneg %p718
      $region110: #{_lambda_.3} parent=11 // pred_check_branch
        %1043 = sbr.rel (%p1041) target = $region112
      $region111: #{_lambda_.3} parent=11 // pred_region
        _
      $region112: #{_lambda_.3} parent=11 // pred_fallthru
        _
      // Predicated region
      $region113: #{_lambda_.3} parent=11 // pred_check
        %p1044 = pneg %p739
      $region114: #{_lambda_.3} parent=11 // pred_check_branch
        %1046 = sbr.rel (%p1044) target = $region116
      $region115: #{_lambda_.3} parent=11 // pred_region
        _
      $region116: #{_lambda_.3} parent=11 // pred_fallthru
        _
      // Predicated region
      $region117: #{_lambda_.3} parent=11 // pred_check
        %p1047 = pneg %p760
      $region118: #{_lambda_.3} parent=11 // pred_check_branch
        %1049 = sbr.rel (%p1047) target = $region120
      $region119: #{_lambda_.3} parent=11 // pred_region
        _
      $region120: #{_lambda_.3} parent=11 // pred_fallthru
        _
      // Predicated region
      $region121: #{_lambda_.3} parent=11 // pred_check
        %p1050 = pneg %p781
      $region122: #{_lambda_.3} parent=11 // pred_check_branch
        %1052 = sbr.rel (%p1050) target = $region124
      $region123: #{_lambda_.3} parent=11 // pred_region
        _
      $region124: #{_lambda_.3} parent=11 // pred_fallthru
        _
      // Predicated region
      $region125: #{_lambda_.3} parent=11 // pred_check
        %p1053 = pneg %p802
      $region126: #{_lambda_.3} parent=11 // pred_check_branch
        %1055 = sbr.rel (%p1053) target = $region128
      $region127: #{_lambda_.3} parent=11 // pred_region
        _
      $region128: #{_lambda_.3} parent=11 // pred_fallthru
        _
      // Predicated region
      $region129: #{_lambda_.3} parent=11 // pred_check
        %p1056 = pneg %p823
      $region130: #{_lambda_.3} parent=11 // pred_check_branch
        %1058 = sbr.rel (%p1056) target = $region132
      $region131: #{_lambda_.3} parent=11 // pred_region
        _
      $region132: #{_lambda_.3} parent=11 // pred_fallthru
        _
      // Predicated region
      $region133: #{_lambda_.3} parent=11 // pred_check
        %p1059 = pneg %p844
      $region134: #{_lambda_.3} parent=11 // pred_check_branch
        %1061 = sbr.rel (%p1059) target = $region136
      $region135: #{_lambda_.3} parent=11 // pred_region
        _
      $region136: #{_lambda_.3} parent=11 // pred_fallthru
        _
      // Predicated region
      $region137: #{_lambda_.3} parent=11 // pred_check
        %p1062 = pneg %p865
      $region138: #{_lambda_.3} parent=11 // pred_check_branch
        %1064 = sbr.rel (%p1062) target = $region140
      $region139: #{_lambda_.3} parent=11 // pred_region
        _
      $region140: #{_lambda_.3} parent=11 // pred_fallthru
        _
      // Predicated region
      $region141: #{_lambda_.3} parent=11 // pred_check
        %p1065 = pneg %p886
      $region142: #{_lambda_.3} parent=11 // pred_check_branch
        %1067 = sbr.rel (%p1065) target = $region144
      $region143: #{_lambda_.3} parent=11 // pred_region
        _
      $region144: #{_lambda_.3} parent=11 // pred_fallthru
        _
      // Predicated region
      $region145: #{_lambda_.3} parent=11 // pred_check
        %p1068 = pneg %p907
      $region146: #{_lambda_.3} parent=11 // pred_check_branch
        %1070 = sbr.rel (%p1068) target = $region148
      $region147: #{_lambda_.3} parent=11 // pred_region
        _
      $region148: #{_lambda_.3} parent=11 // pred_fallthru
        _
      // Predicated region
      $region149: #{_lambda_.3} parent=11 // pred_check
        %p1071 = pneg %p928
      $region150: #{_lambda_.3} parent=11 // pred_check_branch
        %1073 = sbr.rel (%p1071) target = $region152
      $region151: #{_lambda_.3} parent=11 // pred_region
        _
      $region152: #{_lambda_.3} parent=11 // pred_fallthru
        _
    $region12: #{_lambda_.3} parent=5 // pred_fallthru
      _
    %p1074 = scmp.lt.s32.totalorder %s89, 2
    // Predicated region
    $region153: #{_lambda_.3} parent=5 // pred_check
      %p1075 = pneg %p1074
    $region154: #{_lambda_.3} parent=5 // pred_check_branch
      %1077 = sbr.rel (%p1075) target = $region156
    $region155: #{_lambda_.3} parent=5 // pred_region
      // Predicated region
      $region157: #{_lambda_.3} parent=155 // pred_check
        %p1078 = pneg %p109
      $region158: #{_lambda_.3} parent=155 // pred_check_branch
        %1080 = sbr.rel (%p1078) target = $region160
      $region159: #{_lambda_.3} parent=155 // pred_region
        %p1081 = scmp.lt.s32.totalorder %s89, 1
        %s1082 = scalar_select %p1081, %s89, 1
        %s1083 = smul.addr %s1082, 4
        %s1084 = scalar_lea.vmem %s1, %s1083
      $region160: #{_lambda_.3} parent=155 // pred_fallthru
        _
      // Predicated region
      $region161: #{_lambda_.3} parent=155 // pred_check
        %p1085 = pneg %p135
      $region162: #{_lambda_.3} parent=155 // pred_check_branch
        %1087 = sbr.rel (%p1085) target = $region164
      $region163: #{_lambda_.3} parent=155 // pred_region
        %p1088 = scmp.lt.s32.totalorder %s89, 1
        %s1089 = scalar_select %p1088, %s89, 1
        %s1090 = smul.addr %s1089, 8
        %s1091 = scalar_lea.vmem %s3, %s1090
      $region164: #{_lambda_.3} parent=155 // pred_fallthru
        _
      // Predicated region
      $region165: #{_lambda_.3} parent=155 // pred_check
        %p1092 = pneg %p161
      $region166: #{_lambda_.3} parent=155 // pred_check_branch
        %1094 = sbr.rel (%p1092) target = $region168
      $region167: #{_lambda_.3} parent=155 // pred_region
        %p1095 = scmp.lt.s32.totalorder %s89, 1
        %s1096 = scalar_select %p1095, %s89, 1
        %s1097 = scalar_lea.vmem %s5, %s1096
      $region168: #{_lambda_.3} parent=155 // pred_fallthru
        _
      // Predicated region
      $region169: #{_lambda_.3} parent=155 // pred_check
        %p1098 = pneg %p187
      $region170: #{_lambda_.3} parent=155 // pred_check_branch
        %1100 = sbr.rel (%p1098) target = $region172
      $region171: #{_lambda_.3} parent=155 // pred_region
        %p1101 = scmp.lt.s32.totalorder %s89, 1
        %s1102 = scalar_select %p1101, %s89, 1
        %s1103 = smul.addr %s1102, 8
        %s1104 = scalar_lea.vmem %s7, %s1103
      $region172: #{_lambda_.3} parent=155 // pred_fallthru
        _
    $region156: #{_lambda_.3} parent=5 // pred_fallthru
      _
    %p1105 = scmp.le.s32.totalorder 1, %s89
    %p1106 = scmp.lt.s32.totalorder %s89, 3
    %p1107 = pnand %p1105, %p1106
    %p1108 = pneg %p1107
    // Predicated region
    $region173: #{_lambda_.3} parent=5 // pred_check
      _
    $region174: #{_lambda_.3} parent=5 // pred_check_branch
      %1110 = sbr.rel (%p1107) target = $region176
    $region175: #{_lambda_.3} parent=5 // pred_region
      %s1111 = ssub.s32 %s89, 1
      %p1112 = scmp.lt.s32.totalorder %s94, 1
      %s1113 = scalar_select %p1112, %s94, 1
      %s1114 = smul.addr %s1113, 4
      %s1115 = scalar_lea.vmem %s1, %s1114
      %p1116 = pneg %p115
      %p1117 = pneg %p112
      %p1118 = scmp.lt.s32.totalorder %s94, 1
      %s1119 = scalar_select %p1118, %s94, 1
      %s1120 = smul.addr %s1119, 8
      %s1121 = scalar_lea.vmem %s3, %s1120
      %p1122 = pneg %p141
      %p1123 = pneg %p138
      %p1124 = scmp.lt.s32.totalorder %s94, 1
      %s1125 = scalar_select %p1124, %s94, 1
      %s1126 = scalar_lea.vmem %s5, %s1125
      %p1127 = pneg %p167
      %p1128 = pneg %p164
      %p1129 = scmp.lt.s32.totalorder %s94, 1
      %s1130 = scalar_select %p1129, %s94, 1
      %s1131 = smul.addr %s1130, 8
      %s1132 = scalar_lea.vmem %s7, %s1131
      %p1133 = pneg %p193
      %p1134 = pneg %p190
      %p1135 = pneg %p214
      %p1136 = pneg %p211
      %p1137 = pneg %p235
      %p1138 = pneg %p232
      %p1139 = pneg %p256
      %p1140 = pneg %p253
      %p1141 = pneg %p277
      %p1142 = pneg %p274
      %p1143 = pneg %p298
      %p1144 = pneg %p295
      %p1145 = pneg %p319
      %p1146 = pneg %p316
      %p1147 = pneg %p340
      %p1148 = pneg %p337
      %p1149 = pneg %p361
      %p1150 = pneg %p358
      %p1151 = pneg %p382
      %p1152 = pneg %p379
      %p1153 = pneg %p403
      %p1154 = pneg %p400
      %p1155 = pneg %p424
      %p1156 = pneg %p421
      %p1157 = pneg %p445
      %p1158 = pneg %p442
      %p1159 = pneg %p466
      %p1160 = pneg %p463
      %p1161 = pneg %p487
      %p1162 = pneg %p484
      %p1163 = pneg %p508
      %p1164 = pneg %p505
      %p1165 = pneg %p529
      %p1166 = pneg %p526
      %p1167 = pneg %p550
      %p1168 = pneg %p547
      %p1169 = pneg %p571
      %p1170 = pneg %p568
      %p1171 = pneg %p592
      %p1172 = pneg %p589
      %p1173 = pneg %p613
      %p1174 = pneg %p610
      %p1175 = pneg %p634
      %p1176 = pneg %p631
      %p1177 = pneg %p655
      %p1178 = pneg %p652
      %p1179 = pneg %p676
      %p1180 = pneg %p673
      %p1181 = pneg %p697
      %p1182 = pneg %p694
      %p1183 = pneg %p718
      %p1184 = pneg %p715
      %p1185 = pneg %p739
      %p1186 = pneg %p736
      %p1187 = pneg %p760
      %p1188 = pneg %p757
      %p1189 = pneg %p781
      %p1190 = pneg %p778
      %p1191 = pneg %p802
      %p1192 = pneg %p799
      %p1193 = pneg %p823
      %p1194 = pneg %p820
      %p1195 = pneg %p844
      %p1196 = pneg %p841
      %p1197 = pneg %p865
      %p1198 = pneg %p862
      %p1199 = pneg %p886
      %p1200 = pneg %p883
      %p1201 = pneg %p907
      %p1202 = pneg %p904
      %p1203 = pneg %p928
      %p1204 = pneg %p925
      %p1205 = pneg %p954
      %p1206 = pneg %p951
      %p1207 = scmp.lt.s32.totalorder %s94, 1
      %s1208 = scalar_select %p1207, %s94, 1
      %s1209 = smul.addr %s1208, 8
      %s1210 = scalar_lea.vmem %s79, %s1209
      %p1211 = scmp.lt.s32.totalorder %s94, 1
      %s1212 = scalar_select %p1211, %s94, 1
      %s1213 = smul.addr %s1212, 4
      %s1214 = scalar_lea.vmem %s1, %s1213
      %p1215 = scmp.lt.s32.totalorder %s94, 1
      %s1216 = scalar_select %p1215, %s94, 1
      %s1217 = smul.addr %s1216, 8
      %s1218 = scalar_lea.vmem %s3, %s1217
      %p1219 = scmp.lt.s32.totalorder %s94, 1
      %s1220 = scalar_select %p1219, %s94, 1
      %s1221 = scalar_lea.vmem %s5, %s1220
      %p1222 = scmp.lt.s32.totalorder %s94, 1
      %s1223 = scalar_select %p1222, %s94, 1
      %s1224 = smul.addr %s1223, 8
      %s1225 = scalar_lea.vmem %s7, %s1224
      %p1226 = scmp.lt.s32.totalorder %s94, 1
      %s1227 = scalar_select %p1226, %s94, 1
      %s1228 = smul.addr %s1227, 8
      %s1229 = scalar_lea.vmem %s79, %s1228
      %v1231 = vld [vmem:[%s1214] sm:$0xf]
      %v1232 = vld [vmem:[#allocation2] sm:$0x1]
      %v1233 = vld [vmem:[%s9] sm:$0xf]
      %v1235 = vperm.slane %v1232, 0
      %1236 = vset.pattern.permute.xlu0 0
      %1237 = vperm.xlu0 %1236, %v1235
      %v1238 = vpop.permute.xlu0 %1237
      %v1240 = vmul.f32 %v1238, %v1233
      %v1241 = vadd.f32 %v1231, %v1240
      %v1242 = vpack.c.bf16 %v1241, %v1241
      %v1243 = vld [vmem:[%s17] sm:$0xff]
      %v1244 = vld [vmem:[%s17 + $0x8] sm:$0xff]
      %v1245 = vld [vmem:[%s17 + $0x10] sm:$0xff]
      %v1246 = vld [vmem:[%s17 + $0x18] sm:$0xff]
      %v1247 = vpack.c.bf16 %v1244, %v1243
      %v1248 = vpack.c.bf16 %v1246, %v1245
      %v1249 = vld [vmem:[%s19] sm:$0x1]
      %v1251 = vperm.slane %v1249, 0
      %vm1253 = vcmask 261120
      %v1255 = vsel %vm1253, %v1242, 0
      %1257 = vmatpush.bf16.msra.mxu0 0
      %1258 = vmatpush.bf16.msra.mxu0 0
      %1259 = vmatpush.bf16.msra.mxu0 0
      %1260 = vmatpush.bf16.msra.mxu0 0
      %1261 = vmatpush.bf16.msra.mxu0 0
      %1262 = vmatpush.bf16.msra.mxu0 0
      %1263 = vmatpush.bf16.msra.mxu0 %v1248
      %1264 = vmatpush.bf16.msra.mxu0 %v1247
      %1265 = vmatmul.bf16.gmra.mxu0 %v1255
      %v1266 = vpop.f32.mrf.mxu0
      %v1267 = vadd.f32 %v1251, %v1266
      %v1268 = vpop.f32.mrf.mxu0
      %1269 = vdwg.mxu0
      %v1270 = vld [vmem:[%s1221] sm:$0x1]
      %v1271 = vmul.f32 %v1267, 0.17677669
      %v1272 = vpack.c.bf16 %v1271, %v1271
      %v1273 = vpack.c.bf16 %v1267, %v1267
      %v1275 = vperm.slane %v1270, 0
      %1278 = vrot.lane.b32.xlu0 %v1273, 96
      %v1279 = vpop.permute.xlu0 %1278
      %v1281 = vsel %vm1253, %v1272, 0
      %v1284 = vsel %vm1253, %v1279, 0
      %1286 = vmatpush.bf16.xpose.msra.mxu0 0
      %1287 = vmatpush.bf16.xpose.msra.mxu0 0
      %1288 = vmatpush.bf16.xpose.msra.mxu0 0
      %1289 = vmatpush.bf16.xpose.msra.mxu0 0
      %1290 = vmatpush.bf16.xpose.msra.mxu0 0
      %1291 = vmatpush.bf16.xpose.msra.mxu0 0
      %1292 = vmatpush.bf16.xpose.msra.mxu0 0
      %1293 = vmatpush.bf16.xpose.msra.mxu0 %v1284
      %1294 = vmatmul.bf16.gmra.mxu0 %v1281
      %v1295 = vpop.f32.mrf.mxu0
      %v1296 = vadd.f32 %v1275, %v1295
      %v1297 = vpop.f32.mrf.mxu0
      %1298 = vdwg.mxu0
      %vm1299 = vcmask 27648
      %v1300 = vsel %vm1299, %v1296, -inf
      %1301 = vmax.xlane.f32.xlu0 %v1300
      %v1302 = vpop.xlane.xlu0 %1301
      %v1303 = vsub.f32 %v1296, %v1302
      %v1304 = vmul.f32 %v1303, 1.442695
      %v1305 = vpow.pop %v1304
      %v1306 = vsel %vm1299, %v1305, 0.0
      %1307 = vadd.xlane.f32.xlu0 %v1306
      %v1308 = vpop.xlane.xlu0 %1307
      %v1309 = vrcp.pop %v1308
      %v1310 = vmul.f32 %v1305, %v1309
      %v1311 = vpack.c.bf16 %v1310, %v1310
      %1312 = vrot.lane.b32.xlu0 %v1273, 64
      %v1313 = vpop.permute.xlu0 %1312
      %vm1314 = vcmask 31744
      %v1316 = vsel %vm1314, %v1311, 0
      %vm1318 = vcmask 1041408
      %v1320 = vsel %vm1318, %v1313, 0
      %1322 = vmatpush.bf16.msra.mxu0 0
      %1323 = vmatpush.bf16.msra.mxu0 0
      %1324 = vmatpush.bf16.msra.mxu0 0
      %1325 = vmatpush.bf16.msra.mxu0 0
      %1326 = vmatpush.bf16.msra.mxu0 0
      %1327 = vmatpush.bf16.msra.mxu0 0
      %1328 = vmatpush.bf16.msra.mxu0 0
      %1329 = vmatpush.bf16.msra.mxu0 %v1320
      %1330 = vmatmul.bf16.gmra.mxu0 %v1316
      %v1331 = vpop.f32.mrf.mxu0
      %v1332 = vadd.f32 0.0, %v1331
      %v1333 = vpop.f32.mrf.mxu0
      %1334 = vdwg.mxu0
      %v1335 = vpack.c.bf16 %v1332, %v1332
      %v1336 = vld [vmem:[%s21] sm:$0xff]
      %v1337 = vld [vmem:[%s21 + $0x8] sm:$0xff]
      %v1338 = vld [vmem:[%s21 + $0x10] sm:$0xff]
      %v1339 = vld [vmem:[%s21 + $0x18] sm:$0xff]
      %v1340 = vpack.c.bf16 %v1337, %v1336
      %v1341 = vpack.c.bf16 %v1339, %v1338
      %v1342 = vld [vmem:[%s23] sm:$0x1]
      %v1344 = vperm.slane %v1342, 0
      %v1347 = vsel %vm1253, %v1335, 0
      %1349 = vmatpush.bf16.msra.mxu0 0
      %1350 = vmatpush.bf16.msra.mxu0 0
      %1351 = vmatpush.bf16.msra.mxu0 0
      %1352 = vmatpush.bf16.msra.mxu0 0
      %1353 = vmatpush.bf16.msra.mxu0 0
      %1354 = vmatpush.bf16.msra.mxu0 0
      %1355 = vmatpush.bf16.msra.mxu0 %v1341
      %1356 = vmatpush.bf16.msra.mxu0 %v1340
      %1357 = vmatmul.bf16.gmra.mxu0 %v1347
      %v1358 = vpop.f32.mrf.mxu0
      %v1359 = vadd.f32 %v1344, %v1358
      %v1360 = vpop.f32.mrf.mxu0
      %1361 = vdwg.mxu0
      %v1362 = vadd.f32 %v1241, %v1359
      %vm1363 = vcmask 257024
      %v1364 = vsel %vm1363, %v1362, 0.0
      %1365 = vadd.xlane.f32.xlu0 %v1364
      %v1366 = vpop.xlane.xlu0 %1365
      %v1367 = vrcp.pop 32.0
      %v1368 = vmul.f32 32.0, %v1367
      %v1369 = vsub.f32 1.0, %v1368
      %v1370 = vmul.f32 %v1367, %v1369
      %v1371 = vadd.f32 %v1367, %v1370
      %vm1372 = vweird.f32 %v1367
      %v1373 = vsel %vm1372, %v1367, %v1371
      %v1374 = vmul.f32 %v1366, %v1373
      %v1375 = vsub.f32 %v1362, %v1374
      %v1376 = vmul.f32 %v1375, %v1375
      %v1377 = vsel %vm1363, %v1376, 0.0
      %1378 = vadd.xlane.f32.xlu0 %v1377
      %v1379 = vpop.xlane.xlu0 %1378
      %v1380 = vmul.f32 %v1379, %v1373
      %v1381 = vadd.f32 %v1380, 1e-05
      %v1382 = vrsqrt.pop %v1381
      %v1383 = vmul.f32 %v1382, %v1381
      %v1384 = vmul.f32 %v1383, %v1382
      %v1385 = vmul.f32 0.5, %v1384
      %v1386 = vsub.f32 1.5, %v1385
      %v1387 = vmul.f32 %v1382, %v1386
      %vm1388 = vweird.f32 %v1381
      %vm1389 = vweird.f32 %v1382
      %vm1390 = vmor %vm1388, %vm1389
      %v1391 = vsel %vm1390, %v1382, %v1387
      %v1392 = vmul.f32 %v1375, %v1391
      %v1393 = vld [vmem:[%s25] sm:$0x1]
      %v1394 = vperm.slane %v1393, 0
      %v1395 = vmul.f32 %v1392, %v1394
      %v1396 = vld [vmem:[%s25 + $0x1] sm:$0x1]
      %v1397 = vperm.slane %v1396, 0
      %v1398 = vadd.f32 %v1395, %v1397
      %v1399 = vpack.c.bf16 %v1398, %v1398
      %v1400 = vld [vmem:[%s27] sm:$0xff]
      %v1401 = vld [vmem:[%s27 + $0x8] sm:$0xff]
      %v1402 = vld [vmem:[%s27 + $0x10] sm:$0xff]
      %v1403 = vld [vmem:[%s27 + $0x18] sm:$0xff]
      %v1404 = vpack.c.bf16 %v1401, %v1400
      %v1405 = vpack.c.bf16 %v1403, %v1402
      %v1406 = vld [vmem:[%s29] sm:$0x1]
      %v1408 = vperm.slane %v1406, 0
      %v1411 = vsel %vm1253, %v1399, 0
      %1413 = vmatpush.bf16.msra.mxu0 0
      %1414 = vmatpush.bf16.msra.mxu0 0
      %1415 = vmatpush.bf16.msra.mxu0 0
      %1416 = vmatpush.bf16.msra.mxu0 0
      %1417 = vmatpush.bf16.msra.mxu0 0
      %1418 = vmatpush.bf16.msra.mxu0 0
      %1419 = vmatpush.bf16.msra.mxu0 %v1405
      %1420 = vmatpush.bf16.msra.mxu0 %v1404
      %1421 = vmatmul.bf16.gmra.mxu0 %v1411
      %v1422 = vpop.f32.mrf.mxu0
      %v1423 = vadd.f32 %v1408, %v1422
      %v1424 = vpop.f32.mrf.mxu0
      %1425 = vdwg.mxu0
      %v1426 = vmax.f32 %v1423, 0.0
      %v1427 = vpack.c.bf16 %v1426, %v1426
      %v1428 = vld [vmem:[%s31] sm:$0xff]
      %v1429 = vld [vmem:[%s31 + $0x8] sm:$0xff]
      %v1430 = vld [vmem:[%s31 + $0x10] sm:$0xff]
      %v1431 = vld [vmem:[%s31 + $0x18] sm:$0xff]
      %v1432 = vld [vmem:[%s31 + $0x20] sm:$0xff]
      %v1433 = vld [vmem:[%s31 + $0x28] sm:$0xff]
      %v1434 = vld [vmem:[%s31 + $0x30] sm:$0xff]
      %v1435 = vld [vmem:[%s31 + $0x38] sm:$0xff]
      %v1436 = vld [vmem:[%s31 + $0x40] sm:$0xff]
      %v1437 = vld [vmem:[%s31 + $0x48] sm:$0xff]
      %v1438 = vld [vmem:[%s31 + $0x50] sm:$0xff]
      %v1439 = vld [vmem:[%s31 + $0x58] sm:$0xff]
      %v1440 = vld [vmem:[%s31 + $0x60] sm:$0xff]
      %v1441 = vld [vmem:[%s31 + $0x68] sm:$0xff]
      %v1442 = vld [vmem:[%s31 + $0x70] sm:$0xff]
      %v1443 = vld [vmem:[%s31 + $0x78] sm:$0xff]
      %v1444 = vpack.c.bf16 %v1429, %v1428
      %v1445 = vpack.c.bf16 %v1431, %v1430
      %v1446 = vpack.c.bf16 %v1433, %v1432
      %v1447 = vpack.c.bf16 %v1435, %v1434
      %v1448 = vpack.c.bf16 %v1437, %v1436
      %v1449 = vpack.c.bf16 %v1439, %v1438
      %v1450 = vpack.c.bf16 %v1441, %v1440
      %v1451 = vpack.c.bf16 %v1443, %v1442
      %v1452 = vld [vmem:[%s33] sm:$0x1]
      %v1454 = vperm.slane %v1452, 0
      %1456 = vmatpush.bf16.msra.mxu0 %v1451
      %1457 = vmatpush.bf16.msra.mxu0 %v1450
      %1458 = vmatpush.bf16.msra.mxu0 %v1449
      %1459 = vmatpush.bf16.msra.mxu0 %v1448
      %1460 = vmatpush.bf16.msra.mxu0 %v1447
      %1461 = vmatpush.bf16.msra.mxu0 %v1446
      %1462 = vmatpush.bf16.msra.mxu0 %v1445
      %1463 = vmatpush.bf16.msra.mxu0 %v1444
      %1464 = vmatmul.bf16.gmra.mxu0 %v1427
      %v1465 = vpop.f32.mrf.mxu0
      %v1466 = vadd.f32 %v1454, %v1465
      %v1467 = vpop.f32.mrf.mxu0
      %1468 = vdwg.mxu0
      %v1469 = vadd.f32 %v1398, %v1466
      %v1470 = vsel %vm1363, %v1469, 0.0
      %1471 = vadd.xlane.f32.xlu0 %v1470
      %v1472 = vpop.xlane.xlu0 %1471
      %v1473 = vmul.f32 %v1472, %v1373
      %v1474 = vsub.f32 %v1469, %v1473
      %v1475 = vmul.f32 %v1474, %v1474
      %v1476 = vsel %vm1363, %v1475, 0.0
      %1477 = vadd.xlane.f32.xlu0 %v1476
      %v1478 = vpop.xlane.xlu0 %1477
      %v1479 = vmul.f32 %v1478, %v1373
      %v1480 = vadd.f32 %v1479, 1e-05
      %v1481 = vrsqrt.pop %v1480
      %v1482 = vmul.f32 %v1481, %v1480
      %v1483 = vmul.f32 %v1482, %v1481
      %v1484 = vmul.f32 0.5, %v1483
      %v1485 = vsub.f32 1.5, %v1484
      %v1486 = vmul.f32 %v1481, %v1485
      %vm1487 = vweird.f32 %v1480
      %vm1488 = vweird.f32 %v1481
      %vm1489 = vmor %vm1487, %vm1488
      %v1490 = vsel %vm1489, %v1481, %v1486
      %v1491 = vmul.f32 %v1474, %v1490
      %v1492 = vld [vmem:[%s35] sm:$0x1]
      %v1493 = vperm.slane %v1492, 0
      %v1494 = vmul.f32 %v1491, %v1493
      %v1495 = vld [vmem:[%s35 + $0x1] sm:$0x1]
      %v1496 = vperm.slane %v1495, 0
      %v1497 = vadd.f32 %v1494, %v1496
      %v1498 = vsel %vm1363, %v1497, 0.0
      %1499 = vadd.xlane.f32.xlu0 %v1498
      %v1500 = vpop.xlane.xlu0 %1499
      %v1501 = vmul.f32 %v1500, %v1373
      %v1502 = vsub.f32 %v1497, %v1501
      %v1503 = vmul.f32 %v1502, %v1502
      %v1504 = vsel %vm1363, %v1503, 0.0
      %1505 = vadd.xlane.f32.xlu0 %v1504
      %v1506 = vpop.xlane.xlu0 %1505
      %v1507 = vmul.f32 %v1506, %v1373
      %v1508 = vadd.f32 %v1507, 1e-05
      %v1509 = vrsqrt.pop %v1508
      %v1510 = vmul.f32 %v1509, %v1508
      %v1511 = vmul.f32 %v1510, %v1509
      %v1512 = vmul.f32 0.5, %v1511
      %v1513 = vsub.f32 1.5, %v1512
      %v1514 = vmul.f32 %v1509, %v1513
      %vm1515 = vweird.f32 %v1508
      %vm1516 = vweird.f32 %v1509
      %vm1517 = vmor %vm1515, %vm1516
      %v1518 = vsel %vm1517, %v1509, %v1514
      %v1519 = vmul.f32 %v1502, %v1518
      %v1520 = vld [vmem:[%s37] sm:$0x1]
      %v1521 = vperm.slane %v1520, 0
      %v1522 = vmul.f32 %v1519, %v1521
      %v1523 = vld [vmem:[%s37 + $0x1] sm:$0x1]
      %v1524 = vperm.slane %v1523, 0
      %v1525 = vadd.f32 %v1522, %v1524
      %v1526 = vld [vmem:[%s1218] sm:$0x3f]
      %v1527 = vld [vmem:[#allocation3] sm:$0x1]
      %v1528 = vld [vmem:[%s11] sm:$0x3f]
      %v1530 = vperm.slane %v1527, 0
      %1531 = vset.pattern.permute.xlu0 0
      %1532 = vperm.xlu0 %1531, %v1530
      %v1533 = vpop.permute.xlu0 %1532
      %v1535 = vmul.f32 %v1533, %v1528
      %v1536 = vadd.f32 %v1526, %v1535
      %v1537 = vpack.c.bf16 %v1536, %v1536
      %v1538 = vld [vmem:[%s39] sm:$0xff]
      %v1539 = vld [vmem:[%s39 + $0x8] sm:$0xff]
      %v1540 = vld [vmem:[%s39 + $0x10] sm:$0xff]
      %v1541 = vld [vmem:[%s39 + $0x18] sm:$0xff]
      %v1542 = vpack.c.bf16 %v1539, %v1538
      %v1543 = vpack.c.bf16 %v1541, %v1540
      %v1544 = vld [vmem:[%s41] sm:$0x1]
      %v1546 = vperm.slane %v1544, 0
      %v1549 = vsel %vm1253, %v1537, 0
      %1551 = vmatpush.bf16.msra.mxu0 0
      %1552 = vmatpush.bf16.msra.mxu0 0
      %1553 = vmatpush.bf16.msra.mxu0 0
      %1554 = vmatpush.bf16.msra.mxu0 0
      %1555 = vmatpush.bf16.msra.mxu0 0
      %1556 = vmatpush.bf16.msra.mxu0 0
      %1557 = vmatpush.bf16.msra.mxu0 %v1543
      %1558 = vmatpush.bf16.msra.mxu0 %v1542
      %1559 = vmatmul.bf16.gmra.mxu0 %v1549
      %v1560 = vpop.f32.mrf.mxu0
      %v1561 = vadd.f32 %v1546, %v1560
      %v1562 = vpop.f32.mrf.mxu0
      %1563 = vdwg.mxu0
      %v1564 = vld [vmem:[%s1225] sm:$0x3f]
      %v1565 = vmul.f32 %v1561, 0.17677669
      %v1566 = vpack.c.bf16 %v1565, %v1565
      %v1567 = vpack.c.bf16 %v1561, %v1561
      %1569 = vrot.lane.b32.xlu0 %v1567, 96
      %v1570 = vpop.permute.xlu0 %1569
      %v1572 = vsel %vm1253, %v1566, 0
      %v1575 = vsel %vm1253, %v1570, 0
      %1577 = vmatpush.bf16.xpose.msra.mxu0 0
      %1578 = vmatpush.bf16.xpose.msra.mxu0 0
      %1579 = vmatpush.bf16.xpose.msra.mxu0 0
      %1580 = vmatpush.bf16.xpose.msra.mxu0 0
      %1581 = vmatpush.bf16.xpose.msra.mxu0 0
      %1582 = vmatpush.bf16.xpose.msra.mxu0 0
      %1583 = vmatpush.bf16.xpose.msra.mxu0 0
      %1584 = vmatpush.bf16.xpose.msra.mxu0 %v1575
      %1585 = vmatmul.bf16.gmra.mxu0 %v1572
      %v1586 = vpop.f32.mrf.mxu0
      %v1587 = vadd.f32 %v1564, %v1586
      %v1588 = vpop.f32.mrf.mxu0
      %1589 = vdwg.mxu0
      %vm1590 = vcmask 46080
      %v1591 = vsel %vm1590, %v1587, -inf
      %1592 = vmax.xlane.f32.xlu0 %v1591
      %v1593 = vpop.xlane.xlu0 %1592
      %v1594 = vsub.f32 %v1587, %v1593
      %v1595 = vmul.f32 %v1594, 1.442695
      %v1596 = vpow.pop %v1595
      %v1597 = vsel %vm1590, %v1596, 0.0
      %1598 = vadd.xlane.f32.xlu0 %v1597
      %v1599 = vpop.xlane.xlu0 %1598
      %v1600 = vrcp.pop %v1599
      %v1601 = vmul.f32 %v1596, %v1600
      %v1602 = vpack.c.bf16 %v1601, %v1601
      %1603 = vrot.lane.b32.xlu0 %v1567, 64
      %v1604 = vpop.permute.xlu0 %1603
      %vm1605 = vcmask 48128
      %v1607 = vsel %vm1605, %v1602, 0
      %vm1609 = vcmask 1042432
      %v1611 = vsel %vm1609, %v1604, 0
      %1613 = vmatpush.bf16.msra.mxu0 0
      %1614 = vmatpush.bf16.msra.mxu0 0
      %1615 = vmatpush.bf16.msra.mxu0 0
      %1616 = vmatpush.bf16.msra.mxu0 0
      %1617 = vmatpush.bf16.msra.mxu0 0
      %1618 = vmatpush.bf16.msra.mxu0 0
      %1619 = vmatpush.bf16.msra.mxu0 0
      %1620 = vmatpush.bf16.msra.mxu0 %v1611
      %1621 = vmatmul.bf16.gmra.mxu0 %v1607
      %v1622 = vpop.f32.mrf.mxu0
      %v1623 = vadd.f32 0.0, %v1622
      %v1624 = vpop.f32.mrf.mxu0
      %1625 = vdwg.mxu0
      %v1626 = vpack.c.bf16 %v1623, %v1623
      %v1627 = vld [vmem:[%s43] sm:$0xff]
      %v1628 = vld [vmem:[%s43 + $0x8] sm:$0xff]
      %v1629 = vld [vmem:[%s43 + $0x10] sm:$0xff]
      %v1630 = vld [vmem:[%s43 + $0x18] sm:$0xff]
      %v1631 = vpack.c.bf16 %v1628, %v1627
      %v1632 = vpack.c.bf16 %v1630, %v1629
      %v1633 = vld [vmem:[%s45] sm:$0x1]
      %v1635 = vperm.slane %v1633, 0
      %v1638 = vsel %vm1253, %v1626, 0
      %1640 = vmatpush.bf16.msra.mxu0 0
      %1641 = vmatpush.bf16.msra.mxu0 0
      %1642 = vmatpush.bf16.msra.mxu0 0
      %1643 = vmatpush.bf16.msra.mxu0 0
      %1644 = vmatpush.bf16.msra.mxu0 0
      %1645 = vmatpush.bf16.msra.mxu0 0
      %1646 = vmatpush.bf16.msra.mxu0 %v1632
      %1647 = vmatpush.bf16.msra.mxu0 %v1631
      %1648 = vmatmul.bf16.gmra.mxu0 %v1638
      %v1649 = vpop.f32.mrf.mxu0
      %v1650 = vadd.f32 %v1635, %v1649
      %v1651 = vpop.f32.mrf.mxu0
      %1652 = vdwg.mxu0
      %v1653 = vadd.f32 %v1536, %v1650
      %vm1654 = vcmask 259072
      %v1655 = vsel %vm1654, %v1653, 0.0
      %1656 = vadd.xlane.f32.xlu0 %v1655
      %v1657 = vpop.xlane.xlu0 %1656
      %v1658 = vmul.f32 %v1657, %v1373
      %v1659 = vsub.f32 %v1653, %v1658
      %v1660 = vmul.f32 %v1659, %v1659
      %v1661 = vsel %vm1654, %v1660, 0.0
      %1662 = vadd.xlane.f32.xlu0 %v1661
      %v1663 = vpop.xlane.xlu0 %1662
      %v1664 = vmul.f32 %v1663, %v1373
      %v1665 = vadd.f32 %v1664, 1e-05
      %v1666 = vrsqrt.pop %v1665
      %v1667 = vmul.f32 %v1666, %v1665
      %v1668 = vmul.f32 %v1667, %v1666
      %v1669 = vmul.f32 0.5, %v1668
      %v1670 = vsub.f32 1.5, %v1669
      %v1671 = vmul.f32 %v1666, %v1670
      %vm1672 = vweird.f32 %v1665
      %vm1673 = vweird.f32 %v1666
      %vm1674 = vmor %vm1672, %vm1673
      %v1675 = vsel %vm1674, %v1666, %v1671
      %v1676 = vmul.f32 %v1659, %v1675
      %v1677 = vld [vmem:[%s47] sm:$0x1]
      %v1678 = vperm.slane %v1677, 0
      %v1679 = vmul.f32 %v1676, %v1678
      %v1680 = vld [vmem:[%s47 + $0x1] sm:$0x1]
      %v1681 = vperm.slane %v1680, 0
      %v1682 = vadd.f32 %v1679, %v1681
      %v1683 = vpack.c.bf16 %v1682, %v1682
      %v1684 = vld [vmem:[%s49] sm:$0xff]
      %v1685 = vld [vmem:[%s49 + $0x8] sm:$0xff]
      %v1686 = vld [vmem:[%s49 + $0x10] sm:$0xff]
      %v1687 = vld [vmem:[%s49 + $0x18] sm:$0xff]
      %v1688 = vpack.c.bf16 %v1685, %v1684
      %v1689 = vpack.c.bf16 %v1687, %v1686
      %v1690 = vld [vmem:[%s51] sm:$0x1]
      %v1692 = vperm.slane %v1690, 0
      %v1695 = vsel %vm1253, %v1683, 0
      %1697 = vmatpush.bf16.msra.mxu0 0
      %1698 = vmatpush.bf16.msra.mxu0 0
      %1699 = vmatpush.bf16.msra.mxu0 0
      %1700 = vmatpush.bf16.msra.mxu0 0
      %1701 = vmatpush.bf16.msra.mxu0 0
      %1702 = vmatpush.bf16.msra.mxu0 0
      %1703 = vmatpush.bf16.msra.mxu0 %v1689
      %1704 = vmatpush.bf16.msra.mxu0 %v1688
      %1705 = vmatmul.bf16.gmra.mxu0 %v1695
      %v1706 = vpop.f32.mrf.mxu0
      %v1707 = vadd.f32 %v1692, %v1706
      %v1708 = vpop.f32.mrf.mxu0
      %1709 = vdwg.mxu0
      %v1710 = vpack.c.bf16 %v1525, %v1525
      %v1711 = vld [vmem:[%s53] sm:$0xff]
      %v1712 = vld [vmem:[%s53 + $0x8] sm:$0xff]
      %v1713 = vld [vmem:[%s53 + $0x10] sm:$0xff]
      %v1714 = vld [vmem:[%s53 + $0x18] sm:$0xff]
      %v1715 = vpack.c.bf16 %v1712, %v1711
      %v1716 = vpack.c.bf16 %v1714, %v1713
      %v1717 = vld [vmem:[%s55] sm:$0x1]
      %v1719 = vperm.slane %v1717, 0
      %v1722 = vsel %vm1253, %v1710, 0
      %1724 = vmatpush.bf16.msra.mxu0 0
      %1725 = vmatpush.bf16.msra.mxu0 0
      %1726 = vmatpush.bf16.msra.mxu0 0
      %1727 = vmatpush.bf16.msra.mxu0 0
      %1728 = vmatpush.bf16.msra.mxu0 0
      %1729 = vmatpush.bf16.msra.mxu0 0
      %1730 = vmatpush.bf16.msra.mxu0 %v1716
      %1731 = vmatpush.bf16.msra.mxu0 %v1715
      %1732 = vmatmul.bf16.gmra.mxu0 %v1722
      %v1733 = vpop.f32.mrf.mxu0
      %v1734 = vadd.f32 %v1719, %v1733
      %v1735 = vpop.f32.mrf.mxu0
      %1736 = vdwg.mxu0
      %v1737 = vmul.f32 %v1707, 0.17677669
      %v1738 = vpack.c.bf16 %v1737, %v1737
      %v1739 = vpack.c.bf16 %v1734, %v1734
      %v1741 = vsel %vm1253, %v1738, 0
      %v1744 = vsel %vm1253, %v1739, 0
      %1746 = vmatpush.bf16.xpose.msra.mxu0 0
      %1747 = vmatpush.bf16.xpose.msra.mxu0 0
      %1748 = vmatpush.bf16.xpose.msra.mxu0 0
      %1749 = vmatpush.bf16.xpose.msra.mxu0 0
      %1750 = vmatpush.bf16.xpose.msra.mxu0 0
      %1751 = vmatpush.bf16.xpose.msra.mxu0 0
      %1752 = vmatpush.bf16.xpose.msra.mxu0 0
      %1753 = vmatpush.bf16.xpose.msra.mxu0 %v1744
      %1754 = vmatmul.bf16.gmra.mxu0 %v1741
      %v1755 = vpop.f32.mrf.mxu0
      %v1756 = vadd.f32 %v1275, %v1755
      %v1757 = vpop.f32.mrf.mxu0
      %1758 = vdwg.mxu0
      %vm1759 = vcmask 29696
      %v1760 = vsel %vm1759, %v1756, -inf
      %1761 = vmax.xlane.f32.xlu0 %v1760
      %v1762 = vpop.xlane.xlu0 %1761
      %v1763 = vsub.f32 %v1756, %v1762
      %v1764 = vmul.f32 %v1763, 1.442695
      %v1765 = vpow.pop %v1764
      %v1766 = vsel %vm1759, %v1765, 0.0
      %1767 = vadd.xlane.f32.xlu0 %v1766
      %v1768 = vpop.xlane.xlu0 %1767
      %v1769 = vrcp.pop %v1768
      %v1770 = vmul.f32 %v1765, %v1769
      %v1771 = vpack.c.bf16 %v1770, %v1770
      %1773 = vrot.lane.b32.xlu0 %v1739, 96
      %v1774 = vpop.permute.xlu0 %1773
      %v1776 = vsel %vm1314, %v1771, 0
      %v1779 = vsel %vm1318, %v1774, 0
      %1781 = vmatpush.bf16.msra.mxu0 0
      %1782 = vmatpush.bf16.msra.mxu0 0
      %1783 = vmatpush.bf16.msra.mxu0 0
      %1784 = vmatpush.bf16.msra.mxu0 0
      %1785 = vmatpush.bf16.msra.mxu0 0
      %1786 = vmatpush.bf16.msra.mxu0 0
      %1787 = vmatpush.bf16.msra.mxu0 0
      %1788 = vmatpush.bf16.msra.mxu0 %v1779
      %1789 = vmatmul.bf16.gmra.mxu0 %v1776
      %v1790 = vpop.f32.mrf.mxu0
      %v1791 = vadd.f32 0.0, %v1790
      %v1792 = vpop.f32.mrf.mxu0
      %1793 = vdwg.mxu0
      %v1794 = vpack.c.bf16 %v1791, %v1791
      %v1795 = vld [vmem:[%s57] sm:$0xff]
      %v1796 = vld [vmem:[%s57 + $0x8] sm:$0xff]
      %v1797 = vld [vmem:[%s57 + $0x10] sm:$0xff]
      %v1798 = vld [vmem:[%s57 + $0x18] sm:$0xff]
      %v1799 = vpack.c.bf16 %v1796, %v1795
      %v1800 = vpack.c.bf16 %v1798, %v1797
      %v1801 = vld [vmem:[%s59] sm:$0x1]
      %v1803 = vperm.slane %v1801, 0
      %v1806 = vsel %vm1253, %v1794, 0
      %1808 = vmatpush.bf16.msra.mxu0 0
      %1809 = vmatpush.bf16.msra.mxu0 0
      %1810 = vmatpush.bf16.msra.mxu0 0
      %1811 = vmatpush.bf16.msra.mxu0 0
      %1812 = vmatpush.bf16.msra.mxu0 0
      %1813 = vmatpush.bf16.msra.mxu0 0
      %1814 = vmatpush.bf16.msra.mxu0 %v1800
      %1815 = vmatpush.bf16.msra.mxu0 %v1799
      %1816 = vmatmul.bf16.gmra.mxu0 %v1806
      %v1817 = vpop.f32.mrf.mxu0
      %v1818 = vadd.f32 %v1803, %v1817
      %v1819 = vpop.f32.mrf.mxu0
      %1820 = vdwg.mxu0
      %v1821 = vadd.f32 %v1682, %v1818
      %v1822 = vsel %vm1654, %v1821, 0.0
      %1823 = vadd.xlane.f32.xlu0 %v1822
      %v1824 = vpop.xlane.xlu0 %1823
      %v1825 = vmul.f32 %v1824, %v1373
      %v1826 = vsub.f32 %v1821, %v1825
      %v1827 = vmul.f32 %v1826, %v1826
      %v1828 = vsel %vm1654, %v1827, 0.0
      %1829 = vadd.xlane.f32.xlu0 %v1828
      %v1830 = vpop.xlane.xlu0 %1829
      %v1831 = vmul.f32 %v1830, %v1373
      %v1832 = vadd.f32 %v1831, 1e-05
      %v1833 = vrsqrt.pop %v1832
      %v1834 = vmul.f32 %v1833, %v1832
      %v1835 = vmul.f32 %v1834, %v1833
      %v1836 = vmul.f32 0.5, %v1835
      %v1837 = vsub.f32 1.5, %v1836
      %v1838 = vmul.f32 %v1833, %v1837
      %vm1839 = vweird.f32 %v1832
      %vm1840 = vweird.f32 %v1833
      %vm1841 = vmor %vm1839, %vm1840
      %v1842 = vsel %vm1841, %v1833, %v1838
      %v1843 = vmul.f32 %v1826, %v1842
      %v1844 = vld [vmem:[%s61] sm:$0x1]
      %v1845 = vperm.slane %v1844, 0
      %v1846 = vmul.f32 %v1843, %v1845
      %v1847 = vld [vmem:[%s61 + $0x1] sm:$0x1]
      %v1848 = vperm.slane %v1847, 0
      %v1849 = vadd.f32 %v1846, %v1848
      %v1850 = vpack.c.bf16 %v1849, %v1849
      %v1851 = vld [vmem:[%s63] sm:$0xff]
      %v1852 = vld [vmem:[%s63 + $0x8] sm:$0xff]
      %v1853 = vld [vmem:[%s63 + $0x10] sm:$0xff]
      %v1854 = vld [vmem:[%s63 + $0x18] sm:$0xff]
      %v1855 = vpack.c.bf16 %v1852, %v1851
      %v1856 = vpack.c.bf16 %v1854, %v1853
      %v1857 = vld [vmem:[%s65] sm:$0x1]
      %v1859 = vperm.slane %v1857, 0
      %v1862 = vsel %vm1253, %v1850, 0
      %1864 = vmatpush.bf16.msra.mxu0 0
      %1865 = vmatpush.bf16.msra.mxu0 0
      %1866 = vmatpush.bf16.msra.mxu0 0
      %1867 = vmatpush.bf16.msra.mxu0 0
      %1868 = vmatpush.bf16.msra.mxu0 0
      %1869 = vmatpush.bf16.msra.mxu0 0
      %1870 = vmatpush.bf16.msra.mxu0 %v1856
      %1871 = vmatpush.bf16.msra.mxu0 %v1855
      %1872 = vmatmul.bf16.gmra.mxu0 %v1862
      %v1873 = vpop.f32.mrf.mxu0
      %v1874 = vadd.f32 %v1859, %v1873
      %v1875 = vpop.f32.mrf.mxu0
      %1876 = vdwg.mxu0
      %v1877 = vmax.f32 %v1874, 0.0
      %v1878 = vpack.c.bf16 %v1877, %v1877
      %v1879 = vld [vmem:[%s67] sm:$0xff]
      %v1880 = vld [vmem:[%s67 + $0x8] sm:$0xff]
      %v1881 = vld [vmem:[%s67 + $0x10] sm:$0xff]
      %v1882 = vld [vmem:[%s67 + $0x18] sm:$0xff]
      %v1883 = vld [vmem:[%s67 + $0x20] sm:$0xff]
      %v1884 = vld [vmem:[%s67 + $0x28] sm:$0xff]
      %v1885 = vld [vmem:[%s67 + $0x30] sm:$0xff]
      %v1886 = vld [vmem:[%s67 + $0x38] sm:$0xff]
      %v1887 = vld [vmem:[%s67 + $0x40] sm:$0xff]
      %v1888 = vld [vmem:[%s67 + $0x48] sm:$0xff]
      %v1889 = vld [vmem:[%s67 + $0x50] sm:$0xff]
      %v1890 = vld [vmem:[%s67 + $0x58] sm:$0xff]
      %v1891 = vld [vmem:[%s67 + $0x60] sm:$0xff]
      %v1892 = vld [vmem:[%s67 + $0x68] sm:$0xff]
      %v1893 = vld [vmem:[%s67 + $0x70] sm:$0xff]
      %v1894 = vld [vmem:[%s67 + $0x78] sm:$0xff]
      %v1895 = vpack.c.bf16 %v1880, %v1879
      %v1896 = vpack.c.bf16 %v1882, %v1881
      %v1897 = vpack.c.bf16 %v1884, %v1883
      %v1898 = vpack.c.bf16 %v1886, %v1885
      %v1899 = vpack.c.bf16 %v1888, %v1887
      %v1900 = vpack.c.bf16 %v1890, %v1889
      %v1901 = vpack.c.bf16 %v1892, %v1891
      %v1902 = vpack.c.bf16 %v1894, %v1893
      %v1903 = vld [vmem:[%s69] sm:$0x1]
      %v1905 = vperm.slane %v1903, 0
      %1907 = vmatpush.bf16.msra.mxu0 %v1902
      %1908 = vmatpush.bf16.msra.mxu0 %v1901
      %1909 = vmatpush.bf16.msra.mxu0 %v1900
      %1910 = vmatpush.bf16.msra.mxu0 %v1899
      %1911 = vmatpush.bf16.msra.mxu0 %v1898
      %1912 = vmatpush.bf16.msra.mxu0 %v1897
      %1913 = vmatpush.bf16.msra.mxu0 %v1896
      %1914 = vmatpush.bf16.msra.mxu0 %v1895
      %1915 = vmatmul.bf16.gmra.mxu0 %v1878
      %v1916 = vpop.f32.mrf.mxu0
      %v1917 = vadd.f32 %v1905, %v1916
      %v1918 = vpop.f32.mrf.mxu0
      %1919 = vdwg.mxu0
      %v1920 = vadd.f32 %v1849, %v1917
      %v1921 = vsel %vm1654, %v1920, 0.0
      %1922 = vadd.xlane.f32.xlu0 %v1921
      %v1923 = vpop.xlane.xlu0 %1922
      %v1924 = vmul.f32 %v1923, %v1373
      %v1925 = vsub.f32 %v1920, %v1924
      %v1926 = vmul.f32 %v1925, %v1925
      %v1927 = vsel %vm1654, %v1926, 0.0
      %1928 = vadd.xlane.f32.xlu0 %v1927
      %v1929 = vpop.xlane.xlu0 %1928
      %v1930 = vmul.f32 %v1929, %v1373
      %v1931 = vadd.f32 %v1930, 1e-05
      %v1932 = vrsqrt.pop %v1931
      %v1933 = vmul.f32 %v1932, %v1931
      %v1934 = vmul.f32 %v1933, %v1932
      %v1935 = vmul.f32 0.5, %v1934
      %v1936 = vsub.f32 1.5, %v1935
      %v1937 = vmul.f32 %v1932, %v1936
      %vm1938 = vweird.f32 %v1931
      %vm1939 = vweird.f32 %v1932
      %vm1940 = vmor %vm1938, %vm1939
      %v1941 = vsel %vm1940, %v1932, %v1937
      %v1942 = vmul.f32 %v1925, %v1941
      %v1943 = vld [vmem:[%s71] sm:$0x1]
      %v1944 = vperm.slane %v1943, 0
      %v1945 = vmul.f32 %v1942, %v1944
      %v1946 = vld [vmem:[%s71 + $0x1] sm:$0x1]
      %v1947 = vperm.slane %v1946, 0
      %v1948 = vadd.f32 %v1945, %v1947
      %v1949 = vsel %vm1654, %v1948, 0.0
      %1950 = vadd.xlane.f32.xlu0 %v1949
      %v1951 = vpop.xlane.xlu0 %1950
      %v1952 = vmul.f32 %v1951, %v1373
      %v1953 = vsub.f32 %v1948, %v1952
      %v1954 = vmul.f32 %v1953, %v1953
      %v1955 = vsel %vm1654, %v1954, 0.0
      %1956 = vadd.xlane.f32.xlu0 %v1955
      %v1957 = vpop.xlane.xlu0 %1956
      %v1958 = vmul.f32 %v1957, %v1373
      %v1959 = vadd.f32 %v1958, 1e-05
      %v1960 = vrsqrt.pop %v1959
      %v1961 = vmul.f32 %v1960, %v1959
      %v1962 = vmul.f32 %v1961, %v1960
      %v1963 = vmul.f32 0.5, %v1962
      %v1964 = vsub.f32 1.5, %v1963
      %v1965 = vmul.f32 %v1960, %v1964
      %vm1966 = vweird.f32 %v1959
      %vm1967 = vweird.f32 %v1960
      %vm1968 = vmor %vm1966, %vm1967
      %v1969 = vsel %vm1968, %v1960, %v1965
      %v1970 = vmul.f32 %v1953, %v1969
      %v1971 = vld [vmem:[%s73] sm:$0x1]
      %v1972 = vperm.slane %v1971, 0
      %v1973 = vmul.f32 %v1970, %v1972
      %v1974 = vld [vmem:[%s73 + $0x1] sm:$0x1]
      %v1975 = vperm.slane %v1974, 0
      %v1976 = vadd.f32 %v1973, %v1975
      %v1977 = vpack.c.bf16 %v1976, %v1976
      %v1978 = vld [vmem:[%s75] sm:$0xff]
      %v1979 = vld [vmem:[%s75 + $0x8] sm:$0xff]
      %v1980 = vld [vmem:[%s75 + $0x10] sm:$0xff]
      %v1981 = vld [vmem:[%s75 + $0x18] sm:$0xff]
      %v1982 = vpack.c.bf16 %v1979, %v1978
      %v1983 = vpack.c.bf16 %v1981, %v1980
      %v1984 = vld [vmem:[%s77] sm:$0x1]
      %v1986 = vperm.slane %v1984, 0
      %v1989 = vsel %vm1253, %v1977, 0
      %1991 = vmatpush.bf16.msra.mxu0 0
      %1992 = vmatpush.bf16.msra.mxu0 0
      %1993 = vmatpush.bf16.msra.mxu0 0
      %1994 = vmatpush.bf16.msra.mxu0 0
      %1995 = vmatpush.bf16.msra.mxu0 0
      %1996 = vmatpush.bf16.msra.mxu0 0
      %1997 = vmatpush.bf16.msra.mxu0 %v1983
      %1998 = vmatpush.bf16.msra.mxu0 %v1982
      %1999 = vmatmul.bf16.gmra.mxu0 %v1989
      %v2000 = vpop.f32.mrf.mxu0
      %v2001 = vadd.f32 %v1986, %v2000
      %v2002 = vpop.f32.mrf.mxu0
      %2003 = vdwg.mxu0
      %vm2004 = vcmask 128000
      %2005 = vst.msk [vmem:[%s1229] sm:$0x3f] %vm2004, %v2001
      %p2006 = scmp.lt.s32.totalorder %s94, 1
      %s2007 = scalar_select %p2006, %s94, 1
      %s2008 = smul.addr %s2007, 8
      %s2009 = scalar_lea.vmem %s79, %s2008
      // Predicated region
      $region177: #{_lambda_.3} parent=175 // pred_check
        %p2010 = pneg %p951
      $region178: #{_lambda_.3} parent=175 // pred_check_branch
        %2012 = sbr.rel (%p2010) target = $region180
      $region179: #{_lambda_.3} parent=175 // pred_region
        _
      $region180: #{_lambda_.3} parent=175 // pred_fallthru
        _
    $region176: #{_lambda_.3} parent=5 // pred_fallthru
      _
    %p2013 = scmp.le.s32.totalorder 2, %s89
    // Predicated region
    $region181: #{_lambda_.3} parent=5 // pred_check
      %p2014 = pneg %p2013
    $region182: #{_lambda_.3} parent=5 // pred_check_branch
      %2016 = sbr.rel (%p2014) target = $region184
    $region183: #{_lambda_.3} parent=5 // pred_region
      %s2017 = ssub.s32 %s89, 2
      // Predicated region
      $region185: #{_lambda_.3} parent=183 // pred_check
        %p2018 = pneg %p957
      $region186: #{_lambda_.3} parent=183 // pred_check_branch
        %2020 = sbr.rel (%p2018) target = $region188
      $region187: #{_lambda_.3} parent=183 // pred_region
        %p2021 = scmp.lt.s32.totalorder %s95, 1
        %s2022 = scalar_select %p2021, %s95, 1
        %s2023 = smul.addr %s2022, 8
        %s2024 = scalar_lea.vmem %s79, %s2023
      $region188: #{_lambda_.3} parent=183 // pred_fallthru
        _
    $region184: #{_lambda_.3} parent=5 // pred_fallthru
      _
  $region6: #{_lambda_.3} parent=0 // loop_footer
    %s93 = sadd.s32 1, %s89
  $region7: #{_lambda_.3} parent=0 // loop_footer_branch
    %88 = sbr.rel target = $region3
  $region8: #{_lambda_.3} parent=0 // loop_exit
    _

</llo_original>
